<compile_context>
chip_gen: v5e
topology: v5e:2x2
jax: 0.10.0
libtpu: 0.0.40
codegen_flags: <defaults>
</compile_context>

<pallas_src>
import functools

import jax
import jax.numpy as jnp
from jax.experimental import pallas as pl
from jax.experimental.pallas import tpu as pltpu


def siglip_encoder_layer_kernel(
    x_ref,
    g1_ref, be1_ref,
    wq_ref, bq_ref, wk_ref, bk_ref, wv_ref, bv_ref, wo_ref, bo_ref,
    g2_ref, be2_ref,
    w1_ref, bf1_ref, w2_ref, bf2_ref,
    o_ref,
    *, num_heads: int, head_dim: int, eps: float,
):
    f32 = jnp.float32
    x = x_ref[0].astype(f32)            # (S, D)
    S, D = x.shape
    H, hd = num_heads, head_dim

    def layer_norm(v, g_ref, b_ref):
        mu = jnp.mean(v, axis=-1, keepdims=True)
        var = jnp.mean((v - mu) ** 2, axis=-1, keepdims=True)   # biased, like nn.LayerNorm
        return (v - mu) * jax.lax.rsqrt(var + eps) * g_ref[...].astype(f32) + b_ref[...].astype(f32)

    def matmul(a, w_ref, b_ref):
        w = w_ref[...]
        # Cast activations to the (bf16) weight dtype so the MXU runs its fast
        # path; accumulate in f32.
        return (jnp.dot(a.astype(w.dtype), w, preferred_element_type=f32)
                + b_ref[...].astype(f32))

    # ---- LayerNorm 1 (f32) ----
    xn = layer_norm(x, g1_ref, be1_ref)

    # ---- QKV projections.  1/sqrt(head_dim) is pre-folded into wq/bq. ----
    q = matmul(xn, wq_ref, bq_ref)      # (S, D), already scaled
    k = matmul(xn, wk_ref, bk_ref)
    v = matmul(xn, wv_ref, bv_ref)

    # ---- Batched multi-head attention: head dim as the batch axis of one
    #      3-D dot_general each for QK^T and PV (no per-head unroll, no
    #      explicit k.T, no concatenate). ----
    bf16 = jnp.bfloat16
    q3 = jnp.swapaxes(q.reshape(S, H, hd), 0, 1).astype(bf16)   # (H, S, hd)
    k3 = jnp.swapaxes(k.reshape(S, H, hd), 0, 1).astype(bf16)
    v3 = jnp.swapaxes(v.reshape(S, H, hd), 0, 1).astype(bf16)

    scores = jnp.einsum("hqd,hkd->hqk", q3, k3,
                        preferred_element_type=f32)             # (H, S, S)
    scores = scores - jnp.max(scores, axis=-1, keepdims=True)
    p = jnp.exp(scores)
    # Approximate reciprocal runs on the EUP slot (near-free) instead of a
    # VALU divide over the full (H, S, S) tensor.
    p = p * pl.reciprocal(jnp.sum(p, axis=-1, keepdims=True), approx=True)

    ctx = jnp.einsum("hqk,hkd->hqd", p.astype(bf16), v3,
                     preferred_element_type=f32)                # (H, S, hd)
    ctx = jnp.swapaxes(ctx, 0, 1).reshape(S, D)                 # (S, D)
    attn = matmul(ctx, wo_ref, bo_ref)

    # ---- residual 1 ----
    h1 = attn + x

    # ---- LayerNorm 2 (this becomes the residual, per the source forward) ----
    r2 = layer_norm(h1, g2_ref, be2_ref)

    # ---- MLP on the un-normalized h1, tanh-approx GELU ----
    m = matmul(h1, w1_ref, bf1_ref)
    c = jnp.float32(0.7978845608028654)  # sqrt(2/pi)
    m = 0.5 * m * (1.0 + jnp.tanh(c * (m + 0.044715 * m * m * m)))
    m = matmul(m, w2_ref, bf2_ref)

    o_ref[0] = (m + r2).astype(o_ref.dtype)


def siglip_encoder_layer(x, params, *, num_heads, eps,
                         weight_dtype=jnp.bfloat16):
    B, S, D = x.shape
    head_dim = D // num_heads
    I = params["w1"].shape[1]
    scale = head_dim ** -0.5

    # Fold the attention scale into the Q projection (scales D*D weights once
    # instead of the (H, S, S) score tensor every call).  Weights -> bf16,
    # biases / LN params stay f32 (tiny, added after f32 accumulation).
    wd = weight_dtype
    wq = (params["wq"] * scale).astype(wd)
    bq = (params["bq"] * scale).astype(jnp.float32)
    wk, wv, wo = (params[n].astype(wd) for n in ("wk", "wv", "wo"))
    w1, w2 = params["w1"].astype(wd), params["w2"].astype(wd)

    kern = functools.partial(
        siglip_encoder_layer_kernel,
        num_heads=num_heads, head_dim=head_dim, eps=eps,
    )

    def const_spec(shape):
        # Weight/bias blocks never change across the grid: single-buffer them
        # so VMEM is not doubled for resident parameters.
        return pl.BlockSpec(shape, lambda b: (0, 0), pipeline_mode=pl.Buffered(1))

    in_specs = [
        pl.BlockSpec((1, S, D), lambda b: (b, 0, 0)),   # x: one batch row per program
        const_spec((1, D)), const_spec((1, D)),         # ln1 gamma / beta
        const_spec((D, D)), const_spec((1, D)),         # q_proj (pre-scaled)
        const_spec((D, D)), const_spec((1, D)),         # k_proj
        const_spec((D, D)), const_spec((1, D)),         # v_proj
        const_spec((D, D)), const_spec((1, D)),         # out_proj
        const_spec((1, D)), const_spec((1, D)),         # ln2 gamma / beta
        const_spec((D, I)), const_spec((1, I)),         # fc1
        const_spec((I, D)), const_spec((1, D)),         # fc2
    ]

    return pl.pallas_call(
        kern,
        out_shape=jax.ShapeDtypeStruct((B, S, D), x.dtype),
        grid_spec=pltpu.PrefetchScalarGridSpec(
            num_scalar_prefetch=0,
            grid=(B,),
            in_specs=in_specs,
            out_specs=pl.BlockSpec((1, S, D), lambda b: (b, 0, 0)),
        ),
        compiler_params=pltpu.CompilerParams(
            # Batch rows are fully independent -> shard across TCs on v7x.
            dimension_semantics=("parallel",),
            vmem_limit_bytes=64 * 1024 * 1024,
        ),
    )(
        x,
        params["g1"], params["b1"],
        wq, bq, wk, params["bk"].astype(jnp.float32),
        wv, params["bv"].astype(jnp.float32),
        wo, params["bo"].astype(jnp.float32),
        params["g2"], params["b2"],
        w1, params["bf1"].astype(jnp.float32),
        w2, params["bf2"].astype(jnp.float32),
    )


def reference(x, p, num_heads, eps):
    B, S, D = x.shape
    hd = D // num_heads

    def ln(v, g, b):
        mu = v.mean(-1, keepdims=True)
        var = ((v - mu) ** 2).mean(-1, keepdims=True)
        return (v - mu) / jnp.sqrt(var + eps) * g + b

    xn = ln(x, p["g1"], p["b1"])
    q = xn @ p["wq"] + p["bq"]
    k = xn @ p["wk"] + p["bk"]
    v = xn @ p["wv"] + p["bv"]
    q = q.reshape(B, S, num_heads, hd).transpose(0, 2, 1, 3)
    k = k.reshape(B, S, num_heads, hd).transpose(0, 2, 1, 3)
    v = v.reshape(B, S, num_heads, hd).transpose(0, 2, 1, 3)
    scores = jnp.einsum("bhqd,bhkd->bhqk", q, k) * hd ** -0.5
    pw = jax.nn.softmax(scores, axis=-1)
    ao = jnp.einsum("bhqk,bhkd->bhqd", pw, v)
    ao = ao.transpose(0, 2, 1, 3).reshape(B, S, D)
    ao = ao @ p["wo"] + p["bo"]
    h1 = ao + x
    r2 = ln(h1, p["g2"], p["b2"])
    m = jax.nn.gelu(h1 @ p["w1"] + p["bf1"], approximate=True)
    m = m @ p["w2"] + p["bf2"]
    return m + r2


if __name__ == "__main__":
    # Small but lane-aligned config (D multiple of 128, tiny S/I) so the MXU /
    # store paths are exercised without masking.  Real SigLIP: D=768, I=3072.
    B, S, D, H, I = 2, 32, 128, 4, 256
    EPS = 1e-12   # SiglipVisualizationConfig default layer_norm_eps

    key = jax.random.PRNGKey(0)
    ks = jax.random.split(key, 16)

    def w(k, shape, scale=0.05):
        return (scale * jax.random.normal(k, shape)).astype(jnp.float32)

    params = {
        "g1": 1.0 + w(ks[0], (1, D)), "b1": w(ks[1], (1, D)),
        "wq": w(ks[2], (D, D)), "bq": w(ks[3], (1, D)),
        "wk": w(ks[4], (D, D)), "bk": w(ks[5], (1, D)),
        "wv": w(ks[6], (D, D)), "bv": w(ks[7], (1, D)),
        "wo": w(ks[8], (D, D)), "bo": w(ks[9], (1, D)),
        "g2": 1.0 + w(ks[10], (1, D)), "b2": w(ks[11], (1, D)),
        "w1": w(ks[12], (D, I)), "bf1": w(ks[13], (1, I)),
        "w2": w(ks[14], (I, D)), "bf2": w(ks[15], (1, D)),
    }

    x = jax.random.normal(jax.random.PRNGKey(42), (B, S, D), dtype=jnp.float32)

    out = siglip_encoder_layer(x, params, num_heads=H, eps=EPS)
    out = jax.block_until_ready(out)

    ref = reference(x, params, H, EPS)
    assert out.shape == (B, S, D)
    # Tolerance accounts for bf16 weights/activations on the MXU + approx
    # reciprocal in the softmax; reference is pure f32.
    err = jnp.max(jnp.abs(out - ref))
    assert jnp.allclose(out, ref, rtol=3e-2, atol=3e-2), f"max abs err = {err}"
    print("KERNEL_OK")
</pallas_src>

<mosaic_0001>
module attributes {stable_mosaic.version = 11 : i64} {
  func.func @siglip_encoder_layer_kernel(%arg0: i32, %arg1: memref<1x32x128xf32, #tpu.memory_space<vmem>>, %arg2: memref<1x128xf32, #tpu.memory_space<vmem>>, %arg3: memref<1x128xf32, #tpu.memory_space<vmem>>, %arg4: memref<128x128xbf16, #tpu.memory_space<vmem>>, %arg5: memref<1x128xf32, #tpu.memory_space<vmem>>, %arg6: memref<128x128xbf16, #tpu.memory_space<vmem>>, %arg7: memref<1x128xf32, #tpu.memory_space<vmem>>, %arg8: memref<128x128xbf16, #tpu.memory_space<vmem>>, %arg9: memref<1x128xf32, #tpu.memory_space<vmem>>, %arg10: memref<128x128xbf16, #tpu.memory_space<vmem>>, %arg11: memref<1x128xf32, #tpu.memory_space<vmem>>, %arg12: memref<1x128xf32, #tpu.memory_space<vmem>>, %arg13: memref<1x128xf32, #tpu.memory_space<vmem>>, %arg14: memref<128x256xbf16, #tpu.memory_space<vmem>>, %arg15: memref<1x256xf32, #tpu.memory_space<vmem>>, %arg16: memref<256x128xbf16, #tpu.memory_space<vmem>>, %arg17: memref<1x128xf32, #tpu.memory_space<vmem>>, %arg18: memref<1x32x128xf32, #tpu.memory_space<vmem>>) attributes {dimension_semantics = [#tpu.dimension_semantics<parallel>], iteration_bounds = array<i64: 2>, scalar_prefetch = 0 : i64, scratch_operands = 0 : i64, tpu.core_type = #tpu.core_type<tc>, window_params = [{transform_indices = @transform_0, window_bounds = array<i64: 1, 32, 128>}, {pipeline_mode = #tpu.pipeline_mode<synchronous>, transform_indices = @transform_1, window_bounds = array<i64: 1, 128>}, {pipeline_mode = #tpu.pipeline_mode<synchronous>, transform_indices = @transform_2, window_bounds = array<i64: 1, 128>}, {pipeline_mode = #tpu.pipeline_mode<synchronous>, transform_indices = @transform_3, window_bounds = array<i64: 128, 128>}, {pipeline_mode = #tpu.pipeline_mode<synchronous>, transform_indices = @transform_4, window_bounds = array<i64: 1, 128>}, {pipeline_mode = #tpu.pipeline_mode<synchronous>, transform_indices = @transform_5, window_bounds = array<i64: 128, 128>}, {pipeline_mode = #tpu.pipeline_mode<synchronous>, transform_indices = @transform_6, window_bounds = array<i64: 1, 128>}, {pipeline_mode = #tpu.pipeline_mode<synchronous>, transform_indices = @transform_7, window_bounds = array<i64: 128, 128>}, {pipeline_mode = #tpu.pipeline_mode<synchronous>, transform_indices = @transform_8, window_bounds = array<i64: 1, 128>}, {pipeline_mode = #tpu.pipeline_mode<synchronous>, transform_indices = @transform_9, window_bounds = array<i64: 128, 128>}, {pipeline_mode = #tpu.pipeline_mode<synchronous>, transform_indices = @transform_10, window_bounds = array<i64: 1, 128>}, {pipeline_mode = #tpu.pipeline_mode<synchronous>, transform_indices = @transform_11, window_bounds = array<i64: 1, 128>}, {pipeline_mode = #tpu.pipeline_mode<synchronous>, transform_indices = @transform_12, window_bounds = array<i64: 1, 128>}, {pipeline_mode = #tpu.pipeline_mode<synchronous>, transform_indices = @transform_13, window_bounds = array<i64: 128, 256>}, {pipeline_mode = #tpu.pipeline_mode<synchronous>, transform_indices = @transform_14, window_bounds = array<i64: 1, 256>}, {pipeline_mode = #tpu.pipeline_mode<synchronous>, transform_indices = @transform_15, window_bounds = array<i64: 256, 128>}, {pipeline_mode = #tpu.pipeline_mode<synchronous>, transform_indices = @transform_16, window_bounds = array<i64: 1, 128>}, {transform_indices = @transform_17, window_bounds = array<i64: 1, 32, 128>}]} {
    %c0 = arith.constant 0 : index
    %c0_0 = arith.constant 0 : index
    %c0_1 = arith.constant 0 : index
    %0 = vector.load %arg1[%c0, %c0_0, %c0_1] : memref<1x32x128xf32, #tpu.memory_space<vmem>>, vector<1x32x128xf32>
    %1 = vector.shape_cast %0 : vector<1x32x128xf32> to vector<32x128xf32>
    %cst = arith.constant dense<0.000000e+00> : vector<32xf32>
    %2 = vector.multi_reduction <add>, %1, %cst [1] : vector<32x128xf32> to vector<32xf32>
    %3 = vector.shape_cast %2 : vector<32xf32> to vector<32x1xf32>
    %cst_2 = arith.constant 1.280000e+02 : f32
    %4 = vector.broadcast %cst_2 : f32 to vector<32x1xf32>
    %5 = arith.divf %3, %4 : vector<32x1xf32>
    %6 = vector.broadcast %5 : vector<32x1xf32> to vector<32x128xf32>
    %7 = arith.subf %1, %6 : vector<32x128xf32>
    %8 = arith.mulf %7, %7 : vector<32x128xf32>
    %cst_3 = arith.constant dense<0.000000e+00> : vector<32xf32>
    %9 = vector.multi_reduction <add>, %8, %cst_3 [1] : vector<32x128xf32> to vector<32xf32>
    %10 = vector.shape_cast %9 : vector<32xf32> to vector<32x1xf32>
    %cst_4 = arith.constant 1.280000e+02 : f32
    %11 = vector.broadcast %cst_4 : f32 to vector<32x1xf32>
    %12 = arith.divf %10, %11 : vector<32x1xf32>
    %13 = vector.broadcast %5 : vector<32x1xf32> to vector<32x128xf32>
    %14 = arith.subf %1, %13 : vector<32x128xf32>
    %cst_5 = arith.constant 9.99999996E-13 : f32
    %15 = vector.broadcast %cst_5 : f32 to vector<32x1xf32>
    %16 = arith.addf %12, %15 : vector<32x1xf32>
    %17 = math.rsqrt %16 : vector<32x1xf32>
    %18 = vector.broadcast %17 : vector<32x1xf32> to vector<32x128xf32>
    %19 = arith.mulf %14, %18 : vector<32x128xf32>
    %c0_6 = arith.constant 0 : index
    %c0_7 = arith.constant 0 : index
    %20 = vector.load %arg2[%c0_6, %c0_7] : memref<1x128xf32, #tpu.memory_space<vmem>>, vector<1x128xf32>
    %21 = vector.broadcast %20 : vector<1x128xf32> to vector<32x128xf32>
    %22 = arith.mulf %19, %21 : vector<32x128xf32>
    %c0_8 = arith.constant 0 : index
    %c0_9 = arith.constant 0 : index
    %23 = vector.load %arg3[%c0_8, %c0_9] : memref<1x128xf32, #tpu.memory_space<vmem>>, vector<1x128xf32>
    %24 = vector.broadcast %23 : vector<1x128xf32> to vector<32x128xf32>
    %25 = arith.addf %22, %24 : vector<32x128xf32>
    %c0_10 = arith.constant 0 : index
    %c0_11 = arith.constant 0 : index
    %26 = vector.load %arg4[%c0_10, %c0_11] : memref<128x128xbf16, #tpu.memory_space<vmem>>, vector<128x128xbf16>
    %27 = arith.truncf %25 : vector<32x128xf32> to vector<32x128xbf16>
    %cst_12 = arith.constant dense<0.000000e+00> : vector<32x128xf32>
    %28 = tpu.matmul %27, %26, %cst_12 {dimension_numbers = #tpu.dot_dimension_numbers<[1], [0], [0], [1], [0, 0, 1, 1], [], []>} : vector<32x128xbf16>, vector<128x128xbf16>, vector<32x128xf32> -> vector<32x128xf32>
    %c0_13 = arith.constant 0 : index
    %c0_14 = arith.constant 0 : index
    %29 = vector.load %arg5[%c0_13, %c0_14] : memref<1x128xf32, #tpu.memory_space<vmem>>, vector<1x128xf32>
    %30 = vector.broadcast %29 : vector<1x128xf32> to vector<32x128xf32>
    %31 = arith.addf %28, %30 : vector<32x128xf32>
    %c0_15 = arith.constant 0 : index
    %c0_16 = arith.constant 0 : index
    %32 = vector.load %arg6[%c0_15, %c0_16] : memref<128x128xbf16, #tpu.memory_space<vmem>>, vector<128x128xbf16>
    %33 = arith.truncf %25 : vector<32x128xf32> to vector<32x128xbf16>
    %cst_17 = arith.constant dense<0.000000e+00> : vector<32x128xf32>
    %34 = tpu.matmul %33, %32, %cst_17 {dimension_numbers = #tpu.dot_dimension_numbers<[1], [0], [0], [1], [0, 0, 1, 1], [], []>} : vector<32x128xbf16>, vector<128x128xbf16>, vector<32x128xf32> -> vector<32x128xf32>
    %c0_18 = arith.constant 0 : index
    %c0_19 = arith.constant 0 : index
    %35 = vector.load %arg7[%c0_18, %c0_19] : memref<1x128xf32, #tpu.memory_space<vmem>>, vector<1x128xf32>
    %36 = vector.broadcast %35 : vector<1x128xf32> to vector<32x128xf32>
    %37 = arith.addf %34, %36 : vector<32x128xf32>
    %c0_20 = arith.constant 0 : index
    %c0_21 = arith.constant 0 : index
    %38 = vector.load %arg8[%c0_20, %c0_21] : memref<128x128xbf16, #tpu.memory_space<vmem>>, vector<128x128xbf16>
    %39 = arith.truncf %25 : vector<32x128xf32> to vector<32x128xbf16>
    %cst_22 = arith.constant dense<0.000000e+00> : vector<32x128xf32>
    %40 = tpu.matmul %39, %38, %cst_22 {dimension_numbers = #tpu.dot_dimension_numbers<[1], [0], [0], [1], [0, 0, 1, 1], [], []>} : vector<32x128xbf16>, vector<128x128xbf16>, vector<32x128xf32> -> vector<32x128xf32>
    %c0_23 = arith.constant 0 : index
    %c0_24 = arith.constant 0 : index
    %41 = vector.load %arg9[%c0_23, %c0_24] : memref<1x128xf32, #tpu.memory_space<vmem>>, vector<1x128xf32>
    %42 = vector.broadcast %41 : vector<1x128xf32> to vector<32x128xf32>
    %43 = arith.addf %40, %42 : vector<32x128xf32>
    %44 = vector.shape_cast %31 : vector<32x128xf32> to vector<32x4x32xf32>
    %45 = tpu.transpose %44, [1, 0, 2] : vector<32x4x32xf32> -> vector<4x32x32xf32>
    %46 = arith.truncf %45 : vector<4x32x32xf32> to vector<4x32x32xbf16>
    %47 = vector.shape_cast %37 : vector<32x128xf32> to vector<32x4x32xf32>
    %48 = tpu.transpose %47, [1, 0, 2] : vector<32x4x32xf32> -> vector<4x32x32xf32>
    %49 = arith.truncf %48 : vector<4x32x32xf32> to vector<4x32x32xbf16>
    %50 = vector.shape_cast %43 : vector<32x128xf32> to vector<32x4x32xf32>
    %51 = tpu.transpose %50, [1, 0, 2] : vector<32x4x32xf32> -> vector<4x32x32xf32>
    %52 = arith.truncf %51 : vector<4x32x32xf32> to vector<4x32x32xbf16>
    "tpu.trace_start"() <{level = 10 : i32, message = "hqd,hkd->hqk"}> : () -> ()
    %cst_25 = arith.constant dense<0.000000e+00> : vector<4x32x32xf32>
    %53 = tpu.matmul %46, %49, %cst_25 {dimension_numbers = #tpu.dot_dimension_numbers<[2], [2], [1], [1], [0, 0, 0, 1, 1, 1], [0], [0]>} : vector<4x32x32xbf16>, vector<4x32x32xbf16>, vector<4x32x32xf32> -> vector<4x32x32xf32>
    "tpu.trace_stop"() : () -> ()
    %cst_26 = arith.constant dense<0xFF800000> : vector<4x32xf32>
    %54 = vector.multi_reduction <maximumf>, %53, %cst_26 [2] : vector<4x32x32xf32> to vector<4x32xf32>
    %55 = vector.shape_cast %54 : vector<4x32xf32> to vector<4x32x1xf32>
    %56 = vector.broadcast %55 : vector<4x32x1xf32> to vector<4x32x32xf32>
    %57 = arith.subf %53, %56 : vector<4x32x32xf32>
    %58 = math.exp %57 : vector<4x32x32xf32>
    %cst_27 = arith.constant dense<0.000000e+00> : vector<4x32xf32>
    %59 = vector.multi_reduction <add>, %58, %cst_27 [2] : vector<4x32x32xf32> to vector<4x32xf32>
    %60 = vector.shape_cast %59 : vector<4x32xf32> to vector<4x32x1xf32>
    %61 = tpu.reciprocal %60 {approx = true} : vector<4x32x1xf32> -> vector<4x32x1xf32>
    %62 = vector.broadcast %61 : vector<4x32x1xf32> to vector<4x32x32xf32>
    %63 = arith.mulf %58, %62 : vector<4x32x32xf32>
    %64 = arith.truncf %63 : vector<4x32x32xf32> to vector<4x32x32xbf16>
    "tpu.trace_start"() <{level = 10 : i32, message = "hqk,hkd->hqd"}> : () -> ()
    %cst_28 = arith.constant dense<0.000000e+00> : vector<4x32x32xf32>
    %65 = tpu.matmul %64, %52, %cst_28 {dimension_numbers = #tpu.dot_dimension_numbers<[2], [1], [1], [2], [0, 0, 0, 1, 1, 2], [0], [0]>} : vector<4x32x32xbf16>, vector<4x32x32xbf16>, vector<4x32x32xf32> -> vector<4x32x32xf32>
    "tpu.trace_stop"() : () -> ()
    %66 = tpu.transpose %65, [1, 0, 2] : vector<4x32x32xf32> -> vector<32x4x32xf32>
    %67 = vector.shape_cast %66 : vector<32x4x32xf32> to vector<32x128xf32>
    %c0_29 = arith.constant 0 : index
    %c0_30 = arith.constant 0 : index
    %68 = vector.load %arg10[%c0_29, %c0_30] : memref<128x128xbf16, #tpu.memory_space<vmem>>, vector<128x128xbf16>
    %69 = arith.truncf %67 : vector<32x128xf32> to vector<32x128xbf16>
    %cst_31 = arith.constant dense<0.000000e+00> : vector<32x128xf32>
    %70 = tpu.matmul %69, %68, %cst_31 {dimension_numbers = #tpu.dot_dimension_numbers<[1], [0], [0], [1], [0, 0, 1, 1], [], []>} : vector<32x128xbf16>, vector<128x128xbf16>, vector<32x128xf32> -> vector<32x128xf32>
    %c0_32 = arith.constant 0 : index
    %c0_33 = arith.constant 0 : index
    %71 = vector.load %arg11[%c0_32, %c0_33] : memref<1x128xf32, #tpu.memory_space<vmem>>, vector<1x128xf32>
    %72 = vector.broadcast %71 : vector<1x128xf32> to vector<32x128xf32>
    %73 = arith.addf %70, %72 : vector<32x128xf32>
    %74 = arith.addf %73, %1 : vector<32x128xf32>
    %cst_34 = arith.constant dense<0.000000e+00> : vector<32xf32>
    %75 = vector.multi_reduction <add>, %74, %cst_34 [1] : vector<32x128xf32> to vector<32xf32>
    %76 = vector.shape_cast %75 : vector<32xf32> to vector<32x1xf32>
    %cst_35 = arith.constant 1.280000e+02 : f32
    %77 = vector.broadcast %cst_35 : f32 to vector<32x1xf32>
    %78 = arith.divf %76, %77 : vector<32x1xf32>
    %79 = vector.broadcast %78 : vector<32x1xf32> to vector<32x128xf32>
    %80 = arith.subf %74, %79 : vector<32x128xf32>
    %81 = arith.mulf %80, %80 : vector<32x128xf32>
    %cst_36 = arith.constant dense<0.000000e+00> : vector<32xf32>
    %82 = vector.multi_reduction <add>, %81, %cst_36 [1] : vector<32x128xf32> to vector<32xf32>
    %83 = vector.shape_cast %82 : vector<32xf32> to vector<32x1xf32>
    %cst_37 = arith.constant 1.280000e+02 : f32
    %84 = vector.broadcast %cst_37 : f32 to vector<32x1xf32>
    %85 = arith.divf %83, %84 : vector<32x1xf32>
    %86 = vector.broadcast %78 : vector<32x1xf32> to vector<32x128xf32>
    %87 = arith.subf %74, %86 : vector<32x128xf32>
    %cst_38 = arith.constant 9.99999996E-13 : f32
    %88 = vector.broadcast %cst_38 : f32 to vector<32x1xf32>
    %89 = arith.addf %85, %88 : vector<32x1xf32>
    %90 = math.rsqrt %89 : vector<32x1xf32>
    %91 = vector.broadcast %90 : vector<32x1xf32> to vector<32x128xf32>
    %92 = arith.mulf %87, %91 : vector<32x128xf32>
    %c0_39 = arith.constant 0 : index
    %c0_40 = arith.constant 0 : index
    %93 = vector.load %arg12[%c0_39, %c0_40] : memref<1x128xf32, #tpu.memory_space<vmem>>, vector<1x128xf32>
    %94 = vector.broadcast %93 : vector<1x128xf32> to vector<32x128xf32>
    %95 = arith.mulf %92, %94 : vector<32x128xf32>
    %c0_41 = arith.constant 0 : index
    %c0_42 = arith.constant 0 : index
    %96 = vector.load %arg13[%c0_41, %c0_42] : memref<1x128xf32, #tpu.memory_space<vmem>>, vector<1x128xf32>
    %97 = vector.broadcast %96 : vector<1x128xf32> to vector<32x128xf32>
    %98 = arith.addf %95, %97 : vector<32x128xf32>
    %c0_43 = arith.constant 0 : index
    %c0_44 = arith.constant 0 : index
    %99 = vector.load %arg14[%c0_43, %c0_44] : memref<128x256xbf16, #tpu.memory_space<vmem>>, vector<128x256xbf16>
    %100 = arith.truncf %74 : vector<32x128xf32> to vector<32x128xbf16>
    %cst_45 = arith.constant dense<0.000000e+00> : vector<32x256xf32>
    %101 = tpu.matmul %100, %99, %cst_45 {dimension_numbers = #tpu.dot_dimension_numbers<[1], [0], [0], [1], [0, 0, 1, 1], [], []>} : vector<32x128xbf16>, vector<128x256xbf16>, vector<32x256xf32> -> vector<32x256xf32>
    %c0_46 = arith.constant 0 : index
    %c0_47 = arith.constant 0 : index
    %102 = vector.load %arg15[%c0_46, %c0_47] : memref<1x256xf32, #tpu.memory_space<vmem>>, vector<1x256xf32>
    %103 = vector.broadcast %102 : vector<1x256xf32> to vector<32x256xf32>
    %104 = arith.addf %101, %103 : vector<32x256xf32>
    %cst_48 = arith.constant 5.000000e-01 : f32
    %105 = vector.broadcast %cst_48 : f32 to vector<32x256xf32>
    %106 = arith.mulf %105, %104 : vector<32x256xf32>
    %cst_49 = arith.constant 4.471500e-02 : f32
    %107 = vector.broadcast %cst_49 : f32 to vector<32x256xf32>
    %108 = arith.mulf %107, %104 : vector<32x256xf32>
    %109 = arith.mulf %108, %104 : vector<32x256xf32>
    %110 = arith.mulf %109, %104 : vector<32x256xf32>
    %111 = arith.addf %104, %110 : vector<32x256xf32>
    %cst_50 = arith.constant 0.797884583 : f32
    %112 = vector.broadcast %cst_50 : f32 to vector<32x256xf32>
    %113 = arith.mulf %112, %111 : vector<32x256xf32>
    %114 = math.tanh %113 : vector<32x256xf32>
    %cst_51 = arith.constant 1.000000e+00 : f32
    %115 = vector.broadcast %cst_51 : f32 to vector<32x256xf32>
    %116 = arith.addf %115, %114 : vector<32x256xf32>
    %117 = arith.mulf %106, %116 : vector<32x256xf32>
    %c0_52 = arith.constant 0 : index
    %c0_53 = arith.constant 0 : index
    %118 = vector.load %arg16[%c0_52, %c0_53] : memref<256x128xbf16, #tpu.memory_space<vmem>>, vector<256x128xbf16>
    %119 = arith.truncf %117 : vector<32x256xf32> to vector<32x256xbf16>
    %cst_54 = arith.constant dense<0.000000e+00> : vector<32x128xf32>
    %120 = tpu.matmul %119, %118, %cst_54 {dimension_numbers = #tpu.dot_dimension_numbers<[1], [0], [0], [1], [0, 0, 1, 1], [], []>} : vector<32x256xbf16>, vector<256x128xbf16>, vector<32x128xf32> -> vector<32x128xf32>
    %c0_55 = arith.constant 0 : index
    %c0_56 = arith.constant 0 : index
    %121 = vector.load %arg17[%c0_55, %c0_56] : memref<1x128xf32, #tpu.memory_space<vmem>>, vector<1x128xf32>
    %122 = vector.broadcast %121 : vector<1x128xf32> to vector<32x128xf32>
    %123 = arith.addf %120, %122 : vector<32x128xf32>
    %124 = arith.addf %123, %98 : vector<32x128xf32>
    %c0_57 = arith.constant 0 : index
    %c0_58 = arith.constant 0 : index
    %c0_59 = arith.constant 0 : index
    %125 = vector.load %arg18[%c0_57, %c0_58, %c0_59] : memref<1x32x128xf32, #tpu.memory_space<vmem>>, vector<1x32x128xf32>
    %126 = vector.shape_cast %125 : vector<1x32x128xf32> to vector<32x128xf32>
    %127 = vector.shape_cast %124 : vector<32x128xf32> to vector<1x32x128xf32>
    tpu.vector_store %arg18[%c0_57, %c0_58, %c0_59], %127 {strides = array<i32>} : memref<1x32x128xf32, #tpu.memory_space<vmem>>, vector<1x32x128xf32>,
    return
  }
  func.func @transform_0(%arg0: i32) -> (i32, i32, i32) {
    %c0_i32 = arith.constant 0 : i32
    %c0_i32_0 = arith.constant 0 : i32
    %c0_i32_1 = arith.constant 0 : i32
    return %arg0, %c0_i32, %c0_i32_0 : i32, i32, i32
  }
  func.func @transform_1(%arg0: i32) -> (i32, i32) {
    %c0_i32 = arith.constant 0 : i32
    %c0_i32_0 = arith.constant 0 : i32
    %c0_i32_1 = arith.constant 0 : i32
    return %c0_i32, %c0_i32_0 : i32, i32
  }
  func.func @transform_2(%arg0: i32) -> (i32, i32) {
    %c0_i32 = arith.constant 0 : i32
    %c0_i32_0 = arith.constant 0 : i32
    %c0_i32_1 = arith.constant 0 : i32
    return %c0_i32, %c0_i32_0 : i32, i32
  }
  func.func @transform_3(%arg0: i32) -> (i32, i32) {
    %c0_i32 = arith.constant 0 : i32
    %c0_i32_0 = arith.constant 0 : i32
    %c0_i32_1 = arith.constant 0 : i32
    return %c0_i32, %c0_i32_0 : i32, i32
  }
  func.func @transform_4(%arg0: i32) -> (i32, i32) {
    %c0_i32 = arith.constant 0 : i32
    %c0_i32_0 = arith.constant 0 : i32
    %c0_i32_1 = arith.constant 0 : i32
    return %c0_i32, %c0_i32_0 : i32, i32
  }
  func.func @transform_5(%arg0: i32) -> (i32, i32) {
    %c0_i32 = arith.constant 0 : i32
    %c0_i32_0 = arith.constant 0 : i32
    %c0_i32_1 = arith.constant 0 : i32
    return %c0_i32, %c0_i32_0 : i32, i32
  }
  func.func @transform_6(%arg0: i32) -> (i32, i32) {
    %c0_i32 = arith.constant 0 : i32
    %c0_i32_0 = arith.constant 0 : i32
    %c0_i32_1 = arith.constant 0 : i32
    return %c0_i32, %c0_i32_0 : i32, i32
  }
  func.func @transform_7(%arg0: i32) -> (i32, i32) {
    %c0_i32 = arith.constant 0 : i32
    %c0_i32_0 = arith.constant 0 : i32
    %c0_i32_1 = arith.constant 0 : i32
    return %c0_i32, %c0_i32_0 : i32, i32
  }
  func.func @transform_8(%arg0: i32) -> (i32, i32) {
    %c0_i32 = arith.constant 0 : i32
    %c0_i32_0 = arith.constant 0 : i32
    %c0_i32_1 = arith.constant 0 : i32
    return %c0_i32, %c0_i32_0 : i32, i32
  }
  func.func @transform_9(%arg0: i32) -> (i32, i32) {
    %c0_i32 = arith.constant 0 : i32
    %c0_i32_0 = arith.constant 0 : i32
    %c0_i32_1 = arith.constant 0 : i32
    return %c0_i32, %c0_i32_0 : i32, i32
  }
  func.func @transform_10(%arg0: i32) -> (i32, i32) {
    %c0_i32 = arith.constant 0 : i32
    %c0_i32_0 = arith.constant 0 : i32
    %c0_i32_1 = arith.constant 0 : i32
    return %c0_i32, %c0_i32_0 : i32, i32
  }
  func.func @transform_11(%arg0: i32) -> (i32, i32) {
    %c0_i32 = arith.constant 0 : i32
    %c0_i32_0 = arith.constant 0 : i32
    %c0_i32_1 = arith.constant 0 : i32
    return %c0_i32, %c0_i32_0 : i32, i32
  }
  func.func @transform_12(%arg0: i32) -> (i32, i32) {
    %c0_i32 = arith.constant 0 : i32
    %c0_i32_0 = arith.constant 0 : i32
    %c0_i32_1 = arith.constant 0 : i32
    return %c0_i32, %c0_i32_0 : i32, i32
  }
  func.func @transform_13(%arg0: i32) -> (i32, i32) {
    %c0_i32 = arith.constant 0 : i32
    %c0_i32_0 = arith.constant 0 : i32
    %c0_i32_1 = arith.constant 0 : i32
    return %c0_i32, %c0_i32_0 : i32, i32
  }
  func.func @transform_14(%arg0: i32) -> (i32, i32) {
    %c0_i32 = arith.constant 0 : i32
    %c0_i32_0 = arith.constant 0 : i32
    %c0_i32_1 = arith.constant 0 : i32
    return %c0_i32, %c0_i32_0 : i32, i32
  }
  func.func @transform_15(%arg0: i32) -> (i32, i32) {
    %c0_i32 = arith.constant 0 : i32
    %c0_i32_0 = arith.constant 0 : i32
    %c0_i32_1 = arith.constant 0 : i32
    return %c0_i32, %c0_i32_0 : i32, i32
  }
  func.func @transform_16(%arg0: i32) -> (i32, i32) {
    %c0_i32 = arith.constant 0 : i32
    %c0_i32_0 = arith.constant 0 : i32
    %c0_i32_1 = arith.constant 0 : i32
    return %c0_i32, %c0_i32_0 : i32, i32
  }
  func.func @transform_17(%arg0: i32) -> (i32, i32, i32) {
    %c0_i32 = arith.constant 0 : i32
    %c0_i32_0 = arith.constant 0 : i32
    %c0_i32_1 = arith.constant 0 : i32
    return %arg0, %c0_i32, %c0_i32_0 : i32, i32, i32
  }
}

</mosaic_0001>

<llo_original>
// kernel: tpu_custom_call.1
$region0: #{tpu_custom_call.1}
  #allocation0 [shape = 'u32[]', space=smem, size = 0x4, offset = 0x4, fixed_abs, tag = 'smem constant byte address 0x4 - core index']
  #allocation1 [shape = 'u32[72,128]{1,0:T(1,128)}', space=vmem, size = 0x9000, scoped, tag = 'internal scratch']
  %s0 = inlined_call_operand.hbm [shape: f32[2,32,128], index: 0, kind: input, shape index: {}]
  %s1 = inlined_call_operand.hbm [shape: f32[1,128], index: 1, kind: input, shape index: {}]
  %s2 = inlined_call_operand.vmem [shape: f32[1,128], index: 2, kind: input, shape index: {}]
  %s3 = inlined_call_operand.hbm [shape: bf16[128,128], index: 3, kind: input, shape index: {}]
  %s4 = inlined_call_operand.hbm [shape: f32[1,128], index: 4, kind: input, shape index: {}]
  %s5 = inlined_call_operand.hbm [shape: bf16[128,128], index: 5, kind: input, shape index: {}]
  %s6 = inlined_call_operand.vmem [shape: f32[1,128], index: 6, kind: input, shape index: {}]
  %s7 = inlined_call_operand.hbm [shape: bf16[128,128], index: 7, kind: input, shape index: {}]
  %s8 = inlined_call_operand.vmem [shape: f32[1,128], index: 8, kind: input, shape index: {}]
  %s9 = inlined_call_operand.hbm [shape: bf16[128,128], index: 9, kind: input, shape index: {}]
  %s10 = inlined_call_operand.vmem [shape: f32[1,128], index: 10, kind: input, shape index: {}]
  %s11 = inlined_call_operand.vmem [shape: f32[1,128], index: 11, kind: input, shape index: {}]
  %s12 = inlined_call_operand.vmem [shape: f32[1,128], index: 12, kind: input, shape index: {}]
  %s13 = inlined_call_operand.hbm [shape: bf16[128,256], index: 13, kind: input, shape index: {}]
  %s14 = inlined_call_operand.vmem [shape: f32[1,256], index: 14, kind: input, shape index: {}]
  %s15 = inlined_call_operand.hbm [shape: bf16[256,128], index: 15, kind: input, shape index: {}]
  %s16 = inlined_call_operand.vmem [shape: f32[1,128], index: 16, kind: input, shape index: {}]
  %s17 = inlined_call_operand.hbm [shape: f32[2,32,128], index: 17, kind: output, shape index: {}]
  %s18 = sld [smem:[#allocation0]]
  $region137: #{tpu_custom_call.1} parent=0
    _
  %s20 = ssub.s32 1, %s18
  %s21 = scalar_select 0, %s20, %s18
  $region1: #{tpu_custom_call.1} parent=0
    #allocation2 [shape = 'u8[32768]{0}', space=vmem, size = 0x8000, scoped, tag = 'input window, operand 0']
    #allocation3 [shape = 's32[2]{0}', space=sflag, size = 0x8, scoped, tag = 'scoped memory for tpu_custom_call.1']
    #allocation4 [shape = 's32[2]{0}', space=sflag, size = 0x8, scoped, tag = 'scoped memory for tpu_custom_call.1']
    #allocation5 [shape = 'u8[512]{0}', space=vmem, size = 0x400, scoped, tag = 'input window, operand 1, single buffered']
    #allocation6 [shape = 's32[1]{0}', space=sflag, size = 0x4, scoped, tag = 'scoped memory for tpu_custom_call.1']
    #allocation7 [shape = 'u8[32768]{0}', space=vmem, size = 0x8000, scoped, tag = 'input window, operand 3, single buffered']
    #allocation8 [shape = 'u8[512]{0}', space=vmem, size = 0x400, scoped, tag = 'input window, operand 4, single buffered']
    #allocation9 [shape = 's32[1]{0}', space=sflag, size = 0x4, scoped, tag = 'scoped memory for tpu_custom_call.1']
    #allocation10 [shape = 'u8[32768]{0}', space=vmem, size = 0x8000, scoped, tag = 'input window, operand 5, single buffered']
    #allocation11 [shape = 'u8[32768]{0}', space=vmem, size = 0x8000, scoped, tag = 'input window, operand 7, single buffered']
    #allocation12 [shape = 's32[1]{0}', space=sflag, size = 0x4, scoped, tag = 'scoped memory for tpu_custom_call.1']
    #allocation13 [shape = 'u8[32768]{0}', space=vmem, size = 0x8000, scoped, tag = 'input window, operand 9, single buffered']
    #allocation14 [shape = 'u8[65536]{0}', space=vmem, size = 0x10000, scoped, tag = 'input window, operand 13, single buffered']
    #allocation15 [shape = 's32[1]{0}', space=sflag, size = 0x4, scoped, tag = 'scoped memory for tpu_custom_call.1']
    #allocation16 [shape = 'u8[65536]{0}', space=vmem, size = 0x10000, scoped, tag = 'input window, operand 15, single buffered']
    #allocation17 [shape = 'u8[32768]{0}', space=vmem, size = 0x8000, scoped, tag = 'output window, operand 0']
    %22 = vsyncpa [#allocation3], 0
    %s23 = scalar_lea.sflag [#allocation3], 1
    %24 = vsyncpa %s23, 0
    %25 = vsyncpa [#allocation6], 0
    %26 = vsyncpa [#allocation9], 0
    %27 = vsyncpa [#allocation12], 0
    %28 = vsyncpa [#allocation15], 0
    %29 = vsyncpa [#allocation4], 0
    %s30 = scalar_lea.sflag [#allocation4], 1
    %31 = vsyncpa %s30, 0
    loop: start=0, step=1, limit=4
    $region2: #{tpu_custom_call.1} parent=1 // loop_pre_header
      _
    $region3: #{tpu_custom_call.1} parent=1 // loop_header
      %s33 = sphi 0, %s37
      %p34 = scmp.ge.s32.totalorder %s33, 4
      %s43 = sphi 0, %s45
      %s46 = sphi 0, %s43
      %s47 = sphi 0, %s46
      %s63 = sphi 0, %s47
      %s67 = sphi 0, %s67
      %s69 = sphi 0, %s67
      %s70 = sphi 0, %s69
      %s84 = sphi 0, %s70
      %s88 = sphi 0, %s88
      %s90 = sphi 0, %s88
      %s91 = sphi 0, %s90
      %s105 = sphi 0, %s91
      %s109 = sphi 0, %s109
      %s111 = sphi 0, %s109
      %s112 = sphi 0, %s111
      %s126 = sphi 0, %s112
      %s130 = sphi 0, %s130
      %s132 = sphi 0, %s130
      %s133 = sphi 0, %s132
      %s147 = sphi 0, %s133
      %s151 = sphi 0, %s151
      %s153 = sphi 0, %s151
      %s154 = sphi 0, %s153
      %s168 = sphi 0, %s154
      %s172 = sphi 0, %s172
      %s174 = sphi 0, %s172
      %s175 = sphi 0, %s174
      %s189 = sphi 0, %s175
      %s193 = sphi 0, %s193
      %s195 = sphi 0, %s193
      %s196 = sphi 0, %s195
      %s210 = sphi 0, %s196
      %s214 = sphi 0, %s214
      %s216 = sphi 0, %s214
      %s217 = sphi 0, %s216
      %s231 = sphi 0, %s217
      %s235 = sphi 0, %s235
      %s237 = sphi 0, %s235
      %s238 = sphi 0, %s237
      %s252 = sphi 0, %s238
      %s256 = sphi 0, %s256
      %s258 = sphi 0, %s256
      %s259 = sphi 0, %s258
      %s273 = sphi 0, %s259
      %s277 = sphi 0, %s277
      %s279 = sphi 0, %s277
      %s280 = sphi 0, %s279
      %s294 = sphi 0, %s280
      %s298 = sphi 0, %s298
      %s300 = sphi 0, %s298
      %s301 = sphi 0, %s300
      %s315 = sphi 0, %s301
      %s319 = sphi 0, %s319
      %s321 = sphi 0, %s319
      %s322 = sphi 0, %s321
      %s336 = sphi 0, %s322
      %s340 = sphi 0, %s340
      %s342 = sphi 0, %s340
      %s343 = sphi 0, %s342
      %s357 = sphi 0, %s343
      %s361 = sphi 0, %s361
      %s363 = sphi 0, %s361
      %s364 = sphi 0, %s363
      %s378 = sphi 0, %s364
      %s382 = sphi 0, %s382
      %s384 = sphi 0, %s382
      %s385 = sphi 0, %s384
      %s399 = sphi 0, %s385
      %s405 = sphi 0, %s407
      %s408 = sphi 0, %s405
      %s409 = sphi 0, %s408
      %s425 = sphi 0, %s409
    $region4: #{tpu_custom_call.1} parent=1 // loop_header_branch
      %36 = sbr.rel (%p34) target = $region8
    $region5: #{tpu_custom_call.1} parent=1 // loop_body
      %s38 = ssub.s32 %s33, 1
      %s39 = ssub.s32 %s33, 2
      %s40 = sadd.s32 %s33, 1
      %s41 = ssub.s32 %s33, %s40
      %p42 = scmp.eq.s32.totalorder %s41, 0
      %s44 = sadd.s32 %s43, 1
      %s45 = scalar_select %p42, %s43, %s44
      %p48 = pneg %p42
      %p49 = scmp.eq.s32.totalorder %s33, 1
      %p50 = por %p48, %p49
      %p51 = scmp.ne.s32.totalorder %s43, %s46
      %p52 = scmp.eq.s32.totalorder %s33, 0
      %p53 = por %p51, %p52
      %p54 = scmp.ne.s32.totalorder %s43, %s46
      %p55 = scmp.eq.s32.totalorder %s38, 1
      %p56 = por %p54, %p55
      %p57 = scmp.ne.s32.totalorder %s46, %s47
      %p58 = scmp.eq.s32.totalorder %s38, 0
      %p59 = por %p57, %p58
      %p60 = scmp.ne.s32.totalorder %s46, %s47
      %p61 = scmp.eq.s32.totalorder %s39, 1
      %p62 = por %p60, %p61
      %p64 = scmp.ne.s32.totalorder %s47, %s63
      %p65 = scmp.eq.s32.totalorder %s39, 0
      %p66 = por %p64, %p65
      %s68 = sadd.s32 %s67, 1
      %p71 = scmp.eq.s32.totalorder %s33, 1
      %p72 = scmp.ne.s32.totalorder %s67, %s69
      %p73 = scmp.eq.s32.totalorder %s33, 0
      %p74 = por %p72, %p73
      %p75 = scmp.ne.s32.totalorder %s67, %s69
      %p76 = scmp.eq.s32.totalorder %s38, 1
      %p77 = por %p75, %p76
      %p78 = scmp.ne.s32.totalorder %s69, %s70
      %p79 = scmp.eq.s32.totalorder %s38, 0
      %p80 = por %p78, %p79
      %p81 = scmp.ne.s32.totalorder %s69, %s70
      %p82 = scmp.eq.s32.totalorder %s39, 1
      %p83 = por %p81, %p82
      %p85 = scmp.ne.s32.totalorder %s70, %s84
      %p86 = scmp.eq.s32.totalorder %s39, 0
      %p87 = por %p85, %p86
      %s89 = sadd.s32 %s88, 1
      %p92 = scmp.eq.s32.totalorder %s33, 1
      %p93 = scmp.ne.s32.totalorder %s88, %s90
      %p94 = scmp.eq.s32.totalorder %s33, 0
      %p95 = por %p93, %p94
      %p96 = scmp.ne.s32.totalorder %s88, %s90
      %p97 = scmp.eq.s32.totalorder %s38, 1
      %p98 = por %p96, %p97
      %p99 = scmp.ne.s32.totalorder %s90, %s91
      %p100 = scmp.eq.s32.totalorder %s38, 0
      %p101 = por %p99, %p100
      %p102 = scmp.ne.s32.totalorder %s90, %s91
      %p103 = scmp.eq.s32.totalorder %s39, 1
      %p104 = por %p102, %p103
      %p106 = scmp.ne.s32.totalorder %s91, %s105
      %p107 = scmp.eq.s32.totalorder %s39, 0
      %p108 = por %p106, %p107
      %s110 = sadd.s32 %s109, 1
      %p113 = scmp.eq.s32.totalorder %s33, 1
      %p114 = scmp.ne.s32.totalorder %s109, %s111
      %p115 = scmp.eq.s32.totalorder %s33, 0
      %p116 = por %p114, %p115
      %p117 = scmp.ne.s32.totalorder %s109, %s111
      %p118 = scmp.eq.s32.totalorder %s38, 1
      %p119 = por %p117, %p118
      %p120 = scmp.ne.s32.totalorder %s111, %s112
      %p121 = scmp.eq.s32.totalorder %s38, 0
      %p122 = por %p120, %p121
      %p123 = scmp.ne.s32.totalorder %s111, %s112
      %p124 = scmp.eq.s32.totalorder %s39, 1
      %p125 = por %p123, %p124
      %p127 = scmp.ne.s32.totalorder %s112, %s126
      %p128 = scmp.eq.s32.totalorder %s39, 0
      %p129 = por %p127, %p128
      %s131 = sadd.s32 %s130, 1
      %p134 = scmp.eq.s32.totalorder %s33, 1
      %p135 = scmp.ne.s32.totalorder %s130, %s132
      %p136 = scmp.eq.s32.totalorder %s33, 0
      %p137 = por %p135, %p136
      %p138 = scmp.ne.s32.totalorder %s130, %s132
      %p139 = scmp.eq.s32.totalorder %s38, 1
      %p140 = por %p138, %p139
      %p141 = scmp.ne.s32.totalorder %s132, %s133
      %p142 = scmp.eq.s32.totalorder %s38, 0
      %p143 = por %p141, %p142
      %p144 = scmp.ne.s32.totalorder %s132, %s133
      %p145 = scmp.eq.s32.totalorder %s39, 1
      %p146 = por %p144, %p145
      %p148 = scmp.ne.s32.totalorder %s133, %s147
      %p149 = scmp.eq.s32.totalorder %s39, 0
      %p150 = por %p148, %p149
      %s152 = sadd.s32 %s151, 1
      %p155 = scmp.eq.s32.totalorder %s33, 1
      %p156 = scmp.ne.s32.totalorder %s151, %s153
      %p157 = scmp.eq.s32.totalorder %s33, 0
      %p158 = por %p156, %p157
      %p159 = scmp.ne.s32.totalorder %s151, %s153
      %p160 = scmp.eq.s32.totalorder %s38, 1
      %p161 = por %p159, %p160
      %p162 = scmp.ne.s32.totalorder %s153, %s154
      %p163 = scmp.eq.s32.totalorder %s38, 0
      %p164 = por %p162, %p163
      %p165 = scmp.ne.s32.totalorder %s153, %s154
      %p166 = scmp.eq.s32.totalorder %s39, 1
      %p167 = por %p165, %p166
      %p169 = scmp.ne.s32.totalorder %s154, %s168
      %p170 = scmp.eq.s32.totalorder %s39, 0
      %p171 = por %p169, %p170
      %s173 = sadd.s32 %s172, 1
      %p176 = scmp.eq.s32.totalorder %s33, 1
      %p177 = scmp.ne.s32.totalorder %s172, %s174
      %p178 = scmp.eq.s32.totalorder %s33, 0
      %p179 = por %p177, %p178
      %p180 = scmp.ne.s32.totalorder %s172, %s174
      %p181 = scmp.eq.s32.totalorder %s38, 1
      %p182 = por %p180, %p181
      %p183 = scmp.ne.s32.totalorder %s174, %s175
      %p184 = scmp.eq.s32.totalorder %s38, 0
      %p185 = por %p183, %p184
      %p186 = scmp.ne.s32.totalorder %s174, %s175
      %p187 = scmp.eq.s32.totalorder %s39, 1
      %p188 = por %p186, %p187
      %p190 = scmp.ne.s32.totalorder %s175, %s189
      %p191 = scmp.eq.s32.totalorder %s39, 0
      %p192 = por %p190, %p191
      %s194 = sadd.s32 %s193, 1
      %p197 = scmp.eq.s32.totalorder %s33, 1
      %p198 = scmp.ne.s32.totalorder %s193, %s195
      %p199 = scmp.eq.s32.totalorder %s33, 0
      %p200 = por %p198, %p199
      %p201 = scmp.ne.s32.totalorder %s193, %s195
      %p202 = scmp.eq.s32.totalorder %s38, 1
      %p203 = por %p201, %p202
      %p204 = scmp.ne.s32.totalorder %s195, %s196
      %p205 = scmp.eq.s32.totalorder %s38, 0
      %p206 = por %p204, %p205
      %p207 = scmp.ne.s32.totalorder %s195, %s196
      %p208 = scmp.eq.s32.totalorder %s39, 1
      %p209 = por %p207, %p208
      %p211 = scmp.ne.s32.totalorder %s196, %s210
      %p212 = scmp.eq.s32.totalorder %s39, 0
      %p213 = por %p211, %p212
      %s215 = sadd.s32 %s214, 1
      %p218 = scmp.eq.s32.totalorder %s33, 1
      %p219 = scmp.ne.s32.totalorder %s214, %s216
      %p220 = scmp.eq.s32.totalorder %s33, 0
      %p221 = por %p219, %p220
      %p222 = scmp.ne.s32.totalorder %s214, %s216
      %p223 = scmp.eq.s32.totalorder %s38, 1
      %p224 = por %p222, %p223
      %p225 = scmp.ne.s32.totalorder %s216, %s217
      %p226 = scmp.eq.s32.totalorder %s38, 0
      %p227 = por %p225, %p226
      %p228 = scmp.ne.s32.totalorder %s216, %s217
      %p229 = scmp.eq.s32.totalorder %s39, 1
      %p230 = por %p228, %p229
      %p232 = scmp.ne.s32.totalorder %s217, %s231
      %p233 = scmp.eq.s32.totalorder %s39, 0
      %p234 = por %p232, %p233
      %s236 = sadd.s32 %s235, 1
      %p239 = scmp.eq.s32.totalorder %s33, 1
      %p240 = scmp.ne.s32.totalorder %s235, %s237
      %p241 = scmp.eq.s32.totalorder %s33, 0
      %p242 = por %p240, %p241
      %p243 = scmp.ne.s32.totalorder %s235, %s237
      %p244 = scmp.eq.s32.totalorder %s38, 1
      %p245 = por %p243, %p244
      %p246 = scmp.ne.s32.totalorder %s237, %s238
      %p247 = scmp.eq.s32.totalorder %s38, 0
      %p248 = por %p246, %p247
      %p249 = scmp.ne.s32.totalorder %s237, %s238
      %p250 = scmp.eq.s32.totalorder %s39, 1
      %p251 = por %p249, %p250
      %p253 = scmp.ne.s32.totalorder %s238, %s252
      %p254 = scmp.eq.s32.totalorder %s39, 0
      %p255 = por %p253, %p254
      %s257 = sadd.s32 %s256, 1
      %p260 = scmp.eq.s32.totalorder %s33, 1
      %p261 = scmp.ne.s32.totalorder %s256, %s258
      %p262 = scmp.eq.s32.totalorder %s33, 0
      %p263 = por %p261, %p262
      %p264 = scmp.ne.s32.totalorder %s256, %s258
      %p265 = scmp.eq.s32.totalorder %s38, 1
      %p266 = por %p264, %p265
      %p267 = scmp.ne.s32.totalorder %s258, %s259
      %p268 = scmp.eq.s32.totalorder %s38, 0
      %p269 = por %p267, %p268
      %p270 = scmp.ne.s32.totalorder %s258, %s259
      %p271 = scmp.eq.s32.totalorder %s39, 1
      %p272 = por %p270, %p271
      %p274 = scmp.ne.s32.totalorder %s259, %s273
      %p275 = scmp.eq.s32.totalorder %s39, 0
      %p276 = por %p274, %p275
      %s278 = sadd.s32 %s277, 1
      %p281 = scmp.eq.s32.totalorder %s33, 1
      %p282 = scmp.ne.s32.totalorder %s277, %s279
      %p283 = scmp.eq.s32.totalorder %s33, 0
      %p284 = por %p282, %p283
      %p285 = scmp.ne.s32.totalorder %s277, %s279
      %p286 = scmp.eq.s32.totalorder %s38, 1
      %p287 = por %p285, %p286
      %p288 = scmp.ne.s32.totalorder %s279, %s280
      %p289 = scmp.eq.s32.totalorder %s38, 0
      %p290 = por %p288, %p289
      %p291 = scmp.ne.s32.totalorder %s279, %s280
      %p292 = scmp.eq.s32.totalorder %s39, 1
      %p293 = por %p291, %p292
      %p295 = scmp.ne.s32.totalorder %s280, %s294
      %p296 = scmp.eq.s32.totalorder %s39, 0
      %p297 = por %p295, %p296
      %s299 = sadd.s32 %s298, 1
      %p302 = scmp.eq.s32.totalorder %s33, 1
      %p303 = scmp.ne.s32.totalorder %s298, %s300
      %p304 = scmp.eq.s32.totalorder %s33, 0
      %p305 = por %p303, %p304
      %p306 = scmp.ne.s32.totalorder %s298, %s300
      %p307 = scmp.eq.s32.totalorder %s38, 1
      %p308 = por %p306, %p307
      %p309 = scmp.ne.s32.totalorder %s300, %s301
      %p310 = scmp.eq.s32.totalorder %s38, 0
      %p311 = por %p309, %p310
      %p312 = scmp.ne.s32.totalorder %s300, %s301
      %p313 = scmp.eq.s32.totalorder %s39, 1
      %p314 = por %p312, %p313
      %p316 = scmp.ne.s32.totalorder %s301, %s315
      %p317 = scmp.eq.s32.totalorder %s39, 0
      %p318 = por %p316, %p317
      %s320 = sadd.s32 %s319, 1
      %p323 = scmp.eq.s32.totalorder %s33, 1
      %p324 = scmp.ne.s32.totalorder %s319, %s321
      %p325 = scmp.eq.s32.totalorder %s33, 0
      %p326 = por %p324, %p325
      %p327 = scmp.ne.s32.totalorder %s319, %s321
      %p328 = scmp.eq.s32.totalorder %s38, 1
      %p329 = por %p327, %p328
      %p330 = scmp.ne.s32.totalorder %s321, %s322
      %p331 = scmp.eq.s32.totalorder %s38, 0
      %p332 = por %p330, %p331
      %p333 = scmp.ne.s32.totalorder %s321, %s322
      %p334 = scmp.eq.s32.totalorder %s39, 1
      %p335 = por %p333, %p334
      %p337 = scmp.ne.s32.totalorder %s322, %s336
      %p338 = scmp.eq.s32.totalorder %s39, 0
      %p339 = por %p337, %p338
      %s341 = sadd.s32 %s340, 1
      %p344 = scmp.eq.s32.totalorder %s33, 1
      %p345 = scmp.ne.s32.totalorder %s340, %s342
      %p346 = scmp.eq.s32.totalorder %s33, 0
      %p347 = por %p345, %p346
      %p348 = scmp.ne.s32.totalorder %s340, %s342
      %p349 = scmp.eq.s32.totalorder %s38, 1
      %p350 = por %p348, %p349
      %p351 = scmp.ne.s32.totalorder %s342, %s343
      %p352 = scmp.eq.s32.totalorder %s38, 0
      %p353 = por %p351, %p352
      %p354 = scmp.ne.s32.totalorder %s342, %s343
      %p355 = scmp.eq.s32.totalorder %s39, 1
      %p356 = por %p354, %p355
      %p358 = scmp.ne.s32.totalorder %s343, %s357
      %p359 = scmp.eq.s32.totalorder %s39, 0
      %p360 = por %p358, %p359
      %s362 = sadd.s32 %s361, 1
      %p365 = scmp.eq.s32.totalorder %s33, 1
      %p366 = scmp.ne.s32.totalorder %s361, %s363
      %p367 = scmp.eq.s32.totalorder %s33, 0
      %p368 = por %p366, %p367
      %p369 = scmp.ne.s32.totalorder %s361, %s363
      %p370 = scmp.eq.s32.totalorder %s38, 1
      %p371 = por %p369, %p370
      %p372 = scmp.ne.s32.totalorder %s363, %s364
      %p373 = scmp.eq.s32.totalorder %s38, 0
      %p374 = por %p372, %p373
      %p375 = scmp.ne.s32.totalorder %s363, %s364
      %p376 = scmp.eq.s32.totalorder %s39, 1
      %p377 = por %p375, %p376
      %p379 = scmp.ne.s32.totalorder %s364, %s378
      %p380 = scmp.eq.s32.totalorder %s39, 0
      %p381 = por %p379, %p380
      %s383 = sadd.s32 %s382, 1
      %p386 = scmp.eq.s32.totalorder %s33, 1
      %p387 = scmp.ne.s32.totalorder %s382, %s384
      %p388 = scmp.eq.s32.totalorder %s33, 0
      %p389 = por %p387, %p388
      %p390 = scmp.ne.s32.totalorder %s382, %s384
      %p391 = scmp.eq.s32.totalorder %s38, 1
      %p392 = por %p390, %p391
      %p393 = scmp.ne.s32.totalorder %s384, %s385
      %p394 = scmp.eq.s32.totalorder %s38, 0
      %p395 = por %p393, %p394
      %p396 = scmp.ne.s32.totalorder %s384, %s385
      %p397 = scmp.eq.s32.totalorder %s39, 1
      %p398 = por %p396, %p397
      %p400 = scmp.ne.s32.totalorder %s385, %s399
      %p401 = scmp.eq.s32.totalorder %s39, 0
      %p402 = por %p400, %p401
      %s403 = ssub.s32 %s33, %s40
      %p404 = scmp.eq.s32.totalorder %s403, 0
      %s406 = sadd.s32 %s405, 1
      %s407 = scalar_select %p404, %s405, %s406
      %p410 = pneg %p404
      %p411 = scmp.eq.s32.totalorder %s33, 1
      %p412 = por %p410, %p411
      %p413 = scmp.ne.s32.totalorder %s405, %s408
      %p414 = scmp.eq.s32.totalorder %s33, 0
      %p415 = por %p413, %p414
      %p416 = scmp.ne.s32.totalorder %s405, %s408
      %p417 = scmp.eq.s32.totalorder %s38, 1
      %p418 = por %p416, %p417
      %p419 = scmp.ne.s32.totalorder %s408, %s409
      %p420 = scmp.eq.s32.totalorder %s38, 0
      %p421 = por %p419, %p420
      %p422 = scmp.ne.s32.totalorder %s408, %s409
      %p423 = scmp.eq.s32.totalorder %s39, 1
      %p424 = por %p422, %p423
      %p426 = scmp.ne.s32.totalorder %s409, %s425
      %p427 = scmp.eq.s32.totalorder %s39, 0
      %p428 = por %p426, %p427
      %p429 = scmp.le.s32.totalorder 1, %s33
      %p430 = scmp.lt.s32.totalorder %s33, 3
      %p431 = pnand %p429, %p430
      %p432 = pneg %p431
      // Predicated region
      $region9: #{tpu_custom_call.1} parent=5 // pred_check
        _
      $region10: #{tpu_custom_call.1} parent=5 // pred_check_branch
        %434 = sbr.rel (%p431) target = $region12
      $region11: #{tpu_custom_call.1} parent=5 // pred_region
        %s435 = ssub.s32 %s33, 1
        // Predicated region
        $region13: #{tpu_custom_call.1} parent=11 // pred_check
          %p436 = pneg %p80
        $region14: #{tpu_custom_call.1} parent=11 // pred_check_branch
          %438 = sbr.rel (%p436) target = $region16
        $region15: #{tpu_custom_call.1} parent=11 // pred_region
          %440 = vsyncadd [#allocation6], 0
          %s442 = sshll.u32 %s1, 4
          %s443 = int_to_ptr.hbm [resolvable:$true] %s442
          %s444 = sshll.u32 [#allocation5], 4
          %s445 = int_to_ptr.vmem [resolvable:$true] %s444
          %447 = dma.hbm_to_vmem [thread:$0]  %s443, 16, %s445, [#allocation6]
        $region16: #{tpu_custom_call.1} parent=11 // pred_fallthru
          _
        // Predicated region
        $region17: #{tpu_custom_call.1} parent=11 // pred_check
          %p448 = pneg %p101
        $region18: #{tpu_custom_call.1} parent=11 // pred_check_branch
          %450 = sbr.rel (%p448) target = $region20
        $region19: #{tpu_custom_call.1} parent=11 // pred_region
          _
        $region20: #{tpu_custom_call.1} parent=11 // pred_fallthru
          _
        // Predicated region
        $region21: #{tpu_custom_call.1} parent=11 // pred_check
          %p451 = pneg %p122
        $region22: #{tpu_custom_call.1} parent=11 // pred_check_branch
          %453 = sbr.rel (%p451) target = $region24
        $region23: #{tpu_custom_call.1} parent=11 // pred_region
          %455 = vsyncadd [#allocation6], 0
          %s456 = sshll.u32 %s3, 4
          %s457 = int_to_ptr.hbm [resolvable:$true] %s456
          %s458 = sshll.u32 [#allocation7], 4
          %s459 = int_to_ptr.vmem [resolvable:$true] %s458
          %464 = dma.hbm_to_vmem [thread:$0]  %s457, 1024, %s459, [#allocation6], 64, 64, 4
        $region24: #{tpu_custom_call.1} parent=11 // pred_fallthru
          _
        // Predicated region
        $region25: #{tpu_custom_call.1} parent=11 // pred_check
          %p465 = pneg %p143
        $region26: #{tpu_custom_call.1} parent=11 // pred_check_branch
          %467 = sbr.rel (%p465) target = $region28
        $region27: #{tpu_custom_call.1} parent=11 // pred_region
          %469 = vsyncadd [#allocation9], 0
          %s471 = sshll.u32 %s4, 4
          %s472 = int_to_ptr.hbm [resolvable:$true] %s471
          %s473 = sshll.u32 [#allocation8], 4
          %s474 = int_to_ptr.vmem [resolvable:$true] %s473
          %476 = dma.hbm_to_vmem [thread:$0]  %s472, 16, %s474, [#allocation9]
        $region28: #{tpu_custom_call.1} parent=11 // pred_fallthru
          _
        // Predicated region
        $region29: #{tpu_custom_call.1} parent=11 // pred_check
          %p477 = pneg %p164
        $region30: #{tpu_custom_call.1} parent=11 // pred_check_branch
          %479 = sbr.rel (%p477) target = $region32
        $region31: #{tpu_custom_call.1} parent=11 // pred_region
          %481 = vsyncadd [#allocation9], 0
          %s482 = sshll.u32 %s5, 4
          %s483 = int_to_ptr.hbm [resolvable:$true] %s482
          %s484 = sshll.u32 [#allocation10], 4
          %s485 = int_to_ptr.vmem [resolvable:$true] %s484
          %490 = dma.hbm_to_vmem [thread:$0]  %s483, 1024, %s485, [#allocation9], 64, 64, 4
        $region32: #{tpu_custom_call.1} parent=11 // pred_fallthru
          _
        // Predicated region
        $region33: #{tpu_custom_call.1} parent=11 // pred_check
          %p491 = pneg %p185
        $region34: #{tpu_custom_call.1} parent=11 // pred_check_branch
          %493 = sbr.rel (%p491) target = $region36
        $region35: #{tpu_custom_call.1} parent=11 // pred_region
          _
        $region36: #{tpu_custom_call.1} parent=11 // pred_fallthru
          _
        // Predicated region
        $region37: #{tpu_custom_call.1} parent=11 // pred_check
          %p494 = pneg %p206
        $region38: #{tpu_custom_call.1} parent=11 // pred_check_branch
          %496 = sbr.rel (%p494) target = $region40
        $region39: #{tpu_custom_call.1} parent=11 // pred_region
          %498 = vsyncadd [#allocation12], 0
          %s499 = sshll.u32 %s7, 4
          %s500 = int_to_ptr.hbm [resolvable:$true] %s499
          %s501 = sshll.u32 [#allocation11], 4
          %s502 = int_to_ptr.vmem [resolvable:$true] %s501
          %507 = dma.hbm_to_vmem [thread:$0]  %s500, 1024, %s502, [#allocation12], 64, 64, 4
        $region40: #{tpu_custom_call.1} parent=11 // pred_fallthru
          _
        // Predicated region
        $region41: #{tpu_custom_call.1} parent=11 // pred_check
          %p508 = pneg %p227
        $region42: #{tpu_custom_call.1} parent=11 // pred_check_branch
          %510 = sbr.rel (%p508) target = $region44
        $region43: #{tpu_custom_call.1} parent=11 // pred_region
          _
        $region44: #{tpu_custom_call.1} parent=11 // pred_fallthru
          _
        // Predicated region
        $region45: #{tpu_custom_call.1} parent=11 // pred_check
          %p511 = pneg %p248
        $region46: #{tpu_custom_call.1} parent=11 // pred_check_branch
          %513 = sbr.rel (%p511) target = $region48
        $region47: #{tpu_custom_call.1} parent=11 // pred_region
          %515 = vsyncadd [#allocation12], 0
          %s516 = sshll.u32 %s9, 4
          %s517 = int_to_ptr.hbm [resolvable:$true] %s516
          %s518 = sshll.u32 [#allocation13], 4
          %s519 = int_to_ptr.vmem [resolvable:$true] %s518
          %524 = dma.hbm_to_vmem [thread:$0]  %s517, 1024, %s519, [#allocation12], 64, 64, 4
        $region48: #{tpu_custom_call.1} parent=11 // pred_fallthru
          _
        // Predicated region
        $region49: #{tpu_custom_call.1} parent=11 // pred_check
          %p525 = pneg %p269
        $region50: #{tpu_custom_call.1} parent=11 // pred_check_branch
          %527 = sbr.rel (%p525) target = $region52
        $region51: #{tpu_custom_call.1} parent=11 // pred_region
          _
        $region52: #{tpu_custom_call.1} parent=11 // pred_fallthru
          _
        // Predicated region
        $region53: #{tpu_custom_call.1} parent=11 // pred_check
          %p528 = pneg %p290
        $region54: #{tpu_custom_call.1} parent=11 // pred_check_branch
          %530 = sbr.rel (%p528) target = $region56
        $region55: #{tpu_custom_call.1} parent=11 // pred_region
          _
        $region56: #{tpu_custom_call.1} parent=11 // pred_fallthru
          _
        // Predicated region
        $region57: #{tpu_custom_call.1} parent=11 // pred_check
          %p531 = pneg %p311
        $region58: #{tpu_custom_call.1} parent=11 // pred_check_branch
          %533 = sbr.rel (%p531) target = $region60
        $region59: #{tpu_custom_call.1} parent=11 // pred_region
          _
        $region60: #{tpu_custom_call.1} parent=11 // pred_fallthru
          _
        // Predicated region
        $region61: #{tpu_custom_call.1} parent=11 // pred_check
          %p534 = pneg %p332
        $region62: #{tpu_custom_call.1} parent=11 // pred_check_branch
          %536 = sbr.rel (%p534) target = $region64
        $region63: #{tpu_custom_call.1} parent=11 // pred_region
          %538 = vsyncadd [#allocation15], 0
          %s539 = sshll.u32 %s13, 4
          %s540 = int_to_ptr.hbm [resolvable:$true] %s539
          %s541 = sshll.u32 [#allocation14], 4
          %s542 = int_to_ptr.vmem [resolvable:$true] %s541
          %547 = dma.hbm_to_vmem [thread:$0]  %s540, 2048, %s542, [#allocation15], 128, 128, 8
        $region64: #{tpu_custom_call.1} parent=11 // pred_fallthru
          _
        // Predicated region
        $region65: #{tpu_custom_call.1} parent=11 // pred_check
          %p548 = pneg %p353
        $region66: #{tpu_custom_call.1} parent=11 // pred_check_branch
          %550 = sbr.rel (%p548) target = $region68
        $region67: #{tpu_custom_call.1} parent=11 // pred_region
          _
        $region68: #{tpu_custom_call.1} parent=11 // pred_fallthru
          _
        // Predicated region
        $region69: #{tpu_custom_call.1} parent=11 // pred_check
          %p551 = pneg %p374
        $region70: #{tpu_custom_call.1} parent=11 // pred_check_branch
          %553 = sbr.rel (%p551) target = $region72
        $region71: #{tpu_custom_call.1} parent=11 // pred_region
          %555 = vsyncadd [#allocation15], 0
          %s556 = sshll.u32 %s15, 4
          %s557 = int_to_ptr.hbm [resolvable:$true] %s556
          %s558 = sshll.u32 [#allocation16], 4
          %s559 = int_to_ptr.vmem [resolvable:$true] %s558
          %564 = dma.hbm_to_vmem [thread:$0]  %s557, 2048, %s559, [#allocation15], 64, 64, 4
        $region72: #{tpu_custom_call.1} parent=11 // pred_fallthru
          _
        // Predicated region
        $region73: #{tpu_custom_call.1} parent=11 // pred_check
          %p565 = pneg %p395
        $region74: #{tpu_custom_call.1} parent=11 // pred_check_branch
          %567 = sbr.rel (%p565) target = $region76
        $region75: #{tpu_custom_call.1} parent=11 // pred_region
          _
        $region76: #{tpu_custom_call.1} parent=11 // pred_fallthru
          _
      $region12: #{tpu_custom_call.1} parent=5 // pred_fallthru
        _
      %p568 = scmp.lt.s32.totalorder %s33, 2
      // Predicated region
      $region77: #{tpu_custom_call.1} parent=5 // pred_check
        %p569 = pneg %p568
      $region78: #{tpu_custom_call.1} parent=5 // pred_check_branch
        %571 = sbr.rel (%p569) target = $region80
      $region79: #{tpu_custom_call.1} parent=5 // pred_region
        // Predicated region
        $region81: #{tpu_custom_call.1} parent=79 // pred_check
          %p572 = pneg %p53
        $region82: #{tpu_custom_call.1} parent=79 // pred_check_branch
          %574 = sbr.rel (%p572) target = $region84
        $region83: #{tpu_custom_call.1} parent=79 // pred_region
          %s575 = sand.u32 %s43, 1
          %s576 = scalar_lea.sflag [#allocation3], %s575
          %s577 = sand.u32 %s43, 1
          %s578 = smul.addr %s577, 32
          %s579 = scalar_lea.vmem [#allocation2], %s578
          %581 = vsyncadd %s576, 0
          %s582 = smul.addr %s33, 4
          %s583 = smul.addr %s582, 8
          %s584 = scalar_lea.hbm %s0, %s583
          %s585 = sshll.u32 %s584, 4
          %s586 = int_to_ptr.hbm [resolvable:$true] %s585
          %s587 = sshll.u32 %s579, 4
          %s588 = int_to_ptr.vmem [resolvable:$true] %s587
          %593 = dma.hbm_to_vmem [thread:$0]  %s586, 512, %s588, %s576, 128, 128, 8
        $region84: #{tpu_custom_call.1} parent=79 // pred_fallthru
          _
      $region80: #{tpu_custom_call.1} parent=5 // pred_fallthru
        _
      %p594 = scmp.le.s32.totalorder 1, %s33
      %p595 = scmp.lt.s32.totalorder %s33, 3
      %p596 = pnand %p594, %p595
      %p597 = pneg %p596
      // Predicated region
      $region85: #{tpu_custom_call.1} parent=5 // pred_check
        _
      $region86: #{tpu_custom_call.1} parent=5 // pred_check_branch
        %599 = sbr.rel (%p596) target = $region88
      $region87: #{tpu_custom_call.1} parent=5 // pred_region
        %s600 = ssub.s32 %s33, 1
        %s601 = sand.u32 %s46, 1
        %s602 = scalar_lea.sflag [#allocation3], %s601
        %s603 = sand.u32 %s46, 1
        %s604 = smul.addr %s603, 32
        %s605 = scalar_lea.vmem [#allocation2], %s604
        // Predicated region
        $region89: #{tpu_custom_call.1} parent=87 // pred_check
          %p606 = pneg %p59
        $region90: #{tpu_custom_call.1} parent=87 // pred_check_branch
          %608 = sbr.rel (%p606) target = $region92
        $region91: #{tpu_custom_call.1} parent=87 // pred_region
          %610 = dma.done %s602, 512
        $region92: #{tpu_custom_call.1} parent=87 // pred_fallthru
          _
        // Predicated region
        $region93: #{tpu_custom_call.1} parent=87 // pred_check
          %p611 = pneg %p80
        $region94: #{tpu_custom_call.1} parent=87 // pred_check_branch
          %613 = sbr.rel (%p611) target = $region96
        $region95: #{tpu_custom_call.1} parent=87 // pred_region
          %615 = dma.done [#allocation6], 16
        $region96: #{tpu_custom_call.1} parent=87 // pred_fallthru
          _
        // Predicated region
        $region97: #{tpu_custom_call.1} parent=87 // pred_check
          %p616 = pneg %p122
        $region98: #{tpu_custom_call.1} parent=87 // pred_check_branch
          %618 = sbr.rel (%p616) target = $region100
        $region99: #{tpu_custom_call.1} parent=87 // pred_region
          %620 = dma.done [#allocation6], 1024
        $region100: #{tpu_custom_call.1} parent=87 // pred_fallthru
          _
        // Predicated region
        $region101: #{tpu_custom_call.1} parent=87 // pred_check
          %p621 = pneg %p143
        $region102: #{tpu_custom_call.1} parent=87 // pred_check_branch
          %623 = sbr.rel (%p621) target = $region104
        $region103: #{tpu_custom_call.1} parent=87 // pred_region
          %625 = dma.done [#allocation9], 16
        $region104: #{tpu_custom_call.1} parent=87 // pred_fallthru
          _
        // Predicated region
        $region105: #{tpu_custom_call.1} parent=87 // pred_check
          %p626 = pneg %p164
        $region106: #{tpu_custom_call.1} parent=87 // pred_check_branch
          %628 = sbr.rel (%p626) target = $region108
        $region107: #{tpu_custom_call.1} parent=87 // pred_region
          %630 = dma.done [#allocation9], 1024
        $region108: #{tpu_custom_call.1} parent=87 // pred_fallthru
          _
        // Predicated region
        $region109: #{tpu_custom_call.1} parent=87 // pred_check
          %p631 = pneg %p206
        $region110: #{tpu_custom_call.1} parent=87 // pred_check_branch
          %633 = sbr.rel (%p631) target = $region112
        $region111: #{tpu_custom_call.1} parent=87 // pred_region
          %635 = dma.done [#allocation12], 1024
        $region112: #{tpu_custom_call.1} parent=87 // pred_fallthru
          _
        // Predicated region
        $region113: #{tpu_custom_call.1} parent=87 // pred_check
          %p636 = pneg %p248
        $region114: #{tpu_custom_call.1} parent=87 // pred_check_branch
          %638 = sbr.rel (%p636) target = $region116
        $region115: #{tpu_custom_call.1} parent=87 // pred_region
          %640 = dma.done [#allocation12], 1024
        $region116: #{tpu_custom_call.1} parent=87 // pred_fallthru
          _
        // Predicated region
        $region117: #{tpu_custom_call.1} parent=87 // pred_check
          %p641 = pneg %p332
        $region118: #{tpu_custom_call.1} parent=87 // pred_check_branch
          %643 = sbr.rel (%p641) target = $region120
        $region119: #{tpu_custom_call.1} parent=87 // pred_region
          %645 = dma.done [#allocation15], 2048
        $region120: #{tpu_custom_call.1} parent=87 // pred_fallthru
          _
        // Predicated region
        $region121: #{tpu_custom_call.1} parent=87 // pred_check
          %p646 = pneg %p374
        $region122: #{tpu_custom_call.1} parent=87 // pred_check_branch
          %648 = sbr.rel (%p646) target = $region124
        $region123: #{tpu_custom_call.1} parent=87 // pred_region
          %650 = dma.done [#allocation15], 2048
        $region124: #{tpu_custom_call.1} parent=87 // pred_fallthru
          _
        %s651 = sand.u32 %s46, 1
        %s652 = scalar_lea.sflag [#allocation3], %s651
        %s653 = sand.u32 %s46, 1
        %s654 = smul.addr %s653, 32
        %s655 = scalar_lea.vmem [#allocation2], %s654
        %p656 = pneg %p59
        %p657 = pneg %p56
        %p658 = pneg %p80
        %p659 = pneg %p77
        %p660 = pneg %p101
        %p661 = pneg %p98
        %p662 = pneg %p122
        %p663 = pneg %p119
        %p664 = pneg %p143
        %p665 = pneg %p140
        %p666 = pneg %p164
        %p667 = pneg %p161
        %p668 = pneg %p185
        %p669 = pneg %p182
        %p670 = pneg %p206
        %p671 = pneg %p203
        %p672 = pneg %p227
        %p673 = pneg %p224
        %p674 = pneg %p248
        %p675 = pneg %p245
        %p676 = pneg %p269
        %p677 = pneg %p266
        %p678 = pneg %p290
        %p679 = pneg %p287
        %p680 = pneg %p311
        %p681 = pneg %p308
        %p682 = pneg %p332
        %p683 = pneg %p329
        %p684 = pneg %p353
        %p685 = pneg %p350
        %p686 = pneg %p374
        %p687 = pneg %p371
        %p688 = pneg %p395
        %p689 = pneg %p392
        %p690 = pneg %p421
        %p691 = pneg %p418
        %s692 = sand.u32 %s408, 1
        %s693 = scalar_lea.sflag [#allocation4], %s692
        %s694 = sand.u32 %s408, 1
        %s695 = smul.addr %s694, 32
        %s696 = scalar_lea.vmem [#allocation17], %s695
        %v698 = vld [vmem:[%s605] sm:$0xff]
        %v699 = vld [vmem:[%s605 + $0x8] sm:$0xff]
        %v700 = vld [vmem:[%s605 + $0x10] sm:$0xff]
        %v701 = vld [vmem:[%s605 + $0x18] sm:$0xff]
        %702 = vadd.xlane.f32.xlu0 %v698
        %v703 = vpop.xlane.xlu0 %702
        %704 = vadd.xlane.f32.xlu0 %v699
        %v705 = vpop.xlane.xlu0 %704
        %706 = vadd.xlane.f32.xlu0 %v700
        %v707 = vpop.xlane.xlu0 %706
        %708 = vadd.xlane.f32.xlu0 %v701
        %v709 = vpop.xlane.xlu0 %708
        %v710 = vrcp.pop 128.0
        %v711 = vmul.f32 128.0, %v710
        %v712 = vsub.f32 1.0, %v711
        %v713 = vmul.f32 %v710, %v712
        %v714 = vadd.f32 %v710, %v713
        %vm715 = vweird.f32 %v710
        %v716 = vsel %vm715, %v710, %v714
        %v717 = vmul.f32 %v703, %v716
        %v718 = vmul.f32 %v705, %v716
        %v719 = vmul.f32 %v707, %v716
        %v720 = vmul.f32 %v709, %v716
        %v721 = vsub.f32 %v698, %v717
        %v722 = vsub.f32 %v699, %v718
        %v723 = vsub.f32 %v700, %v719
        %v724 = vsub.f32 %v701, %v720
        %v725 = vmul.f32 %v721, %v721
        %v726 = vmul.f32 %v722, %v722
        %v727 = vmul.f32 %v723, %v723
        %v728 = vmul.f32 %v724, %v724
        %729 = vadd.xlane.f32.xlu0 %v725
        %v730 = vpop.xlane.xlu0 %729
        %731 = vadd.xlane.f32.xlu0 %v726
        %v732 = vpop.xlane.xlu0 %731
        %733 = vadd.xlane.f32.xlu0 %v727
        %v734 = vpop.xlane.xlu0 %733
        %735 = vadd.xlane.f32.xlu0 %v728
        %v736 = vpop.xlane.xlu0 %735
        %v737 = vmul.f32 %v730, %v716
        %v738 = vmul.f32 %v732, %v716
        %v739 = vmul.f32 %v734, %v716
        %v740 = vmul.f32 %v736, %v716
        %v741 = vadd.f32 %v737, 1e-12
        %v742 = vadd.f32 %v738, 1e-12
        %v743 = vadd.f32 %v739, 1e-12
        %v744 = vadd.f32 %v740, 1e-12
        %v745 = vrsqrt.pop %v741
        %v746 = vmul.f32 %v745, %v741
        %v747 = vmul.f32 %v746, %v745
        %v748 = vmul.f32 0.5, %v747
        %v749 = vsub.f32 1.5, %v748
        %v750 = vmul.f32 %v745, %v749
        %vm751 = vweird.f32 %v741
        %vm752 = vweird.f32 %v745
        %vm753 = vmor %vm751, %vm752
        %v754 = vsel %vm753, %v745, %v750
        %v755 = vrsqrt.pop %v742
        %v756 = vmul.f32 %v755, %v742
        %v757 = vmul.f32 %v756, %v755
        %v758 = vmul.f32 0.5, %v757
        %v759 = vsub.f32 1.5, %v758
        %v760 = vmul.f32 %v755, %v759
        %vm761 = vweird.f32 %v742
        %vm762 = vweird.f32 %v755
        %vm763 = vmor %vm761, %vm762
        %v764 = vsel %vm763, %v755, %v760
        %v765 = vrsqrt.pop %v743
        %v766 = vmul.f32 %v765, %v743
        %v767 = vmul.f32 %v766, %v765
        %v768 = vmul.f32 0.5, %v767
        %v769 = vsub.f32 1.5, %v768
        %v770 = vmul.f32 %v765, %v769
        %vm771 = vweird.f32 %v743
        %vm772 = vweird.f32 %v765
        %vm773 = vmor %vm771, %vm772
        %v774 = vsel %vm773, %v765, %v770
        %v775 = vrsqrt.pop %v744
        %v776 = vmul.f32 %v775, %v744
        %v777 = vmul.f32 %v776, %v775
        %v778 = vmul.f32 0.5, %v777
        %v779 = vsub.f32 1.5, %v778
        %v780 = vmul.f32 %v775, %v779
        %vm781 = vweird.f32 %v744
        %vm782 = vweird.f32 %v775
        %vm783 = vmor %vm781, %vm782
        %v784 = vsel %vm783, %v775, %v780
        %v785 = vmul.f32 %v721, %v754
        %v786 = vmul.f32 %v722, %v764
        %v787 = vmul.f32 %v723, %v774
        %v788 = vmul.f32 %v724, %v784
        %v789 = vld [vmem:[#allocation5] sm:$0x1]
        %v791 = vperm.slane %v789, 0
        %v793 = vmul.f32 %v785, %v791
        %v794 = vmul.f32 %v786, %v791
        %v795 = vmul.f32 %v787, %v791
        %v796 = vmul.f32 %v788, %v791
        %v797 = vld [vmem:[%s2] sm:$0x1]
        %v799 = vperm.slane %v797, 0
        %v801 = vadd.f32 %v793, %v799
        %v802 = vadd.f32 %v794, %v799
        %v803 = vadd.f32 %v795, %v799
        %v804 = vadd.f32 %v796, %v799
        %v805 = vld [vmem:[#allocation7] sm:$0xf]
        %v806 = vld [vmem:[#allocation7 + $0x4] sm:$0xf]
        %v807 = vld [vmem:[#allocation7 + $0x8] sm:$0xf]
        %v808 = vld [vmem:[#allocation7 + $0xc] sm:$0xf]
        %v809 = vld [vmem:[#allocation7 + $0x10] sm:$0xf]
        %v810 = vld [vmem:[#allocation7 + $0x14] sm:$0xf]
        %v811 = vld [vmem:[#allocation7 + $0x18] sm:$0xf]
        %v812 = vld [vmem:[#allocation7 + $0x1c] sm:$0xf]
        %v813 = vld [vmem:[#allocation7 + $0x20] sm:$0xf]
        %v814 = vld [vmem:[#allocation7 + $0x24] sm:$0xf]
        %v815 = vld [vmem:[#allocation7 + $0x28] sm:$0xf]
        %v816 = vld [vmem:[#allocation7 + $0x2c] sm:$0xf]
        %v817 = vld [vmem:[#allocation7 + $0x30] sm:$0xf]
        %v818 = vld [vmem:[#allocation7 + $0x34] sm:$0xf]
        %v819 = vld [vmem:[#allocation7 + $0x38] sm:$0xf]
        %v820 = vld [vmem:[#allocation7 + $0x3c] sm:$0xf]
        %v821 = vpack.c.bf16 %v802, %v801
        %v822 = vpack.c.bf16 %v804, %v803
        %v823 = vld [vmem:[#allocation8] sm:$0x1]
        %v825 = vperm.slane %v823, 0
        %v843 = vunpack.c.l.b16 %v805
        %v844 = vunpack.c.l.b16 %v806
        %v845 = vunpack.c.l.b16 %v807
        %v846 = vunpack.c.l.b16 %v808
        %v847 = vunpack.c.l.b16 %v809
        %v848 = vunpack.c.l.b16 %v810
        %v849 = vunpack.c.l.b16 %v811
        %v850 = vunpack.c.l.b16 %v812
        %v851 = vunpack.c.l.b16 %v813
        %v852 = vunpack.c.l.b16 %v814
        %v853 = vunpack.c.l.b16 %v815
        %v854 = vunpack.c.l.b16 %v816
        %v855 = vunpack.c.l.b16 %v817
        %v856 = vunpack.c.l.b16 %v818
        %v857 = vunpack.c.l.b16 %v819
        %v858 = vunpack.c.l.b16 %v820
        %v859 = vpack.c.b16 %v844, %v843
        %v860 = vpack.c.b16 %v846, %v845
        %v861 = vpack.c.b16 %v848, %v847
        %v862 = vpack.c.b16 %v850, %v849
        %v863 = vpack.c.b16 %v852, %v851
        %v864 = vpack.c.b16 %v854, %v853
        %v865 = vpack.c.b16 %v856, %v855
        %v866 = vpack.c.b16 %v858, %v857
        %875 = vmatpush.bf16.msra.mxu0 %v866
        %876 = vmatpush.bf16.msra.mxu0 %v865
        %877 = vmatpush.bf16.msra.mxu0 %v864
        %878 = vmatpush.bf16.msra.mxu0 %v863
        %879 = vmatpush.bf16.msra.mxu0 %v862
        %880 = vmatpush.bf16.msra.mxu0 %v861
        %881 = vmatpush.bf16.msra.mxu0 %v860
        %882 = vmatpush.bf16.msra.mxu0 %v859
        %883 = vmatmul.bf16.gmra.mxu0 %v821
        %v884 = vpop.f32.mrf.mxu0
        %v885 = vadd.f32 %v825, %v884
        %v886 = vpop.f32.mrf.mxu0
        %v887 = vadd.f32 %v825, %v886
        %888 = vmatmul.bf16.gmra.mxu0 %v822
        %v889 = vpop.f32.mrf.mxu0
        %v890 = vadd.f32 %v825, %v889
        %v891 = vpop.f32.mrf.mxu0
        %v892 = vadd.f32 %v825, %v891
        %893 = vdwg.mxu0
        %v894 = vld [vmem:[#allocation10] sm:$0xf]
        %v895 = vld [vmem:[#allocation10 + $0x4] sm:$0xf]
        %v896 = vld [vmem:[#allocation10 + $0x8] sm:$0xf]
        %v897 = vld [vmem:[#allocation10 + $0xc] sm:$0xf]
        %v898 = vld [vmem:[#allocation10 + $0x10] sm:$0xf]
        %v899 = vld [vmem:[#allocation10 + $0x14] sm:$0xf]
        %v900 = vld [vmem:[#allocation10 + $0x18] sm:$0xf]
        %v901 = vld [vmem:[#allocation10 + $0x1c] sm:$0xf]
        %v902 = vld [vmem:[#allocation10 + $0x20] sm:$0xf]
        %v903 = vld [vmem:[#allocation10 + $0x24] sm:$0xf]
        %v904 = vld [vmem:[#allocation10 + $0x28] sm:$0xf]
        %v905 = vld [vmem:[#allocation10 + $0x2c] sm:$0xf]
        %v906 = vld [vmem:[#allocation10 + $0x30] sm:$0xf]
        %v907 = vld [vmem:[#allocation10 + $0x34] sm:$0xf]
        %v908 = vld [vmem:[#allocation10 + $0x38] sm:$0xf]
        %v909 = vld [vmem:[#allocation10 + $0x3c] sm:$0xf]
        %v910 = vld [vmem:[%s6] sm:$0x1]
        %v912 = vperm.slane %v910, 0
        %v930 = vunpack.c.l.b16 %v894
        %v931 = vunpack.c.l.b16 %v895
        %v932 = vunpack.c.l.b16 %v896
        %v933 = vunpack.c.l.b16 %v897
        %v934 = vunpack.c.l.b16 %v898
        %v935 = vunpack.c.l.b16 %v899
        %v936 = vunpack.c.l.b16 %v900
        %v937 = vunpack.c.l.b16 %v901
        %v938 = vunpack.c.l.b16 %v902
        %v939 = vunpack.c.l.b16 %v903
        %v940 = vunpack.c.l.b16 %v904
        %v941 = vunpack.c.l.b16 %v905
        %v942 = vunpack.c.l.b16 %v906
        %v943 = vunpack.c.l.b16 %v907
        %v944 = vunpack.c.l.b16 %v908
        %v945 = vunpack.c.l.b16 %v909
        %v946 = vpack.c.b16 %v931, %v930
        %v947 = vpack.c.b16 %v933, %v932
        %v948 = vpack.c.b16 %v935, %v934
        %v949 = vpack.c.b16 %v937, %v936
        %v950 = vpack.c.b16 %v939, %v938
        %v951 = vpack.c.b16 %v941, %v940
        %v952 = vpack.c.b16 %v943, %v942
        %v953 = vpack.c.b16 %v945, %v944
        %962 = vmatpush.bf16.msra.mxu0 %v953
        %963 = vmatpush.bf16.msra.mxu0 %v952
        %964 = vmatpush.bf16.msra.mxu0 %v951
        %965 = vmatpush.bf16.msra.mxu0 %v950
        %966 = vmatpush.bf16.msra.mxu0 %v949
        %967 = vmatpush.bf16.msra.mxu0 %v948
        %968 = vmatpush.bf16.msra.mxu0 %v947
        %969 = vmatpush.bf16.msra.mxu0 %v946
        %970 = vmatmul.bf16.gmra.mxu0 %v821
        %v971 = vpop.f32.mrf.mxu0
        %v972 = vadd.f32 %v912, %v971
        %v973 = vpop.f32.mrf.mxu0
        %v974 = vadd.f32 %v912, %v973
        %975 = vmatmul.bf16.gmra.mxu0 %v822
        %v976 = vpop.f32.mrf.mxu0
        %v977 = vadd.f32 %v912, %v976
        %v978 = vpop.f32.mrf.mxu0
        %v979 = vadd.f32 %v912, %v978
        %980 = vdwg.mxu0
        %v981 = vld [vmem:[#allocation11] sm:$0xf]
        %v982 = vld [vmem:[#allocation11 + $0x4] sm:$0xf]
        %v983 = vld [vmem:[#allocation11 + $0x8] sm:$0xf]
        %v984 = vld [vmem:[#allocation11 + $0xc] sm:$0xf]
        %v985 = vld [vmem:[#allocation11 + $0x10] sm:$0xf]
        %v986 = vld [vmem:[#allocation11 + $0x14] sm:$0xf]
        %v987 = vld [vmem:[#allocation11 + $0x18] sm:$0xf]
        %v988 = vld [vmem:[#allocation11 + $0x1c] sm:$0xf]
        %v989 = vld [vmem:[#allocation11 + $0x20] sm:$0xf]
        %v990 = vld [vmem:[#allocation11 + $0x24] sm:$0xf]
        %v991 = vld [vmem:[#allocation11 + $0x28] sm:$0xf]
        %v992 = vld [vmem:[#allocation11 + $0x2c] sm:$0xf]
        %v993 = vld [vmem:[#allocation11 + $0x30] sm:$0xf]
        %v994 = vld [vmem:[#allocation11 + $0x34] sm:$0xf]
        %v995 = vld [vmem:[#allocation11 + $0x38] sm:$0xf]
        %v996 = vld [vmem:[#allocation11 + $0x3c] sm:$0xf]
        %v997 = vld [vmem:[%s8] sm:$0x1]
        %v999 = vperm.slane %v997, 0
        %v1017 = vunpack.c.l.b16 %v981
        %v1018 = vunpack.c.l.b16 %v982
        %v1019 = vunpack.c.l.b16 %v983
        %v1020 = vunpack.c.l.b16 %v984
        %v1021 = vunpack.c.l.b16 %v985
        %v1022 = vunpack.c.l.b16 %v986
        %v1023 = vunpack.c.l.b16 %v987
        %v1024 = vunpack.c.l.b16 %v988
        %v1025 = vunpack.c.l.b16 %v989
        %v1026 = vunpack.c.l.b16 %v990
        %v1027 = vunpack.c.l.b16 %v991
        %v1028 = vunpack.c.l.b16 %v992
        %v1029 = vunpack.c.l.b16 %v993
        %v1030 = vunpack.c.l.b16 %v994
        %v1031 = vunpack.c.l.b16 %v995
        %v1032 = vunpack.c.l.b16 %v996
        %v1033 = vpack.c.b16 %v1018, %v1017
        %v1034 = vpack.c.b16 %v1020, %v1019
        %v1035 = vpack.c.b16 %v1022, %v1021
        %v1036 = vpack.c.b16 %v1024, %v1023
        %v1037 = vpack.c.b16 %v1026, %v1025
        %v1038 = vpack.c.b16 %v1028, %v1027
        %v1039 = vpack.c.b16 %v1030, %v1029
        %v1040 = vpack.c.b16 %v1032, %v1031
        %1049 = vmatpush.bf16.msra.mxu0 %v1040
        %1050 = vmatpush.bf16.msra.mxu0 %v1039
        %1051 = vmatpush.bf16.msra.mxu0 %v1038
        %1052 = vmatpush.bf16.msra.mxu0 %v1037
        %1053 = vmatpush.bf16.msra.mxu0 %v1036
        %1054 = vmatpush.bf16.msra.mxu0 %v1035
        %1055 = vmatpush.bf16.msra.mxu0 %v1034
        %1056 = vmatpush.bf16.msra.mxu0 %v1033
        %1057 = vmatmul.bf16.gmra.mxu0 %v821
        %v1058 = vpop.f32.mrf.mxu0
        %v1059 = vadd.f32 %v999, %v1058
        %v1060 = vpop.f32.mrf.mxu0
        %v1061 = vadd.f32 %v999, %v1060
        %1062 = vmatmul.bf16.gmra.mxu0 %v822
        %v1063 = vpop.f32.mrf.mxu0
        %v1064 = vadd.f32 %v999, %v1063
        %v1065 = vpop.f32.mrf.mxu0
        %v1066 = vadd.f32 %v999, %v1065
        %1067 = vdwg.mxu0
        %1072 = vrot.lane.b32.xlu0 %v885, 96
        %v1073 = vpop.permute.xlu0 %1072
        %1074 = vrot.lane.b32.xlu0 %v887, 96
        %v1075 = vpop.permute.xlu0 %1074
        %1076 = vrot.lane.b32.xlu0 %v890, 96
        %v1077 = vpop.permute.xlu0 %1076
        %1078 = vrot.lane.b32.xlu0 %v892, 96
        %v1079 = vpop.permute.xlu0 %1078
        %1084 = vrot.lane.b32.xlu0 %v885, 64
        %v1085 = vpop.permute.xlu0 %1084
        %1086 = vrot.lane.b32.xlu0 %v887, 64
        %v1087 = vpop.permute.xlu0 %1086
        %1088 = vrot.lane.b32.xlu0 %v890, 64
        %v1089 = vpop.permute.xlu0 %1088
        %1090 = vrot.lane.b32.xlu0 %v892, 64
        %v1091 = vpop.permute.xlu0 %1090
        %1096 = vrot.lane.b32.xlu0 %v885, 32
        %v1097 = vpop.permute.xlu0 %1096
        %1098 = vrot.lane.b32.xlu0 %v887, 32
        %v1099 = vpop.permute.xlu0 %1098
        %1100 = vrot.lane.b32.xlu0 %v890, 32
        %v1101 = vpop.permute.xlu0 %1100
        %1102 = vrot.lane.b32.xlu0 %v892, 32
        %v1103 = vpop.permute.xlu0 %1102
        %v1108 = vrot.slane %v1085, 4
        %vm1109 = vcmask 1047556
        %v1110 = vsel %vm1109, %v1108, %v885
        %v1111 = vrot.slane %v885, 4
        %v1112 = vsel %vm1109, %v1085, %v1111
        %v1114 = vunpack.c.l.s4 1983009808
        %v1115 = vunpack.c.0.s8 %v1114
        %v1116 = vperm.slane %v1110, %v1115
        %v1118 = vunpack.c.l.s4 1983009808
        %v1119 = vunpack.c.0.s8 %v1118
        %v1120 = vperm.slane %v1112, %v1119
        %v1121 = vrot.slane %v1097, 4
        %v1122 = vsel %vm1109, %v1121, %v1073
        %v1123 = vrot.slane %v1073, 4
        %v1124 = vsel %vm1109, %v1097, %v1123
        %v1126 = vunpack.c.l.s4 1983009808
        %v1127 = vunpack.c.0.s8 %v1126
        %v1128 = vperm.slane %v1122, %v1127
        %v1130 = vunpack.c.l.s4 1983009808
        %v1131 = vunpack.c.0.s8 %v1130
        %v1132 = vperm.slane %v1124, %v1131
        %v1133 = vrot.slane %v1128, 4
        %v1134 = vsel %vm1109, %v1133, %v1116
        %v1135 = vrot.slane %v1116, 4
        %v1136 = vsel %vm1109, %v1128, %v1135
        %v1138 = vunpack.c.l.s4 1934713408
        %v1139 = vunpack.c.0.s8 %v1138
        %v1140 = vperm.slane %v1134, %v1139
        %v1142 = vunpack.c.l.s4 1934713408
        %v1143 = vunpack.c.0.s8 %v1142
        %v1144 = vperm.slane %v1136, %v1143
        %v1145 = vrot.slane %v1132, 4
        %v1146 = vsel %vm1109, %v1145, %v1120
        %v1147 = vrot.slane %v1120, 4
        %v1148 = vsel %vm1109, %v1132, %v1147
        %v1150 = vunpack.c.l.s4 1934713408
        %v1151 = vunpack.c.0.s8 %v1150
        %v1152 = vperm.slane %v1146, %v1151
        %v1154 = vunpack.c.l.s4 1934713408
        %v1155 = vunpack.c.0.s8 %v1154
        %v1156 = vperm.slane %v1148, %v1155
        %v1157 = vrot.slane %v1140, 4
        %v1158 = vsel %vm1109, 0.0, %v1157
        %v1159 = vrot.slane %v1144, 4
        %v1160 = vsel %vm1109, 0.0, %v1159
        %v1161 = vrot.slane %v1152, 4
        %v1162 = vsel %vm1109, 0.0, %v1161
        %v1163 = vrot.slane %v1156, 4
        %v1164 = vsel %vm1109, 0.0, %v1163
        %v1165 = vrot.slane %v1087, 4
        %v1166 = vsel %vm1109, %v1165, %v887
        %v1167 = vrot.slane %v887, 4
        %v1168 = vsel %vm1109, %v1087, %v1167
        %v1170 = vunpack.c.l.s4 1983009808
        %v1171 = vunpack.c.0.s8 %v1170
        %v1172 = vperm.slane %v1166, %v1171
        %v1174 = vunpack.c.l.s4 1983009808
        %v1175 = vunpack.c.0.s8 %v1174
        %v1176 = vperm.slane %v1168, %v1175
        %v1177 = vrot.slane %v1099, 4
        %v1178 = vsel %vm1109, %v1177, %v1075
        %v1179 = vrot.slane %v1075, 4
        %v1180 = vsel %vm1109, %v1099, %v1179
        %v1182 = vunpack.c.l.s4 1983009808
        %v1183 = vunpack.c.0.s8 %v1182
        %v1184 = vperm.slane %v1178, %v1183
        %v1186 = vunpack.c.l.s4 1983009808
        %v1187 = vunpack.c.0.s8 %v1186
        %v1188 = vperm.slane %v1180, %v1187
        %v1189 = vrot.slane %v1184, 4
        %v1190 = vsel %vm1109, %v1189, %v1172
        %v1191 = vrot.slane %v1172, 4
        %v1192 = vsel %vm1109, %v1184, %v1191
        %v1194 = vunpack.c.l.s4 1934713408
        %v1195 = vunpack.c.0.s8 %v1194
        %v1196 = vperm.slane %v1190, %v1195
        %v1198 = vunpack.c.l.s4 1934713408
        %v1199 = vunpack.c.0.s8 %v1198
        %v1200 = vperm.slane %v1192, %v1199
        %v1201 = vrot.slane %v1188, 4
        %v1202 = vsel %vm1109, %v1201, %v1176
        %v1203 = vrot.slane %v1176, 4
        %v1204 = vsel %vm1109, %v1188, %v1203
        %v1206 = vunpack.c.l.s4 1934713408
        %v1207 = vunpack.c.0.s8 %v1206
        %v1208 = vperm.slane %v1202, %v1207
        %v1210 = vunpack.c.l.s4 1934713408
        %v1211 = vunpack.c.0.s8 %v1210
        %v1212 = vperm.slane %v1204, %v1211
        %v1213 = vrot.slane %v1196, 4
        %v1214 = vsel %vm1109, 0.0, %v1213
        %v1215 = vrot.slane %v1200, 4
        %v1216 = vsel %vm1109, 0.0, %v1215
        %v1217 = vrot.slane %v1208, 4
        %v1218 = vsel %vm1109, 0.0, %v1217
        %v1219 = vrot.slane %v1212, 4
        %v1220 = vsel %vm1109, 0.0, %v1219
        %v1221 = vrot.slane %v1089, 4
        %v1222 = vsel %vm1109, %v1221, %v890
        %v1223 = vrot.slane %v890, 4
        %v1224 = vsel %vm1109, %v1089, %v1223
        %v1226 = vunpack.c.l.s4 1983009808
        %v1227 = vunpack.c.0.s8 %v1226
        %v1228 = vperm.slane %v1222, %v1227
        %v1230 = vunpack.c.l.s4 1983009808
        %v1231 = vunpack.c.0.s8 %v1230
        %v1232 = vperm.slane %v1224, %v1231
        %v1233 = vrot.slane %v1101, 4
        %v1234 = vsel %vm1109, %v1233, %v1077
        %v1235 = vrot.slane %v1077, 4
        %v1236 = vsel %vm1109, %v1101, %v1235
        %v1238 = vunpack.c.l.s4 1983009808
        %v1239 = vunpack.c.0.s8 %v1238
        %v1240 = vperm.slane %v1234, %v1239
        %v1242 = vunpack.c.l.s4 1983009808
        %v1243 = vunpack.c.0.s8 %v1242
        %v1244 = vperm.slane %v1236, %v1243
        %v1245 = vrot.slane %v1240, 4
        %v1246 = vsel %vm1109, %v1245, %v1228
        %v1247 = vrot.slane %v1228, 4
        %v1248 = vsel %vm1109, %v1240, %v1247
        %v1250 = vunpack.c.l.s4 1934713408
        %v1251 = vunpack.c.0.s8 %v1250
        %v1252 = vperm.slane %v1246, %v1251
        %v1254 = vunpack.c.l.s4 1934713408
        %v1255 = vunpack.c.0.s8 %v1254
        %v1256 = vperm.slane %v1248, %v1255
        %v1257 = vrot.slane %v1244, 4
        %v1258 = vsel %vm1109, %v1257, %v1232
        %v1259 = vrot.slane %v1232, 4
        %v1260 = vsel %vm1109, %v1244, %v1259
        %v1262 = vunpack.c.l.s4 1934713408
        %v1263 = vunpack.c.0.s8 %v1262
        %v1264 = vperm.slane %v1258, %v1263
        %v1266 = vunpack.c.l.s4 1934713408
        %v1267 = vunpack.c.0.s8 %v1266
        %v1268 = vperm.slane %v1260, %v1267
        %v1269 = vrot.slane %v1252, 4
        %v1270 = vsel %vm1109, 0.0, %v1269
        %v1271 = vrot.slane %v1256, 4
        %v1272 = vsel %vm1109, 0.0, %v1271
        %v1273 = vrot.slane %v1264, 4
        %v1274 = vsel %vm1109, 0.0, %v1273
        %v1275 = vrot.slane %v1268, 4
        %v1276 = vsel %vm1109, 0.0, %v1275
        %v1277 = vrot.slane %v1091, 4
        %v1278 = vsel %vm1109, %v1277, %v892
        %v1279 = vrot.slane %v892, 4
        %v1280 = vsel %vm1109, %v1091, %v1279
        %v1282 = vunpack.c.l.s4 1983009808
        %v1283 = vunpack.c.0.s8 %v1282
        %v1284 = vperm.slane %v1278, %v1283
        %v1286 = vunpack.c.l.s4 1983009808
        %v1287 = vunpack.c.0.s8 %v1286
        %v1288 = vperm.slane %v1280, %v1287
        %v1289 = vrot.slane %v1103, 4
        %v1290 = vsel %vm1109, %v1289, %v1079
        %v1291 = vrot.slane %v1079, 4
        %v1292 = vsel %vm1109, %v1103, %v1291
        %v1294 = vunpack.c.l.s4 1983009808
        %v1295 = vunpack.c.0.s8 %v1294
        %v1296 = vperm.slane %v1290, %v1295
        %v1298 = vunpack.c.l.s4 1983009808
        %v1299 = vunpack.c.0.s8 %v1298
        %v1300 = vperm.slane %v1292, %v1299
        %v1301 = vrot.slane %v1296, 4
        %v1302 = vsel %vm1109, %v1301, %v1284
        %v1303 = vrot.slane %v1284, 4
        %v1304 = vsel %vm1109, %v1296, %v1303
        %v1306 = vunpack.c.l.s4 1934713408
        %v1307 = vunpack.c.0.s8 %v1306
        %v1308 = vperm.slane %v1302, %v1307
        %v1310 = vunpack.c.l.s4 1934713408
        %v1311 = vunpack.c.0.s8 %v1310
        %v1312 = vperm.slane %v1304, %v1311
        %v1313 = vrot.slane %v1300, 4
        %v1314 = vsel %vm1109, %v1313, %v1288
        %v1315 = vrot.slane %v1288, 4
        %v1316 = vsel %vm1109, %v1300, %v1315
        %v1318 = vunpack.c.l.s4 1934713408
        %v1319 = vunpack.c.0.s8 %v1318
        %v1320 = vperm.slane %v1314, %v1319
        %v1322 = vunpack.c.l.s4 1934713408
        %v1323 = vunpack.c.0.s8 %v1322
        %v1324 = vperm.slane %v1316, %v1323
        %v1325 = vrot.slane %v1308, 4
        %v1326 = vsel %vm1109, 0.0, %v1325
        %v1327 = vrot.slane %v1312, 4
        %v1328 = vsel %vm1109, 0.0, %v1327
        %v1329 = vrot.slane %v1320, 4
        %v1330 = vsel %vm1109, 0.0, %v1329
        %v1331 = vrot.slane %v1324, 4
        %v1332 = vsel %vm1109, 0.0, %v1331
        %v1333 = vsel %vm1109, %v1159, %v1140
        %v1335 = vunpack.c.l.s4 1983009808
        %v1336 = vunpack.c.0.s8 %v1335
        %v1337 = vperm.slane %v1333, %v1336
        %v1338 = vrot.slane %v1160, 4
        %v1339 = vsel %vm1109, %v1338, %v1158
        %v1341 = vunpack.c.l.s4 1983009808
        %v1342 = vunpack.c.0.s8 %v1341
        %v1343 = vperm.slane %v1339, %v1342
        %v1344 = vsel %vm1109, %v1163, %v1152
        %v1346 = vunpack.c.l.s4 1983009808
        %v1347 = vunpack.c.0.s8 %v1346
        %v1348 = vperm.slane %v1344, %v1347
        %v1349 = vrot.slane %v1164, 4
        %v1350 = vsel %vm1109, %v1349, %v1162
        %v1352 = vunpack.c.l.s4 1983009808
        %v1353 = vunpack.c.0.s8 %v1352
        %v1354 = vperm.slane %v1350, %v1353
        %v1355 = vrot.slane %v1343, 4
        %v1356 = vsel %vm1109, %v1355, %v1337
        %v1357 = vrot.slane %v1337, 4
        %v1358 = vsel %vm1109, %v1343, %v1357
        %v1360 = vunpack.c.l.s4 1934713408
        %v1361 = vunpack.c.0.s8 %v1360
        %v1362 = vperm.slane %v1356, %v1361
        %v1364 = vunpack.c.l.s4 1934713408
        %v1365 = vunpack.c.0.s8 %v1364
        %v1366 = vperm.slane %v1358, %v1365
        %v1367 = vrot.slane %v1354, 4
        %v1368 = vsel %vm1109, %v1367, %v1348
        %v1369 = vrot.slane %v1348, 4
        %v1370 = vsel %vm1109, %v1354, %v1369
        %v1372 = vunpack.c.l.s4 1934713408
        %v1373 = vunpack.c.0.s8 %v1372
        %v1374 = vperm.slane %v1368, %v1373
        %v1376 = vunpack.c.l.s4 1934713408
        %v1377 = vunpack.c.0.s8 %v1376
        %v1378 = vperm.slane %v1370, %v1377
        %v1379 = vrot.slane %v1374, 4
        %v1380 = vsel %vm1109, %v1379, %v1362
        %v1381 = vrot.slane %v1362, 4
        %v1382 = vsel %vm1109, %v1374, %v1381
        %v1383 = vrot.slane %v1378, 4
        %v1384 = vsel %vm1109, %v1383, %v1366
        %v1385 = vrot.slane %v1366, 4
        %v1386 = vsel %vm1109, %v1378, %v1385
        %v1387 = vsel %vm1109, %v1215, %v1196
        %v1389 = vunpack.c.l.s4 1983009808
        %v1390 = vunpack.c.0.s8 %v1389
        %v1391 = vperm.slane %v1387, %v1390
        %v1392 = vrot.slane %v1216, 4
        %v1393 = vsel %vm1109, %v1392, %v1214
        %v1395 = vunpack.c.l.s4 1983009808
        %v1396 = vunpack.c.0.s8 %v1395
        %v1397 = vperm.slane %v1393, %v1396
        %v1398 = vsel %vm1109, %v1219, %v1208
        %v1400 = vunpack.c.l.s4 1983009808
        %v1401 = vunpack.c.0.s8 %v1400
        %v1402 = vperm.slane %v1398, %v1401
        %v1403 = vrot.slane %v1220, 4
        %v1404 = vsel %vm1109, %v1403, %v1218
        %v1406 = vunpack.c.l.s4 1983009808
        %v1407 = vunpack.c.0.s8 %v1406
        %v1408 = vperm.slane %v1404, %v1407
        %v1409 = vrot.slane %v1397, 4
        %v1410 = vsel %vm1109, %v1409, %v1391
        %v1411 = vrot.slane %v1391, 4
        %v1412 = vsel %vm1109, %v1397, %v1411
        %v1414 = vunpack.c.l.s4 1934713408
        %v1415 = vunpack.c.0.s8 %v1414
        %v1416 = vperm.slane %v1410, %v1415
        %v1418 = vunpack.c.l.s4 1934713408
        %v1419 = vunpack.c.0.s8 %v1418
        %v1420 = vperm.slane %v1412, %v1419
        %v1421 = vrot.slane %v1408, 4
        %v1422 = vsel %vm1109, %v1421, %v1402
        %v1423 = vrot.slane %v1402, 4
        %v1424 = vsel %vm1109, %v1408, %v1423
        %v1426 = vunpack.c.l.s4 1934713408
        %v1427 = vunpack.c.0.s8 %v1426
        %v1428 = vperm.slane %v1422, %v1427
        %v1430 = vunpack.c.l.s4 1934713408
        %v1431 = vunpack.c.0.s8 %v1430
        %v1432 = vperm.slane %v1424, %v1431
        %v1433 = vrot.slane %v1428, 4
        %v1434 = vsel %vm1109, %v1433, %v1416
        %v1435 = vrot.slane %v1416, 4
        %v1436 = vsel %vm1109, %v1428, %v1435
        %v1437 = vrot.slane %v1432, 4
        %v1438 = vsel %vm1109, %v1437, %v1420
        %v1439 = vrot.slane %v1420, 4
        %v1440 = vsel %vm1109, %v1432, %v1439
        %v1441 = vsel %vm1109, %v1271, %v1252
        %v1443 = vunpack.c.l.s4 1983009808
        %v1444 = vunpack.c.0.s8 %v1443
        %v1445 = vperm.slane %v1441, %v1444
        %v1446 = vrot.slane %v1272, 4
        %v1447 = vsel %vm1109, %v1446, %v1270
        %v1449 = vunpack.c.l.s4 1983009808
        %v1450 = vunpack.c.0.s8 %v1449
        %v1451 = vperm.slane %v1447, %v1450
        %v1452 = vsel %vm1109, %v1275, %v1264
        %v1454 = vunpack.c.l.s4 1983009808
        %v1455 = vunpack.c.0.s8 %v1454
        %v1456 = vperm.slane %v1452, %v1455
        %v1457 = vrot.slane %v1276, 4
        %v1458 = vsel %vm1109, %v1457, %v1274
        %v1460 = vunpack.c.l.s4 1983009808
        %v1461 = vunpack.c.0.s8 %v1460
        %v1462 = vperm.slane %v1458, %v1461
        %v1463 = vrot.slane %v1451, 4
        %v1464 = vsel %vm1109, %v1463, %v1445
        %v1465 = vrot.slane %v1445, 4
        %v1466 = vsel %vm1109, %v1451, %v1465
        %v1468 = vunpack.c.l.s4 1934713408
        %v1469 = vunpack.c.0.s8 %v1468
        %v1470 = vperm.slane %v1464, %v1469
        %v1472 = vunpack.c.l.s4 1934713408
        %v1473 = vunpack.c.0.s8 %v1472
        %v1474 = vperm.slane %v1466, %v1473
        %v1475 = vrot.slane %v1462, 4
        %v1476 = vsel %vm1109, %v1475, %v1456
        %v1477 = vrot.slane %v1456, 4
        %v1478 = vsel %vm1109, %v1462, %v1477
        %v1480 = vunpack.c.l.s4 1934713408
        %v1481 = vunpack.c.0.s8 %v1480
        %v1482 = vperm.slane %v1476, %v1481
        %v1484 = vunpack.c.l.s4 1934713408
        %v1485 = vunpack.c.0.s8 %v1484
        %v1486 = vperm.slane %v1478, %v1485
        %v1487 = vrot.slane %v1482, 4
        %v1488 = vsel %vm1109, %v1487, %v1470
        %v1489 = vrot.slane %v1470, 4
        %v1490 = vsel %vm1109, %v1482, %v1489
        %v1491 = vrot.slane %v1486, 4
        %v1492 = vsel %vm1109, %v1491, %v1474
        %v1493 = vrot.slane %v1474, 4
        %v1494 = vsel %vm1109, %v1486, %v1493
        %v1495 = vsel %vm1109, %v1327, %v1308
        %v1497 = vunpack.c.l.s4 1983009808
        %v1498 = vunpack.c.0.s8 %v1497
        %v1499 = vperm.slane %v1495, %v1498
        %v1500 = vrot.slane %v1328, 4
        %v1501 = vsel %vm1109, %v1500, %v1326
        %v1503 = vunpack.c.l.s4 1983009808
        %v1504 = vunpack.c.0.s8 %v1503
        %v1505 = vperm.slane %v1501, %v1504
        %v1506 = vsel %vm1109, %v1331, %v1320
        %v1508 = vunpack.c.l.s4 1983009808
        %v1509 = vunpack.c.0.s8 %v1508
        %v1510 = vperm.slane %v1506, %v1509
        %v1511 = vrot.slane %v1332, 4
        %v1512 = vsel %vm1109, %v1511, %v1330
        %v1514 = vunpack.c.l.s4 1983009808
        %v1515 = vunpack.c.0.s8 %v1514
        %v1516 = vperm.slane %v1512, %v1515
        %v1517 = vrot.slane %v1505, 4
        %v1518 = vsel %vm1109, %v1517, %v1499
        %v1519 = vrot.slane %v1499, 4
        %v1520 = vsel %vm1109, %v1505, %v1519
        %v1522 = vunpack.c.l.s4 1934713408
        %v1523 = vunpack.c.0.s8 %v1522
        %v1524 = vperm.slane %v1518, %v1523
        %v1526 = vunpack.c.l.s4 1934713408
        %v1527 = vunpack.c.0.s8 %v1526
        %v1528 = vperm.slane %v1520, %v1527
        %v1529 = vrot.slane %v1516, 4
        %v1530 = vsel %vm1109, %v1529, %v1510
        %v1531 = vrot.slane %v1510, 4
        %v1532 = vsel %vm1109, %v1516, %v1531
        %v1534 = vunpack.c.l.s4 1934713408
        %v1535 = vunpack.c.0.s8 %v1534
        %v1536 = vperm.slane %v1530, %v1535
        %v1538 = vunpack.c.l.s4 1934713408
        %v1539 = vunpack.c.0.s8 %v1538
        %v1540 = vperm.slane %v1532, %v1539
        %v1541 = vrot.slane %v1536, 4
        %v1542 = vsel %vm1109, %v1541, %v1524
        %v1543 = vrot.slane %v1524, 4
        %v1544 = vsel %vm1109, %v1536, %v1543
        %v1545 = vrot.slane %v1540, 4
        %v1546 = vsel %vm1109, %v1545, %v1528
        %v1547 = vrot.slane %v1528, 4
        %v1548 = vsel %vm1109, %v1540, %v1547
        %v1549 = vpack.c.bf16 %v1380, %v1380
        %v1550 = vpack.c.bf16 %v1434, %v1434
        %v1551 = vpack.c.bf16 %v1488, %v1488
        %v1552 = vpack.c.bf16 %v1542, %v1542
        %v1553 = vpack.c.bf16 %v1382, %v1382
        %v1554 = vpack.c.bf16 %v1436, %v1436
        %v1555 = vpack.c.bf16 %v1490, %v1490
        %v1556 = vpack.c.bf16 %v1544, %v1544
        %v1557 = vpack.c.bf16 %v1384, %v1384
        %v1558 = vpack.c.bf16 %v1438, %v1438
        %v1559 = vpack.c.bf16 %v1492, %v1492
        %v1560 = vpack.c.bf16 %v1546, %v1546
        %v1561 = vpack.c.bf16 %v1386, %v1386
        %v1562 = vpack.c.bf16 %v1440, %v1440
        %v1563 = vpack.c.bf16 %v1494, %v1494
        %v1564 = vpack.c.bf16 %v1548, %v1548
        %1569 = vrot.lane.b32.xlu0 %v972, 96
        %v1570 = vpop.permute.xlu0 %1569
        %1571 = vrot.lane.b32.xlu0 %v974, 96
        %v1572 = vpop.permute.xlu0 %1571
        %1573 = vrot.lane.b32.xlu0 %v977, 96
        %v1574 = vpop.permute.xlu0 %1573
        %1575 = vrot.lane.b32.xlu0 %v979, 96
        %v1576 = vpop.permute.xlu0 %1575
        %1581 = vrot.lane.b32.xlu0 %v972, 64
        %v1582 = vpop.permute.xlu0 %1581
        %1583 = vrot.lane.b32.xlu0 %v974, 64
        %v1584 = vpop.permute.xlu0 %1583
        %1585 = vrot.lane.b32.xlu0 %v977, 64
        %v1586 = vpop.permute.xlu0 %1585
        %1587 = vrot.lane.b32.xlu0 %v979, 64
        %v1588 = vpop.permute.xlu0 %1587
        %1593 = vrot.lane.b32.xlu0 %v972, 32
        %v1594 = vpop.permute.xlu0 %1593
        %1595 = vrot.lane.b32.xlu0 %v974, 32
        %v1596 = vpop.permute.xlu0 %1595
        %1597 = vrot.lane.b32.xlu0 %v977, 32
        %v1598 = vpop.permute.xlu0 %1597
        %1599 = vrot.lane.b32.xlu0 %v979, 32
        %v1600 = vpop.permute.xlu0 %1599
        %v1605 = vrot.slane %v1582, 4
        %v1606 = vsel %vm1109, %v1605, %v972
        %v1607 = vrot.slane %v972, 4
        %v1608 = vsel %vm1109, %v1582, %v1607
        %v1610 = vunpack.c.l.s4 1983009808
        %v1611 = vunpack.c.0.s8 %v1610
        %v1612 = vperm.slane %v1606, %v1611
        %v1614 = vunpack.c.l.s4 1983009808
        %v1615 = vunpack.c.0.s8 %v1614
        %v1616 = vperm.slane %v1608, %v1615
        %v1617 = vrot.slane %v1594, 4
        %v1618 = vsel %vm1109, %v1617, %v1570
        %v1619 = vrot.slane %v1570, 4
        %v1620 = vsel %vm1109, %v1594, %v1619
        %v1622 = vunpack.c.l.s4 1983009808
        %v1623 = vunpack.c.0.s8 %v1622
        %v1624 = vperm.slane %v1618, %v1623
        %v1626 = vunpack.c.l.s4 1983009808
        %v1627 = vunpack.c.0.s8 %v1626
        %v1628 = vperm.slane %v1620, %v1627
        %v1629 = vrot.slane %v1624, 4
        %v1630 = vsel %vm1109, %v1629, %v1612
        %v1631 = vrot.slane %v1612, 4
        %v1632 = vsel %vm1109, %v1624, %v1631
        %v1634 = vunpack.c.l.s4 1934713408
        %v1635 = vunpack.c.0.s8 %v1634
        %v1636 = vperm.slane %v1630, %v1635
        %v1638 = vunpack.c.l.s4 1934713408
        %v1639 = vunpack.c.0.s8 %v1638
        %v1640 = vperm.slane %v1632, %v1639
        %v1641 = vrot.slane %v1628, 4
        %v1642 = vsel %vm1109, %v1641, %v1616
        %v1643 = vrot.slane %v1616, 4
        %v1644 = vsel %vm1109, %v1628, %v1643
        %v1646 = vunpack.c.l.s4 1934713408
        %v1647 = vunpack.c.0.s8 %v1646
        %v1648 = vperm.slane %v1642, %v1647
        %v1650 = vunpack.c.l.s4 1934713408
        %v1651 = vunpack.c.0.s8 %v1650
        %v1652 = vperm.slane %v1644, %v1651
        %v1653 = vrot.slane %v1636, 4
        %v1654 = vsel %vm1109, 0.0, %v1653
        %v1655 = vrot.slane %v1640, 4
        %v1656 = vsel %vm1109, 0.0, %v1655
        %v1657 = vrot.slane %v1648, 4
        %v1658 = vsel %vm1109, 0.0, %v1657
        %v1659 = vrot.slane %v1652, 4
        %v1660 = vsel %vm1109, 0.0, %v1659
        %v1661 = vrot.slane %v1584, 4
        %v1662 = vsel %vm1109, %v1661, %v974
        %v1663 = vrot.slane %v974, 4
        %v1664 = vsel %vm1109, %v1584, %v1663
        %v1666 = vunpack.c.l.s4 1983009808
        %v1667 = vunpack.c.0.s8 %v1666
        %v1668 = vperm.slane %v1662, %v1667
        %v1670 = vunpack.c.l.s4 1983009808
        %v1671 = vunpack.c.0.s8 %v1670
        %v1672 = vperm.slane %v1664, %v1671
        %v1673 = vrot.slane %v1596, 4
        %v1674 = vsel %vm1109, %v1673, %v1572
        %v1675 = vrot.slane %v1572, 4
        %v1676 = vsel %vm1109, %v1596, %v1675
        %v1678 = vunpack.c.l.s4 1983009808
        %v1679 = vunpack.c.0.s8 %v1678
        %v1680 = vperm.slane %v1674, %v1679
        %v1682 = vunpack.c.l.s4 1983009808
        %v1683 = vunpack.c.0.s8 %v1682
        %v1684 = vperm.slane %v1676, %v1683
        %v1685 = vrot.slane %v1680, 4
        %v1686 = vsel %vm1109, %v1685, %v1668
        %v1687 = vrot.slane %v1668, 4
        %v1688 = vsel %vm1109, %v1680, %v1687
        %v1690 = vunpack.c.l.s4 1934713408
        %v1691 = vunpack.c.0.s8 %v1690
        %v1692 = vperm.slane %v1686, %v1691
        %v1694 = vunpack.c.l.s4 1934713408
        %v1695 = vunpack.c.0.s8 %v1694
        %v1696 = vperm.slane %v1688, %v1695
        %v1697 = vrot.slane %v1684, 4
        %v1698 = vsel %vm1109, %v1697, %v1672
        %v1699 = vrot.slane %v1672, 4
        %v1700 = vsel %vm1109, %v1684, %v1699
        %v1702 = vunpack.c.l.s4 1934713408
        %v1703 = vunpack.c.0.s8 %v1702
        %v1704 = vperm.slane %v1698, %v1703
        %v1706 = vunpack.c.l.s4 1934713408
        %v1707 = vunpack.c.0.s8 %v1706
        %v1708 = vperm.slane %v1700, %v1707
        %v1709 = vrot.slane %v1692, 4
        %v1710 = vsel %vm1109, 0.0, %v1709
        %v1711 = vrot.slane %v1696, 4
        %v1712 = vsel %vm1109, 0.0, %v1711
        %v1713 = vrot.slane %v1704, 4
        %v1714 = vsel %vm1109, 0.0, %v1713
        %v1715 = vrot.slane %v1708, 4
        %v1716 = vsel %vm1109, 0.0, %v1715
        %v1717 = vrot.slane %v1586, 4
        %v1718 = vsel %vm1109, %v1717, %v977
        %v1719 = vrot.slane %v977, 4
        %v1720 = vsel %vm1109, %v1586, %v1719
        %v1722 = vunpack.c.l.s4 1983009808
        %v1723 = vunpack.c.0.s8 %v1722
        %v1724 = vperm.slane %v1718, %v1723
        %v1726 = vunpack.c.l.s4 1983009808
        %v1727 = vunpack.c.0.s8 %v1726
        %v1728 = vperm.slane %v1720, %v1727
        %v1729 = vrot.slane %v1598, 4
        %v1730 = vsel %vm1109, %v1729, %v1574
        %v1731 = vrot.slane %v1574, 4
        %v1732 = vsel %vm1109, %v1598, %v1731
        %v1734 = vunpack.c.l.s4 1983009808
        %v1735 = vunpack.c.0.s8 %v1734
        %v1736 = vperm.slane %v1730, %v1735
        %v1738 = vunpack.c.l.s4 1983009808
        %v1739 = vunpack.c.0.s8 %v1738
        %v1740 = vperm.slane %v1732, %v1739
        %v1741 = vrot.slane %v1736, 4
        %v1742 = vsel %vm1109, %v1741, %v1724
        %v1743 = vrot.slane %v1724, 4
        %v1744 = vsel %vm1109, %v1736, %v1743
        %v1746 = vunpack.c.l.s4 1934713408
        %v1747 = vunpack.c.0.s8 %v1746
        %v1748 = vperm.slane %v1742, %v1747
        %v1750 = vunpack.c.l.s4 1934713408
        %v1751 = vunpack.c.0.s8 %v1750
        %v1752 = vperm.slane %v1744, %v1751
        %v1753 = vrot.slane %v1740, 4
        %v1754 = vsel %vm1109, %v1753, %v1728
        %v1755 = vrot.slane %v1728, 4
        %v1756 = vsel %vm1109, %v1740, %v1755
        %v1758 = vunpack.c.l.s4 1934713408
        %v1759 = vunpack.c.0.s8 %v1758
        %v1760 = vperm.slane %v1754, %v1759
        %v1762 = vunpack.c.l.s4 1934713408
        %v1763 = vunpack.c.0.s8 %v1762
        %v1764 = vperm.slane %v1756, %v1763
        %v1765 = vrot.slane %v1748, 4
        %v1766 = vsel %vm1109, 0.0, %v1765
        %v1767 = vrot.slane %v1752, 4
        %v1768 = vsel %vm1109, 0.0, %v1767
        %v1769 = vrot.slane %v1760, 4
        %v1770 = vsel %vm1109, 0.0, %v1769
        %v1771 = vrot.slane %v1764, 4
        %v1772 = vsel %vm1109, 0.0, %v1771
        %v1773 = vrot.slane %v1588, 4
        %v1774 = vsel %vm1109, %v1773, %v979
        %v1775 = vrot.slane %v979, 4
        %v1776 = vsel %vm1109, %v1588, %v1775
        %v1778 = vunpack.c.l.s4 1983009808
        %v1779 = vunpack.c.0.s8 %v1778
        %v1780 = vperm.slane %v1774, %v1779
        %v1782 = vunpack.c.l.s4 1983009808
        %v1783 = vunpack.c.0.s8 %v1782
        %v1784 = vperm.slane %v1776, %v1783
        %v1785 = vrot.slane %v1600, 4
        %v1786 = vsel %vm1109, %v1785, %v1576
        %v1787 = vrot.slane %v1576, 4
        %v1788 = vsel %vm1109, %v1600, %v1787
        %v1790 = vunpack.c.l.s4 1983009808
        %v1791 = vunpack.c.0.s8 %v1790
        %v1792 = vperm.slane %v1786, %v1791
        %v1794 = vunpack.c.l.s4 1983009808
        %v1795 = vunpack.c.0.s8 %v1794
        %v1796 = vperm.slane %v1788, %v1795
        %v1797 = vrot.slane %v1792, 4
        %v1798 = vsel %vm1109, %v1797, %v1780
        %v1799 = vrot.slane %v1780, 4
        %v1800 = vsel %vm1109, %v1792, %v1799
        %v1802 = vunpack.c.l.s4 1934713408
        %v1803 = vunpack.c.0.s8 %v1802
        %v1804 = vperm.slane %v1798, %v1803
        %v1806 = vunpack.c.l.s4 1934713408
        %v1807 = vunpack.c.0.s8 %v1806
        %v1808 = vperm.slane %v1800, %v1807
        %v1809 = vrot.slane %v1796, 4
        %v1810 = vsel %vm1109, %v1809, %v1784
        %v1811 = vrot.slane %v1784, 4
        %v1812 = vsel %vm1109, %v1796, %v1811
        %v1814 = vunpack.c.l.s4 1934713408
        %v1815 = vunpack.c.0.s8 %v1814
        %v1816 = vperm.slane %v1810, %v1815
        %v1818 = vunpack.c.l.s4 1934713408
        %v1819 = vunpack.c.0.s8 %v1818
        %v1820 = vperm.slane %v1812, %v1819
        %v1821 = vrot.slane %v1804, 4
        %v1822 = vsel %vm1109, 0.0, %v1821
        %v1823 = vrot.slane %v1808, 4
        %v1824 = vsel %vm1109, 0.0, %v1823
        %v1825 = vrot.slane %v1816, 4
        %v1826 = vsel %vm1109, 0.0, %v1825
        %v1827 = vrot.slane %v1820, 4
        %v1828 = vsel %vm1109, 0.0, %v1827
        %v1829 = vsel %vm1109, %v1655, %v1636
        %v1831 = vunpack.c.l.s4 1983009808
        %v1832 = vunpack.c.0.s8 %v1831
        %v1833 = vperm.slane %v1829, %v1832
        %v1834 = vrot.slane %v1656, 4
        %v1835 = vsel %vm1109, %v1834, %v1654
        %v1837 = vunpack.c.l.s4 1983009808
        %v1838 = vunpack.c.0.s8 %v1837
        %v1839 = vperm.slane %v1835, %v1838
        %v1840 = vsel %vm1109, %v1659, %v1648
        %v1842 = vunpack.c.l.s4 1983009808
        %v1843 = vunpack.c.0.s8 %v1842
        %v1844 = vperm.slane %v1840, %v1843
        %v1845 = vrot.slane %v1660, 4
        %v1846 = vsel %vm1109, %v1845, %v1658
        %v1848 = vunpack.c.l.s4 1983009808
        %v1849 = vunpack.c.0.s8 %v1848
        %v1850 = vperm.slane %v1846, %v1849
        %v1851 = vrot.slane %v1839, 4
        %v1852 = vsel %vm1109, %v1851, %v1833
        %v1853 = vrot.slane %v1833, 4
        %v1854 = vsel %vm1109, %v1839, %v1853
        %v1856 = vunpack.c.l.s4 1934713408
        %v1857 = vunpack.c.0.s8 %v1856
        %v1858 = vperm.slane %v1852, %v1857
        %v1860 = vunpack.c.l.s4 1934713408
        %v1861 = vunpack.c.0.s8 %v1860
        %v1862 = vperm.slane %v1854, %v1861
        %v1863 = vrot.slane %v1850, 4
        %v1864 = vsel %vm1109, %v1863, %v1844
        %v1865 = vrot.slane %v1844, 4
        %v1866 = vsel %vm1109, %v1850, %v1865
        %v1868 = vunpack.c.l.s4 1934713408
        %v1869 = vunpack.c.0.s8 %v1868
        %v1870 = vperm.slane %v1864, %v1869
        %v1872 = vunpack.c.l.s4 1934713408
        %v1873 = vunpack.c.0.s8 %v1872
        %v1874 = vperm.slane %v1866, %v1873
        %v1875 = vrot.slane %v1870, 4
        %v1876 = vsel %vm1109, %v1875, %v1858
        %v1877 = vrot.slane %v1858, 4
        %v1878 = vsel %vm1109, %v1870, %v1877
        %v1879 = vrot.slane %v1874, 4
        %v1880 = vsel %vm1109, %v1879, %v1862
        %v1881 = vrot.slane %v1862, 4
        %v1882 = vsel %vm1109, %v1874, %v1881
        %v1883 = vsel %vm1109, %v1711, %v1692
        %v1885 = vunpack.c.l.s4 1983009808
        %v1886 = vunpack.c.0.s8 %v1885
        %v1887 = vperm.slane %v1883, %v1886
        %v1888 = vrot.slane %v1712, 4
        %v1889 = vsel %vm1109, %v1888, %v1710
        %v1891 = vunpack.c.l.s4 1983009808
        %v1892 = vunpack.c.0.s8 %v1891
        %v1893 = vperm.slane %v1889, %v1892
        %v1894 = vsel %vm1109, %v1715, %v1704
        %v1896 = vunpack.c.l.s4 1983009808
        %v1897 = vunpack.c.0.s8 %v1896
        %v1898 = vperm.slane %v1894, %v1897
        %v1899 = vrot.slane %v1716, 4
        %v1900 = vsel %vm1109, %v1899, %v1714
        %v1902 = vunpack.c.l.s4 1983009808
        %v1903 = vunpack.c.0.s8 %v1902
        %v1904 = vperm.slane %v1900, %v1903
        %v1905 = vrot.slane %v1893, 4
        %v1906 = vsel %vm1109, %v1905, %v1887
        %v1907 = vrot.slane %v1887, 4
        %v1908 = vsel %vm1109, %v1893, %v1907
        %v1910 = vunpack.c.l.s4 1934713408
        %v1911 = vunpack.c.0.s8 %v1910
        %v1912 = vperm.slane %v1906, %v1911
        %v1914 = vunpack.c.l.s4 1934713408
        %v1915 = vunpack.c.0.s8 %v1914
        %v1916 = vperm.slane %v1908, %v1915
        %v1917 = vrot.slane %v1904, 4
        %v1918 = vsel %vm1109, %v1917, %v1898
        %v1919 = vrot.slane %v1898, 4
        %v1920 = vsel %vm1109, %v1904, %v1919
        %v1922 = vunpack.c.l.s4 1934713408
        %v1923 = vunpack.c.0.s8 %v1922
        %v1924 = vperm.slane %v1918, %v1923
        %v1926 = vunpack.c.l.s4 1934713408
        %v1927 = vunpack.c.0.s8 %v1926
        %v1928 = vperm.slane %v1920, %v1927
        %v1929 = vrot.slane %v1924, 4
        %v1930 = vsel %vm1109, %v1929, %v1912
        %v1931 = vrot.slane %v1912, 4
        %v1932 = vsel %vm1109, %v1924, %v1931
        %v1933 = vrot.slane %v1928, 4
        %v1934 = vsel %vm1109, %v1933, %v1916
        %v1935 = vrot.slane %v1916, 4
        %v1936 = vsel %vm1109, %v1928, %v1935
        %v1937 = vsel %vm1109, %v1767, %v1748
        %v1939 = vunpack.c.l.s4 1983009808
        %v1940 = vunpack.c.0.s8 %v1939
        %v1941 = vperm.slane %v1937, %v1940
        %v1942 = vrot.slane %v1768, 4
        %v1943 = vsel %vm1109, %v1942, %v1766
        %v1945 = vunpack.c.l.s4 1983009808
        %v1946 = vunpack.c.0.s8 %v1945
        %v1947 = vperm.slane %v1943, %v1946
        %v1948 = vsel %vm1109, %v1771, %v1760
        %v1950 = vunpack.c.l.s4 1983009808
        %v1951 = vunpack.c.0.s8 %v1950
        %v1952 = vperm.slane %v1948, %v1951
        %v1953 = vrot.slane %v1772, 4
        %v1954 = vsel %vm1109, %v1953, %v1770
        %v1956 = vunpack.c.l.s4 1983009808
        %v1957 = vunpack.c.0.s8 %v1956
        %v1958 = vperm.slane %v1954, %v1957
        %v1959 = vrot.slane %v1947, 4
        %v1960 = vsel %vm1109, %v1959, %v1941
        %v1961 = vrot.slane %v1941, 4
        %v1962 = vsel %vm1109, %v1947, %v1961
        %v1964 = vunpack.c.l.s4 1934713408
        %v1965 = vunpack.c.0.s8 %v1964
        %v1966 = vperm.slane %v1960, %v1965
        %v1968 = vunpack.c.l.s4 1934713408
        %v1969 = vunpack.c.0.s8 %v1968
        %v1970 = vperm.slane %v1962, %v1969
        %v1971 = vrot.slane %v1958, 4
        %v1972 = vsel %vm1109, %v1971, %v1952
        %v1973 = vrot.slane %v1952, 4
        %v1974 = vsel %vm1109, %v1958, %v1973
        %v1976 = vunpack.c.l.s4 1934713408
        %v1977 = vunpack.c.0.s8 %v1976
        %v1978 = vperm.slane %v1972, %v1977
        %v1980 = vunpack.c.l.s4 1934713408
        %v1981 = vunpack.c.0.s8 %v1980
        %v1982 = vperm.slane %v1974, %v1981
        %v1983 = vrot.slane %v1978, 4
        %v1984 = vsel %vm1109, %v1983, %v1966
        %v1985 = vrot.slane %v1966, 4
        %v1986 = vsel %vm1109, %v1978, %v1985
        %v1987 = vrot.slane %v1982, 4
        %v1988 = vsel %vm1109, %v1987, %v1970
        %v1989 = vrot.slane %v1970, 4
        %v1990 = vsel %vm1109, %v1982, %v1989
        %v1991 = vsel %vm1109, %v1823, %v1804
        %v1993 = vunpack.c.l.s4 1983009808
        %v1994 = vunpack.c.0.s8 %v1993
        %v1995 = vperm.slane %v1991, %v1994
        %v1996 = vrot.slane %v1824, 4
        %v1997 = vsel %vm1109, %v1996, %v1822
        %v1999 = vunpack.c.l.s4 1983009808
        %v2000 = vunpack.c.0.s8 %v1999
        %v2001 = vperm.slane %v1997, %v2000
        %v2002 = vsel %vm1109, %v1827, %v1816
        %v2004 = vunpack.c.l.s4 1983009808
        %v2005 = vunpack.c.0.s8 %v2004
        %v2006 = vperm.slane %v2002, %v2005
        %v2007 = vrot.slane %v1828, 4
        %v2008 = vsel %vm1109, %v2007, %v1826
        %v2010 = vunpack.c.l.s4 1983009808
        %v2011 = vunpack.c.0.s8 %v2010
        %v2012 = vperm.slane %v2008, %v2011
        %v2013 = vrot.slane %v2001, 4
        %v2014 = vsel %vm1109, %v2013, %v1995
        %v2015 = vrot.slane %v1995, 4
        %v2016 = vsel %vm1109, %v2001, %v2015
        %v2018 = vunpack.c.l.s4 1934713408
        %v2019 = vunpack.c.0.s8 %v2018
        %v2020 = vperm.slane %v2014, %v2019
        %v2022 = vunpack.c.l.s4 1934713408
        %v2023 = vunpack.c.0.s8 %v2022
        %v2024 = vperm.slane %v2016, %v2023
        %v2025 = vrot.slane %v2012, 4
        %v2026 = vsel %vm1109, %v2025, %v2006
        %v2027 = vrot.slane %v2006, 4
        %v2028 = vsel %vm1109, %v2012, %v2027
        %v2030 = vunpack.c.l.s4 1934713408
        %v2031 = vunpack.c.0.s8 %v2030
        %v2032 = vperm.slane %v2026, %v2031
        %v2034 = vunpack.c.l.s4 1934713408
        %v2035 = vunpack.c.0.s8 %v2034
        %v2036 = vperm.slane %v2028, %v2035
        %v2037 = vrot.slane %v2032, 4
        %v2038 = vsel %vm1109, %v2037, %v2020
        %v2039 = vrot.slane %v2020, 4
        %v2040 = vsel %vm1109, %v2032, %v2039
        %v2041 = vrot.slane %v2036, 4
        %v2042 = vsel %vm1109, %v2041, %v2024
        %v2043 = vrot.slane %v2024, 4
        %v2044 = vsel %vm1109, %v2036, %v2043
        %v2045 = vpack.c.bf16 %v1876, %v1876
        %v2046 = vpack.c.bf16 %v1930, %v1930
        %v2047 = vpack.c.bf16 %v1984, %v1984
        %v2048 = vpack.c.bf16 %v2038, %v2038
        %v2049 = vpack.c.bf16 %v1878, %v1878
        %v2050 = vpack.c.bf16 %v1932, %v1932
        %v2051 = vpack.c.bf16 %v1986, %v1986
        %v2052 = vpack.c.bf16 %v2040, %v2040
        %v2053 = vpack.c.bf16 %v1880, %v1880
        %v2054 = vpack.c.bf16 %v1934, %v1934
        %v2055 = vpack.c.bf16 %v1988, %v1988
        %v2056 = vpack.c.bf16 %v2042, %v2042
        %v2057 = vpack.c.bf16 %v1882, %v1882
        %v2058 = vpack.c.bf16 %v1936, %v1936
        %v2059 = vpack.c.bf16 %v1990, %v1990
        %v2060 = vpack.c.bf16 %v2044, %v2044
        %2065 = vrot.lane.b32.xlu0 %v1059, 96
        %v2066 = vpop.permute.xlu0 %2065
        %2067 = vrot.lane.b32.xlu0 %v1061, 96
        %v2068 = vpop.permute.xlu0 %2067
        %2069 = vrot.lane.b32.xlu0 %v1064, 96
        %v2070 = vpop.permute.xlu0 %2069
        %2071 = vrot.lane.b32.xlu0 %v1066, 96
        %v2072 = vpop.permute.xlu0 %2071
        %2077 = vrot.lane.b32.xlu0 %v1059, 64
        %v2078 = vpop.permute.xlu0 %2077
        %2079 = vrot.lane.b32.xlu0 %v1061, 64
        %v2080 = vpop.permute.xlu0 %2079
        %2081 = vrot.lane.b32.xlu0 %v1064, 64
        %v2082 = vpop.permute.xlu0 %2081
        %2083 = vrot.lane.b32.xlu0 %v1066, 64
        %v2084 = vpop.permute.xlu0 %2083
        %2089 = vrot.lane.b32.xlu0 %v1059, 32
        %v2090 = vpop.permute.xlu0 %2089
        %2091 = vrot.lane.b32.xlu0 %v1061, 32
        %v2092 = vpop.permute.xlu0 %2091
        %2093 = vrot.lane.b32.xlu0 %v1064, 32
        %v2094 = vpop.permute.xlu0 %2093
        %2095 = vrot.lane.b32.xlu0 %v1066, 32
        %v2096 = vpop.permute.xlu0 %2095
        %v2101 = vrot.slane %v2078, 4
        %v2102 = vsel %vm1109, %v2101, %v1059
        %v2103 = vrot.slane %v1059, 4
        %v2104 = vsel %vm1109, %v2078, %v2103
        %v2106 = vunpack.c.l.s4 1983009808
        %v2107 = vunpack.c.0.s8 %v2106
        %v2108 = vperm.slane %v2102, %v2107
        %v2110 = vunpack.c.l.s4 1983009808
        %v2111 = vunpack.c.0.s8 %v2110
        %v2112 = vperm.slane %v2104, %v2111
        %v2113 = vrot.slane %v2090, 4
        %v2114 = vsel %vm1109, %v2113, %v2066
        %v2115 = vrot.slane %v2066, 4
        %v2116 = vsel %vm1109, %v2090, %v2115
        %v2118 = vunpack.c.l.s4 1983009808
        %v2119 = vunpack.c.0.s8 %v2118
        %v2120 = vperm.slane %v2114, %v2119
        %v2122 = vunpack.c.l.s4 1983009808
        %v2123 = vunpack.c.0.s8 %v2122
        %v2124 = vperm.slane %v2116, %v2123
        %v2125 = vrot.slane %v2120, 4
        %v2126 = vsel %vm1109, %v2125, %v2108
        %v2127 = vrot.slane %v2108, 4
        %v2128 = vsel %vm1109, %v2120, %v2127
        %v2130 = vunpack.c.l.s4 1934713408
        %v2131 = vunpack.c.0.s8 %v2130
        %v2132 = vperm.slane %v2126, %v2131
        %v2134 = vunpack.c.l.s4 1934713408
        %v2135 = vunpack.c.0.s8 %v2134
        %v2136 = vperm.slane %v2128, %v2135
        %v2137 = vrot.slane %v2124, 4
        %v2138 = vsel %vm1109, %v2137, %v2112
        %v2139 = vrot.slane %v2112, 4
        %v2140 = vsel %vm1109, %v2124, %v2139
        %v2142 = vunpack.c.l.s4 1934713408
        %v2143 = vunpack.c.0.s8 %v2142
        %v2144 = vperm.slane %v2138, %v2143
        %v2146 = vunpack.c.l.s4 1934713408
        %v2147 = vunpack.c.0.s8 %v2146
        %v2148 = vperm.slane %v2140, %v2147
        %v2149 = vrot.slane %v2132, 4
        %v2150 = vsel %vm1109, 0.0, %v2149
        %v2151 = vrot.slane %v2136, 4
        %v2152 = vsel %vm1109, 0.0, %v2151
        %v2153 = vrot.slane %v2144, 4
        %v2154 = vsel %vm1109, 0.0, %v2153
        %v2155 = vrot.slane %v2148, 4
        %v2156 = vsel %vm1109, 0.0, %v2155
        %v2157 = vrot.slane %v2080, 4
        %v2158 = vsel %vm1109, %v2157, %v1061
        %v2159 = vrot.slane %v1061, 4
        %v2160 = vsel %vm1109, %v2080, %v2159
        %v2162 = vunpack.c.l.s4 1983009808
        %v2163 = vunpack.c.0.s8 %v2162
        %v2164 = vperm.slane %v2158, %v2163
        %v2166 = vunpack.c.l.s4 1983009808
        %v2167 = vunpack.c.0.s8 %v2166
        %v2168 = vperm.slane %v2160, %v2167
        %v2169 = vrot.slane %v2092, 4
        %v2170 = vsel %vm1109, %v2169, %v2068
        %v2171 = vrot.slane %v2068, 4
        %v2172 = vsel %vm1109, %v2092, %v2171
        %v2174 = vunpack.c.l.s4 1983009808
        %v2175 = vunpack.c.0.s8 %v2174
        %v2176 = vperm.slane %v2170, %v2175
        %v2178 = vunpack.c.l.s4 1983009808
        %v2179 = vunpack.c.0.s8 %v2178
        %v2180 = vperm.slane %v2172, %v2179
        %v2181 = vrot.slane %v2176, 4
        %v2182 = vsel %vm1109, %v2181, %v2164
        %v2183 = vrot.slane %v2164, 4
        %v2184 = vsel %vm1109, %v2176, %v2183
        %v2186 = vunpack.c.l.s4 1934713408
        %v2187 = vunpack.c.0.s8 %v2186
        %v2188 = vperm.slane %v2182, %v2187
        %v2190 = vunpack.c.l.s4 1934713408
        %v2191 = vunpack.c.0.s8 %v2190
        %v2192 = vperm.slane %v2184, %v2191
        %v2193 = vrot.slane %v2180, 4
        %v2194 = vsel %vm1109, %v2193, %v2168
        %v2195 = vrot.slane %v2168, 4
        %v2196 = vsel %vm1109, %v2180, %v2195
        %v2198 = vunpack.c.l.s4 1934713408
        %v2199 = vunpack.c.0.s8 %v2198
        %v2200 = vperm.slane %v2194, %v2199
        %v2202 = vunpack.c.l.s4 1934713408
        %v2203 = vunpack.c.0.s8 %v2202
        %v2204 = vperm.slane %v2196, %v2203
        %v2205 = vrot.slane %v2188, 4
        %v2206 = vsel %vm1109, 0.0, %v2205
        %v2207 = vrot.slane %v2192, 4
        %v2208 = vsel %vm1109, 0.0, %v2207
        %v2209 = vrot.slane %v2200, 4
        %v2210 = vsel %vm1109, 0.0, %v2209
        %v2211 = vrot.slane %v2204, 4
        %v2212 = vsel %vm1109, 0.0, %v2211
        %v2213 = vrot.slane %v2082, 4
        %v2214 = vsel %vm1109, %v2213, %v1064
        %v2215 = vrot.slane %v1064, 4
        %v2216 = vsel %vm1109, %v2082, %v2215
        %v2218 = vunpack.c.l.s4 1983009808
        %v2219 = vunpack.c.0.s8 %v2218
        %v2220 = vperm.slane %v2214, %v2219
        %v2222 = vunpack.c.l.s4 1983009808
        %v2223 = vunpack.c.0.s8 %v2222
        %v2224 = vperm.slane %v2216, %v2223
        %v2225 = vrot.slane %v2094, 4
        %v2226 = vsel %vm1109, %v2225, %v2070
        %v2227 = vrot.slane %v2070, 4
        %v2228 = vsel %vm1109, %v2094, %v2227
        %v2230 = vunpack.c.l.s4 1983009808
        %v2231 = vunpack.c.0.s8 %v2230
        %v2232 = vperm.slane %v2226, %v2231
        %v2234 = vunpack.c.l.s4 1983009808
        %v2235 = vunpack.c.0.s8 %v2234
        %v2236 = vperm.slane %v2228, %v2235
        %v2237 = vrot.slane %v2232, 4
        %v2238 = vsel %vm1109, %v2237, %v2220
        %v2239 = vrot.slane %v2220, 4
        %v2240 = vsel %vm1109, %v2232, %v2239
        %v2242 = vunpack.c.l.s4 1934713408
        %v2243 = vunpack.c.0.s8 %v2242
        %v2244 = vperm.slane %v2238, %v2243
        %v2246 = vunpack.c.l.s4 1934713408
        %v2247 = vunpack.c.0.s8 %v2246
        %v2248 = vperm.slane %v2240, %v2247
        %v2249 = vrot.slane %v2236, 4
        %v2250 = vsel %vm1109, %v2249, %v2224
        %v2251 = vrot.slane %v2224, 4
        %v2252 = vsel %vm1109, %v2236, %v2251
        %v2254 = vunpack.c.l.s4 1934713408
        %v2255 = vunpack.c.0.s8 %v2254
        %v2256 = vperm.slane %v2250, %v2255
        %v2258 = vunpack.c.l.s4 1934713408
        %v2259 = vunpack.c.0.s8 %v2258
        %v2260 = vperm.slane %v2252, %v2259
        %v2261 = vrot.slane %v2244, 4
        %v2262 = vsel %vm1109, 0.0, %v2261
        %v2263 = vrot.slane %v2248, 4
        %v2264 = vsel %vm1109, 0.0, %v2263
        %v2265 = vrot.slane %v2256, 4
        %v2266 = vsel %vm1109, 0.0, %v2265
        %v2267 = vrot.slane %v2260, 4
        %v2268 = vsel %vm1109, 0.0, %v2267
        %v2269 = vrot.slane %v2084, 4
        %v2270 = vsel %vm1109, %v2269, %v1066
        %v2271 = vrot.slane %v1066, 4
        %v2272 = vsel %vm1109, %v2084, %v2271
        %v2274 = vunpack.c.l.s4 1983009808
        %v2275 = vunpack.c.0.s8 %v2274
        %v2276 = vperm.slane %v2270, %v2275
        %v2278 = vunpack.c.l.s4 1983009808
        %v2279 = vunpack.c.0.s8 %v2278
        %v2280 = vperm.slane %v2272, %v2279
        %v2281 = vrot.slane %v2096, 4
        %v2282 = vsel %vm1109, %v2281, %v2072
        %v2283 = vrot.slane %v2072, 4
        %v2284 = vsel %vm1109, %v2096, %v2283
        %v2286 = vunpack.c.l.s4 1983009808
        %v2287 = vunpack.c.0.s8 %v2286
        %v2288 = vperm.slane %v2282, %v2287
        %v2290 = vunpack.c.l.s4 1983009808
        %v2291 = vunpack.c.0.s8 %v2290
        %v2292 = vperm.slane %v2284, %v2291
        %v2293 = vrot.slane %v2288, 4
        %v2294 = vsel %vm1109, %v2293, %v2276
        %v2295 = vrot.slane %v2276, 4
        %v2296 = vsel %vm1109, %v2288, %v2295
        %v2298 = vunpack.c.l.s4 1934713408
        %v2299 = vunpack.c.0.s8 %v2298
        %v2300 = vperm.slane %v2294, %v2299
        %v2302 = vunpack.c.l.s4 1934713408
        %v2303 = vunpack.c.0.s8 %v2302
        %v2304 = vperm.slane %v2296, %v2303
        %v2305 = vrot.slane %v2292, 4
        %v2306 = vsel %vm1109, %v2305, %v2280
        %v2307 = vrot.slane %v2280, 4
        %v2308 = vsel %vm1109, %v2292, %v2307
        %v2310 = vunpack.c.l.s4 1934713408
        %v2311 = vunpack.c.0.s8 %v2310
        %v2312 = vperm.slane %v2306, %v2311
        %v2314 = vunpack.c.l.s4 1934713408
        %v2315 = vunpack.c.0.s8 %v2314
        %v2316 = vperm.slane %v2308, %v2315
        %v2317 = vrot.slane %v2300, 4
        %v2318 = vsel %vm1109, 0.0, %v2317
        %v2319 = vrot.slane %v2304, 4
        %v2320 = vsel %vm1109, 0.0, %v2319
        %v2321 = vrot.slane %v2312, 4
        %v2322 = vsel %vm1109, 0.0, %v2321
        %v2323 = vrot.slane %v2316, 4
        %v2324 = vsel %vm1109, 0.0, %v2323
        %v2325 = vsel %vm1109, %v2151, %v2132
        %v2327 = vunpack.c.l.s4 1983009808
        %v2328 = vunpack.c.0.s8 %v2327
        %v2329 = vperm.slane %v2325, %v2328
        %v2330 = vrot.slane %v2152, 4
        %v2331 = vsel %vm1109, %v2330, %v2150
        %v2333 = vunpack.c.l.s4 1983009808
        %v2334 = vunpack.c.0.s8 %v2333
        %v2335 = vperm.slane %v2331, %v2334
        %v2336 = vsel %vm1109, %v2155, %v2144
        %v2338 = vunpack.c.l.s4 1983009808
        %v2339 = vunpack.c.0.s8 %v2338
        %v2340 = vperm.slane %v2336, %v2339
        %v2341 = vrot.slane %v2156, 4
        %v2342 = vsel %vm1109, %v2341, %v2154
        %v2344 = vunpack.c.l.s4 1983009808
        %v2345 = vunpack.c.0.s8 %v2344
        %v2346 = vperm.slane %v2342, %v2345
        %v2347 = vrot.slane %v2335, 4
        %v2348 = vsel %vm1109, %v2347, %v2329
        %v2349 = vrot.slane %v2329, 4
        %v2350 = vsel %vm1109, %v2335, %v2349
        %v2352 = vunpack.c.l.s4 1934713408
        %v2353 = vunpack.c.0.s8 %v2352
        %v2354 = vperm.slane %v2348, %v2353
        %v2356 = vunpack.c.l.s4 1934713408
        %v2357 = vunpack.c.0.s8 %v2356
        %v2358 = vperm.slane %v2350, %v2357
        %v2359 = vrot.slane %v2346, 4
        %v2360 = vsel %vm1109, %v2359, %v2340
        %v2361 = vrot.slane %v2340, 4
        %v2362 = vsel %vm1109, %v2346, %v2361
        %v2364 = vunpack.c.l.s4 1934713408
        %v2365 = vunpack.c.0.s8 %v2364
        %v2366 = vperm.slane %v2360, %v2365
        %v2368 = vunpack.c.l.s4 1934713408
        %v2369 = vunpack.c.0.s8 %v2368
        %v2370 = vperm.slane %v2362, %v2369
        %v2371 = vrot.slane %v2366, 4
        %v2372 = vsel %vm1109, %v2371, %v2354
        %v2373 = vrot.slane %v2354, 4
        %v2374 = vsel %vm1109, %v2366, %v2373
        %v2375 = vrot.slane %v2370, 4
        %v2376 = vsel %vm1109, %v2375, %v2358
        %v2377 = vrot.slane %v2358, 4
        %v2378 = vsel %vm1109, %v2370, %v2377
        %v2379 = vsel %vm1109, %v2207, %v2188
        %v2381 = vunpack.c.l.s4 1983009808
        %v2382 = vunpack.c.0.s8 %v2381
        %v2383 = vperm.slane %v2379, %v2382
        %v2384 = vrot.slane %v2208, 4
        %v2385 = vsel %vm1109, %v2384, %v2206
        %v2387 = vunpack.c.l.s4 1983009808
        %v2388 = vunpack.c.0.s8 %v2387
        %v2389 = vperm.slane %v2385, %v2388
        %v2390 = vsel %vm1109, %v2211, %v2200
        %v2392 = vunpack.c.l.s4 1983009808
        %v2393 = vunpack.c.0.s8 %v2392
        %v2394 = vperm.slane %v2390, %v2393
        %v2395 = vrot.slane %v2212, 4
        %v2396 = vsel %vm1109, %v2395, %v2210
        %v2398 = vunpack.c.l.s4 1983009808
        %v2399 = vunpack.c.0.s8 %v2398
        %v2400 = vperm.slane %v2396, %v2399
        %v2401 = vrot.slane %v2389, 4
        %v2402 = vsel %vm1109, %v2401, %v2383
        %v2403 = vrot.slane %v2383, 4
        %v2404 = vsel %vm1109, %v2389, %v2403
        %v2406 = vunpack.c.l.s4 1934713408
        %v2407 = vunpack.c.0.s8 %v2406
        %v2408 = vperm.slane %v2402, %v2407
        %v2410 = vunpack.c.l.s4 1934713408
        %v2411 = vunpack.c.0.s8 %v2410
        %v2412 = vperm.slane %v2404, %v2411
        %v2413 = vrot.slane %v2400, 4
        %v2414 = vsel %vm1109, %v2413, %v2394
        %v2415 = vrot.slane %v2394, 4
        %v2416 = vsel %vm1109, %v2400, %v2415
        %v2418 = vunpack.c.l.s4 1934713408
        %v2419 = vunpack.c.0.s8 %v2418
        %v2420 = vperm.slane %v2414, %v2419
        %v2422 = vunpack.c.l.s4 1934713408
        %v2423 = vunpack.c.0.s8 %v2422
        %v2424 = vperm.slane %v2416, %v2423
        %v2425 = vrot.slane %v2420, 4
        %v2426 = vsel %vm1109, %v2425, %v2408
        %v2427 = vrot.slane %v2408, 4
        %v2428 = vsel %vm1109, %v2420, %v2427
        %v2429 = vrot.slane %v2424, 4
        %v2430 = vsel %vm1109, %v2429, %v2412
        %v2431 = vrot.slane %v2412, 4
        %v2432 = vsel %vm1109, %v2424, %v2431
        %v2433 = vsel %vm1109, %v2263, %v2244
        %v2435 = vunpack.c.l.s4 1983009808
        %v2436 = vunpack.c.0.s8 %v2435
        %v2437 = vperm.slane %v2433, %v2436
        %v2438 = vrot.slane %v2264, 4
        %v2439 = vsel %vm1109, %v2438, %v2262
        %v2441 = vunpack.c.l.s4 1983009808
        %v2442 = vunpack.c.0.s8 %v2441
        %v2443 = vperm.slane %v2439, %v2442
        %v2444 = vsel %vm1109, %v2267, %v2256
        %v2446 = vunpack.c.l.s4 1983009808
        %v2447 = vunpack.c.0.s8 %v2446
        %v2448 = vperm.slane %v2444, %v2447
        %v2449 = vrot.slane %v2268, 4
        %v2450 = vsel %vm1109, %v2449, %v2266
        %v2452 = vunpack.c.l.s4 1983009808
        %v2453 = vunpack.c.0.s8 %v2452
        %v2454 = vperm.slane %v2450, %v2453
        %v2455 = vrot.slane %v2443, 4
        %v2456 = vsel %vm1109, %v2455, %v2437
        %v2457 = vrot.slane %v2437, 4
        %v2458 = vsel %vm1109, %v2443, %v2457
        %v2460 = vunpack.c.l.s4 1934713408
        %v2461 = vunpack.c.0.s8 %v2460
        %v2462 = vperm.slane %v2456, %v2461
        %v2464 = vunpack.c.l.s4 1934713408
        %v2465 = vunpack.c.0.s8 %v2464
        %v2466 = vperm.slane %v2458, %v2465
        %v2467 = vrot.slane %v2454, 4
        %v2468 = vsel %vm1109, %v2467, %v2448
        %v2469 = vrot.slane %v2448, 4
        %v2470 = vsel %vm1109, %v2454, %v2469
        %v2472 = vunpack.c.l.s4 1934713408
        %v2473 = vunpack.c.0.s8 %v2472
        %v2474 = vperm.slane %v2468, %v2473
        %v2476 = vunpack.c.l.s4 1934713408
        %v2477 = vunpack.c.0.s8 %v2476
        %v2478 = vperm.slane %v2470, %v2477
        %v2479 = vrot.slane %v2474, 4
        %v2480 = vsel %vm1109, %v2479, %v2462
        %v2481 = vrot.slane %v2462, 4
        %v2482 = vsel %vm1109, %v2474, %v2481
        %v2483 = vrot.slane %v2478, 4
        %v2484 = vsel %vm1109, %v2483, %v2466
        %v2485 = vrot.slane %v2466, 4
        %v2486 = vsel %vm1109, %v2478, %v2485
        %v2487 = vsel %vm1109, %v2319, %v2300
        %v2489 = vunpack.c.l.s4 1983009808
        %v2490 = vunpack.c.0.s8 %v2489
        %v2491 = vperm.slane %v2487, %v2490
        %v2492 = vrot.slane %v2320, 4
        %v2493 = vsel %vm1109, %v2492, %v2318
        %v2495 = vunpack.c.l.s4 1983009808
        %v2496 = vunpack.c.0.s8 %v2495
        %v2497 = vperm.slane %v2493, %v2496
        %v2498 = vsel %vm1109, %v2323, %v2312
        %v2500 = vunpack.c.l.s4 1983009808
        %v2501 = vunpack.c.0.s8 %v2500
        %v2502 = vperm.slane %v2498, %v2501
        %v2503 = vrot.slane %v2324, 4
        %v2504 = vsel %vm1109, %v2503, %v2322
        %v2506 = vunpack.c.l.s4 1983009808
        %v2507 = vunpack.c.0.s8 %v2506
        %v2508 = vperm.slane %v2504, %v2507
        %v2509 = vrot.slane %v2497, 4
        %v2510 = vsel %vm1109, %v2509, %v2491
        %v2511 = vrot.slane %v2491, 4
        %v2512 = vsel %vm1109, %v2497, %v2511
        %v2514 = vunpack.c.l.s4 1934713408
        %v2515 = vunpack.c.0.s8 %v2514
        %v2516 = vperm.slane %v2510, %v2515
        %v2518 = vunpack.c.l.s4 1934713408
        %v2519 = vunpack.c.0.s8 %v2518
        %v2520 = vperm.slane %v2512, %v2519
        %v2521 = vrot.slane %v2508, 4
        %v2522 = vsel %vm1109, %v2521, %v2502
        %v2523 = vrot.slane %v2502, 4
        %v2524 = vsel %vm1109, %v2508, %v2523
        %v2526 = vunpack.c.l.s4 1934713408
        %v2527 = vunpack.c.0.s8 %v2526
        %v2528 = vperm.slane %v2522, %v2527
        %v2530 = vunpack.c.l.s4 1934713408
        %v2531 = vunpack.c.0.s8 %v2530
        %v2532 = vperm.slane %v2524, %v2531
        %v2533 = vrot.slane %v2528, 4
        %v2534 = vsel %vm1109, %v2533, %v2516
        %v2535 = vrot.slane %v2516, 4
        %v2536 = vsel %vm1109, %v2528, %v2535
        %v2537 = vrot.slane %v2532, 4
        %v2538 = vsel %vm1109, %v2537, %v2520
        %v2539 = vrot.slane %v2520, 4
        %v2540 = vsel %vm1109, %v2532, %v2539
        %v2541 = vpack.c.bf16 %v2372, %v2372
        %v2542 = vpack.c.bf16 %v2426, %v2426
        %v2543 = vpack.c.bf16 %v2480, %v2480
        %v2544 = vpack.c.bf16 %v2534, %v2534
        %v2545 = vpack.c.bf16 %v2374, %v2374
        %v2546 = vpack.c.bf16 %v2428, %v2428
        %v2547 = vpack.c.bf16 %v2482, %v2482
        %v2548 = vpack.c.bf16 %v2536, %v2536
        %v2549 = vpack.c.bf16 %v2376, %v2376
        %v2550 = vpack.c.bf16 %v2430, %v2430
        %v2551 = vpack.c.bf16 %v2484, %v2484
        %v2552 = vpack.c.bf16 %v2538, %v2538
        %v2553 = vpack.c.bf16 %v2378, %v2378
        %v2554 = vpack.c.bf16 %v2432, %v2432
        %v2555 = vpack.c.bf16 %v2486, %v2486
        %v2556 = vpack.c.bf16 %v2540, %v2540
        %v2561 = vunpack.c.l.b16 %v1549
        %v2562 = vunpack.c.l.b16 %v1550
        %v2563 = vunpack.c.l.b16 %v1551
        %v2564 = vunpack.c.l.b16 %v1552
        %v2565 = vpack.c.b16 %v2562, %v2561
        %v2566 = vpack.c.b16 %v2564, %v2563
        %v2571 = vunpack.c.l.b16 %v2045
        %v2572 = vunpack.c.l.b16 %v2046
        %v2573 = vunpack.c.l.b16 %v2047
        %v2574 = vunpack.c.l.b16 %v2048
        %v2575 = vpack.c.b16 %v2572, %v2571
        %v2576 = vpack.c.b16 %v2574, %v2573
        %vm2577 = vcmask 261120
        %v2579 = vsel %vm2577, %v2565, 0
        %v2582 = vsel %vm2577, %v2566, 0
        %v2585 = vsel %vm2577, %v2575, 0
        %v2588 = vsel %vm2577, %v2576, 0
        %2590 = vmatpush.bf16.xpose.msra.mxu0 0
        %2591 = vmatpush.bf16.xpose.msra.mxu0 0
        %2592 = vmatpush.bf16.xpose.msra.mxu0 0
        %2593 = vmatpush.bf16.xpose.msra.mxu0 0
        %2594 = vmatpush.bf16.xpose.msra.mxu0 0
        %2595 = vmatpush.bf16.xpose.msra.mxu0 0
        %2596 = vmatpush.bf16.xpose.msra.mxu0 %v2588
        %2597 = vmatpush.bf16.xpose.msra.mxu0 %v2585
        %2598 = vmatmul.bf16.gmra.mxu0 %v2579
        %v2599 = vpop.f32.mrf.mxu0
        %v2600 = vadd.f32 0.0, %v2599
        %v2601 = vpop.f32.mrf.mxu0
        %v2602 = vadd.f32 0.0, %v2601
        %2603 = vmatmul.bf16.gmra.mxu0 %v2582
        %v2604 = vpop.f32.mrf.mxu0
        %v2605 = vadd.f32 0.0, %v2604
        %v2606 = vpop.f32.mrf.mxu0
        %v2607 = vadd.f32 0.0, %v2606
        %2608 = vdwg.mxu0
        %v2613 = vunpack.c.l.b16 %v1553
        %v2614 = vunpack.c.l.b16 %v1554
        %v2615 = vunpack.c.l.b16 %v1555
        %v2616 = vunpack.c.l.b16 %v1556
        %v2617 = vpack.c.b16 %v2614, %v2613
        %v2618 = vpack.c.b16 %v2616, %v2615
        %v2623 = vunpack.c.l.b16 %v2049
        %v2624 = vunpack.c.l.b16 %v2050
        %v2625 = vunpack.c.l.b16 %v2051
        %v2626 = vunpack.c.l.b16 %v2052
        %v2627 = vpack.c.b16 %v2624, %v2623
        %v2628 = vpack.c.b16 %v2626, %v2625
        %v2630 = vsel %vm2577, %v2617, 0
        %v2633 = vsel %vm2577, %v2618, 0
        %v2636 = vsel %vm2577, %v2627, 0
        %v2639 = vsel %vm2577, %v2628, 0
        %2641 = vmatpush.bf16.xpose.msra.mxu0 0
        %2642 = vmatpush.bf16.xpose.msra.mxu0 0
        %2643 = vmatpush.bf16.xpose.msra.mxu0 0
        %2644 = vmatpush.bf16.xpose.msra.mxu0 0
        %2645 = vmatpush.bf16.xpose.msra.mxu0 0
        %2646 = vmatpush.bf16.xpose.msra.mxu0 0
        %2647 = vmatpush.bf16.xpose.msra.mxu0 %v2639
        %2648 = vmatpush.bf16.xpose.msra.mxu0 %v2636
        %2649 = vmatmul.bf16.gmra.mxu0 %v2630
        %v2650 = vpop.f32.mrf.mxu0
        %v2651 = vadd.f32 0.0, %v2650
        %v2652 = vpop.f32.mrf.mxu0
        %v2653 = vadd.f32 0.0, %v2652
        %2654 = vmatmul.bf16.gmra.mxu0 %v2633
        %v2655 = vpop.f32.mrf.mxu0
        %v2656 = vadd.f32 0.0, %v2655
        %v2657 = vpop.f32.mrf.mxu0
        %v2658 = vadd.f32 0.0, %v2657
        %2659 = vdwg.mxu0
        %v2664 = vunpack.c.l.b16 %v1557
        %v2665 = vunpack.c.l.b16 %v1558
        %v2666 = vunpack.c.l.b16 %v1559
        %v2667 = vunpack.c.l.b16 %v1560
        %v2668 = vpack.c.b16 %v2665, %v2664
        %v2669 = vpack.c.b16 %v2667, %v2666
        %v2674 = vunpack.c.l.b16 %v2053
        %v2675 = vunpack.c.l.b16 %v2054
        %v2676 = vunpack.c.l.b16 %v2055
        %v2677 = vunpack.c.l.b16 %v2056
        %v2678 = vpack.c.b16 %v2675, %v2674
        %v2679 = vpack.c.b16 %v2677, %v2676
        %v2681 = vsel %vm2577, %v2668, 0
        %v2684 = vsel %vm2577, %v2669, 0
        %v2687 = vsel %vm2577, %v2678, 0
        %v2690 = vsel %vm2577, %v2679, 0
        %2692 = vmatpush.bf16.xpose.msra.mxu0 0
        %2693 = vmatpush.bf16.xpose.msra.mxu0 0
        %2694 = vmatpush.bf16.xpose.msra.mxu0 0
        %2695 = vmatpush.bf16.xpose.msra.mxu0 0
        %2696 = vmatpush.bf16.xpose.msra.mxu0 0
        %2697 = vmatpush.bf16.xpose.msra.mxu0 0
        %2698 = vmatpush.bf16.xpose.msra.mxu0 %v2690
        %2699 = vmatpush.bf16.xpose.msra.mxu0 %v2687
        %2700 = vmatmul.bf16.gmra.mxu0 %v2681
        %v2701 = vpop.f32.mrf.mxu0
        %v2702 = vadd.f32 0.0, %v2701
        %v2703 = vpop.f32.mrf.mxu0
        %v2704 = vadd.f32 0.0, %v2703
        %2705 = vmatmul.bf16.gmra.mxu0 %v2684
        %v2706 = vpop.f32.mrf.mxu0
        %v2707 = vadd.f32 0.0, %v2706
        %v2708 = vpop.f32.mrf.mxu0
        %v2709 = vadd.f32 0.0, %v2708
        %2710 = vdwg.mxu0
        %v2715 = vunpack.c.l.b16 %v1561
        %v2716 = vunpack.c.l.b16 %v1562
        %v2717 = vunpack.c.l.b16 %v1563
        %v2718 = vunpack.c.l.b16 %v1564
        %v2719 = vpack.c.b16 %v2716, %v2715
        %v2720 = vpack.c.b16 %v2718, %v2717
        %v2725 = vunpack.c.l.b16 %v2057
        %v2726 = vunpack.c.l.b16 %v2058
        %v2727 = vunpack.c.l.b16 %v2059
        %v2728 = vunpack.c.l.b16 %v2060
        %v2729 = vpack.c.b16 %v2726, %v2725
        %v2730 = vpack.c.b16 %v2728, %v2727
        %v2732 = vsel %vm2577, %v2719, 0
        %v2735 = vsel %vm2577, %v2720, 0
        %v2738 = vsel %vm2577, %v2729, 0
        %v2741 = vsel %vm2577, %v2730, 0
        %2743 = vmatpush.bf16.xpose.msra.mxu0 0
        %2744 = vmatpush.bf16.xpose.msra.mxu0 0
        %2745 = vmatpush.bf16.xpose.msra.mxu0 0
        %2746 = vmatpush.bf16.xpose.msra.mxu0 0
        %2747 = vmatpush.bf16.xpose.msra.mxu0 0
        %2748 = vmatpush.bf16.xpose.msra.mxu0 0
        %2749 = vmatpush.bf16.xpose.msra.mxu0 %v2741
        %2750 = vmatpush.bf16.xpose.msra.mxu0 %v2738
        %2751 = vmatmul.bf16.gmra.mxu0 %v2732
        %v2752 = vpop.f32.mrf.mxu0
        %v2753 = vadd.f32 0.0, %v2752
        %v2754 = vpop.f32.mrf.mxu0
        %v2755 = vadd.f32 0.0, %v2754
        %2756 = vmatmul.bf16.gmra.mxu0 %v2735
        %v2757 = vpop.f32.mrf.mxu0
        %v2758 = vadd.f32 0.0, %v2757
        %v2759 = vpop.f32.mrf.mxu0
        %v2760 = vadd.f32 0.0, %v2759
        %2761 = vdwg.mxu0
        %v2762 = vsel %vm2577, %v2600, -inf
        %2763 = vmax.xlane.f32.xlu0 %v2762
        %v2764 = vpop.xlane.xlu0 %2763
        %v2765 = vsel %vm2577, %v2602, -inf
        %2766 = vmax.xlane.f32.xlu0 %v2765
        %v2767 = vpop.xlane.xlu0 %2766
        %v2768 = vsel %vm2577, %v2605, -inf
        %2769 = vmax.xlane.f32.xlu0 %v2768
        %v2770 = vpop.xlane.xlu0 %2769
        %v2771 = vsel %vm2577, %v2607, -inf
        %2772 = vmax.xlane.f32.xlu0 %v2771
        %v2773 = vpop.xlane.xlu0 %2772
        %v2774 = vsel %vm2577, %v2651, -inf
        %2775 = vmax.xlane.f32.xlu0 %v2774
        %v2776 = vpop.xlane.xlu0 %2775
        %v2777 = vsel %vm2577, %v2653, -inf
        %2778 = vmax.xlane.f32.xlu0 %v2777
        %v2779 = vpop.xlane.xlu0 %2778
        %v2780 = vsel %vm2577, %v2656, -inf
        %2781 = vmax.xlane.f32.xlu0 %v2780
        %v2782 = vpop.xlane.xlu0 %2781
        %v2783 = vsel %vm2577, %v2658, -inf
        %2784 = vmax.xlane.f32.xlu0 %v2783
        %v2785 = vpop.xlane.xlu0 %2784
        %v2786 = vsel %vm2577, %v2702, -inf
        %2787 = vmax.xlane.f32.xlu0 %v2786
        %v2788 = vpop.xlane.xlu0 %2787
        %v2789 = vsel %vm2577, %v2704, -inf
        %2790 = vmax.xlane.f32.xlu0 %v2789
        %v2791 = vpop.xlane.xlu0 %2790
        %v2792 = vsel %vm2577, %v2707, -inf
        %2793 = vmax.xlane.f32.xlu0 %v2792
        %v2794 = vpop.xlane.xlu0 %2793
        %v2795 = vsel %vm2577, %v2709, -inf
        %2796 = vmax.xlane.f32.xlu0 %v2795
        %v2797 = vpop.xlane.xlu0 %2796
        %v2798 = vsel %vm2577, %v2753, -inf
        %2799 = vmax.xlane.f32.xlu0 %v2798
        %v2800 = vpop.xlane.xlu0 %2799
        %v2801 = vsel %vm2577, %v2755, -inf
        %2802 = vmax.xlane.f32.xlu0 %v2801
        %v2803 = vpop.xlane.xlu0 %2802
        %v2804 = vsel %vm2577, %v2758, -inf
        %2805 = vmax.xlane.f32.xlu0 %v2804
        %v2806 = vpop.xlane.xlu0 %2805
        %v2807 = vsel %vm2577, %v2760, -inf
        %2808 = vmax.xlane.f32.xlu0 %v2807
        %v2809 = vpop.xlane.xlu0 %2808
        %v2810 = vsub.f32 %v2600, %v2764
        %v2811 = vsub.f32 %v2602, %v2767
        %v2812 = vsub.f32 %v2605, %v2770
        %v2813 = vsub.f32 %v2607, %v2773
        %v2814 = vsub.f32 %v2651, %v2776
        %v2815 = vsub.f32 %v2653, %v2779
        %v2816 = vsub.f32 %v2656, %v2782
        %v2817 = vsub.f32 %v2658, %v2785
        %v2818 = vsub.f32 %v2702, %v2788
        %v2819 = vsub.f32 %v2704, %v2791
        %v2820 = vsub.f32 %v2707, %v2794
        %v2821 = vsub.f32 %v2709, %v2797
        %v2822 = vsub.f32 %v2753, %v2800
        %v2823 = vsub.f32 %v2755, %v2803
        %v2824 = vsub.f32 %v2758, %v2806
        %v2825 = vsub.f32 %v2760, %v2809
        %v2826 = vmul.f32 %v2810, 1.442695
        %v2827 = vpow.pop %v2826
        %v2828 = vmul.f32 %v2811, 1.442695
        %v2829 = vpow.pop %v2828
        %v2830 = vmul.f32 %v2812, 1.442695
        %v2831 = vpow.pop %v2830
        %v2832 = vmul.f32 %v2813, 1.442695
        %v2833 = vpow.pop %v2832
        %v2834 = vmul.f32 %v2814, 1.442695
        %v2835 = vpow.pop %v2834
        %v2836 = vmul.f32 %v2815, 1.442695
        %v2837 = vpow.pop %v2836
        %v2838 = vmul.f32 %v2816, 1.442695
        %v2839 = vpow.pop %v2838
        %v2840 = vmul.f32 %v2817, 1.442695
        %v2841 = vpow.pop %v2840
        %v2842 = vmul.f32 %v2818, 1.442695
        %v2843 = vpow.pop %v2842
        %v2844 = vmul.f32 %v2819, 1.442695
        %v2845 = vpow.pop %v2844
        %v2846 = vmul.f32 %v2820, 1.442695
        %v2847 = vpow.pop %v2846
        %v2848 = vmul.f32 %v2821, 1.442695
        %v2849 = vpow.pop %v2848
        %v2850 = vmul.f32 %v2822, 1.442695
        %v2851 = vpow.pop %v2850
        %v2852 = vmul.f32 %v2823, 1.442695
        %v2853 = vpow.pop %v2852
        %v2854 = vmul.f32 %v2824, 1.442695
        %v2855 = vpow.pop %v2854
        %v2856 = vmul.f32 %v2825, 1.442695
        %v2857 = vpow.pop %v2856
        %v2858 = vsel %vm2577, %v2827, 0.0
        %2859 = vadd.xlane.f32.xlu0 %v2858
        %v2860 = vpop.xlane.xlu0 %2859
        %v2861 = vsel %vm2577, %v2829, 0.0
        %2862 = vadd.xlane.f32.xlu0 %v2861
        %v2863 = vpop.xlane.xlu0 %2862
        %v2864 = vsel %vm2577, %v2831, 0.0
        %2865 = vadd.xlane.f32.xlu0 %v2864
        %v2866 = vpop.xlane.xlu0 %2865
        %v2867 = vsel %vm2577, %v2833, 0.0
        %2868 = vadd.xlane.f32.xlu0 %v2867
        %v2869 = vpop.xlane.xlu0 %2868
        %v2870 = vsel %vm2577, %v2835, 0.0
        %2871 = vadd.xlane.f32.xlu0 %v2870
        %v2872 = vpop.xlane.xlu0 %2871
        %v2873 = vsel %vm2577, %v2837, 0.0
        %2874 = vadd.xlane.f32.xlu0 %v2873
        %v2875 = vpop.xlane.xlu0 %2874
        %v2876 = vsel %vm2577, %v2839, 0.0
        %2877 = vadd.xlane.f32.xlu0 %v2876
        %v2878 = vpop.xlane.xlu0 %2877
        %v2879 = vsel %vm2577, %v2841, 0.0
        %2880 = vadd.xlane.f32.xlu0 %v2879
        %v2881 = vpop.xlane.xlu0 %2880
        %v2882 = vsel %vm2577, %v2843, 0.0
        %2883 = vadd.xlane.f32.xlu0 %v2882
        %v2884 = vpop.xlane.xlu0 %2883
        %v2885 = vsel %vm2577, %v2845, 0.0
        %2886 = vadd.xlane.f32.xlu0 %v2885
        %v2887 = vpop.xlane.xlu0 %2886
        %v2888 = vsel %vm2577, %v2847, 0.0
        %2889 = vadd.xlane.f32.xlu0 %v2888
        %v2890 = vpop.xlane.xlu0 %2889
        %v2891 = vsel %vm2577, %v2849, 0.0
        %2892 = vadd.xlane.f32.xlu0 %v2891
        %v2893 = vpop.xlane.xlu0 %2892
        %v2894 = vsel %vm2577, %v2851, 0.0
        %2895 = vadd.xlane.f32.xlu0 %v2894
        %v2896 = vpop.xlane.xlu0 %2895
        %v2897 = vsel %vm2577, %v2853, 0.0
        %2898 = vadd.xlane.f32.xlu0 %v2897
        %v2899 = vpop.xlane.xlu0 %2898
        %v2900 = vsel %vm2577, %v2855, 0.0
        %2901 = vadd.xlane.f32.xlu0 %v2900
        %v2902 = vpop.xlane.xlu0 %2901
        %v2903 = vsel %vm2577, %v2857, 0.0
        %2904 = vadd.xlane.f32.xlu0 %v2903
        %v2905 = vpop.xlane.xlu0 %2904
        %v2906 = vrcp.pop %v2860
        %v2907 = vrcp.pop %v2863
        %v2908 = vrcp.pop %v2866
        %v2909 = vrcp.pop %v2869
        %v2910 = vrcp.pop %v2872
        %v2911 = vrcp.pop %v2875
        %v2912 = vrcp.pop %v2878
        %v2913 = vrcp.pop %v2881
        %v2914 = vrcp.pop %v2884
        %v2915 = vrcp.pop %v2887
        %v2916 = vrcp.pop %v2890
        %v2917 = vrcp.pop %v2893
        %v2918 = vrcp.pop %v2896
        %v2919 = vrcp.pop %v2899
        %v2920 = vrcp.pop %v2902
        %v2921 = vrcp.pop %v2905
        %v2922 = vmul.f32 %v2827, %v2906
        %v2923 = vmul.f32 %v2829, %v2907
        %v2924 = vmul.f32 %v2831, %v2908
        %v2925 = vmul.f32 %v2833, %v2909
        %v2926 = vmul.f32 %v2835, %v2910
        %v2927 = vmul.f32 %v2837, %v2911
        %v2928 = vmul.f32 %v2839, %v2912
        %v2929 = vmul.f32 %v2841, %v2913
        %v2930 = vmul.f32 %v2843, %v2914
        %v2931 = vmul.f32 %v2845, %v2915
        %v2932 = vmul.f32 %v2847, %v2916
        %v2933 = vmul.f32 %v2849, %v2917
        %v2934 = vmul.f32 %v2851, %v2918
        %v2935 = vmul.f32 %v2853, %v2919
        %v2936 = vmul.f32 %v2855, %v2920
        %v2937 = vmul.f32 %v2857, %v2921
        %v2938 = vpack.c.bf16 %v2922, %v2922
        %v2939 = vpack.c.bf16 %v2923, %v2923
        %v2940 = vpack.c.bf16 %v2924, %v2924
        %v2941 = vpack.c.bf16 %v2925, %v2925
        %v2942 = vpack.c.bf16 %v2926, %v2926
        %v2943 = vpack.c.bf16 %v2927, %v2927
        %v2944 = vpack.c.bf16 %v2928, %v2928
        %v2945 = vpack.c.bf16 %v2929, %v2929
        %v2946 = vpack.c.bf16 %v2930, %v2930
        %v2947 = vpack.c.bf16 %v2931, %v2931
        %v2948 = vpack.c.bf16 %v2932, %v2932
        %v2949 = vpack.c.bf16 %v2933, %v2933
        %v2950 = vpack.c.bf16 %v2934, %v2934
        %v2951 = vpack.c.bf16 %v2935, %v2935
        %v2952 = vpack.c.bf16 %v2936, %v2936
        %v2953 = vpack.c.bf16 %v2937, %v2937
        %v2958 = vunpack.c.l.b16 %v2938
        %v2959 = vunpack.c.l.b16 %v2939
        %v2960 = vunpack.c.l.b16 %v2940
        %v2961 = vunpack.c.l.b16 %v2941
        %v2962 = vpack.c.b16 %v2959, %v2958
        %v2963 = vpack.c.b16 %v2961, %v2960
        %v2968 = vunpack.c.l.b16 %v2541
        %v2969 = vunpack.c.l.b16 %v2542
        %v2970 = vunpack.c.l.b16 %v2543
        %v2971 = vunpack.c.l.b16 %v2544
        %v2972 = vpack.c.b16 %v2969, %v2968
        %v2973 = vpack.c.b16 %v2971, %v2970
        %v2977 = vsel %vm2577, %v2962, 0
        %v2980 = vsel %vm2577, %v2963, 0
        %2982 = vmatpush.bf16.msra.mxu0 0
        %2983 = vmatpush.bf16.msra.mxu0 0
        %2984 = vmatpush.bf16.msra.mxu0 0
        %2985 = vmatpush.bf16.msra.mxu0 0
        %2986 = vmatpush.bf16.msra.mxu0 0
        %2987 = vmatpush.bf16.msra.mxu0 0
        %2988 = vmatpush.bf16.msra.mxu0 %v2973
        %2989 = vmatpush.bf16.msra.mxu0 %v2972
        %2990 = vmatmul.bf16.gmra.mxu0 %v2977
        %v2991 = vpop.f32.mrf.mxu0
        %v2992 = vadd.f32 0.0, %v2991
        %v2993 = vpop.f32.mrf.mxu0
        %v2994 = vadd.f32 0.0, %v2993
        %2995 = vmatmul.bf16.gmra.mxu0 %v2980
        %v2996 = vpop.f32.mrf.mxu0
        %v2997 = vadd.f32 0.0, %v2996
        %v2998 = vpop.f32.mrf.mxu0
        %v2999 = vadd.f32 0.0, %v2998
        %3000 = vdwg.mxu0
        %v3005 = vunpack.c.l.b16 %v2942
        %v3006 = vunpack.c.l.b16 %v2943
        %v3007 = vunpack.c.l.b16 %v2944
        %v3008 = vunpack.c.l.b16 %v2945
        %v3009 = vpack.c.b16 %v3006, %v3005
        %v3010 = vpack.c.b16 %v3008, %v3007
        %v3015 = vunpack.c.l.b16 %v2545
        %v3016 = vunpack.c.l.b16 %v2546
        %v3017 = vunpack.c.l.b16 %v2547
        %v3018 = vunpack.c.l.b16 %v2548
        %v3019 = vpack.c.b16 %v3016, %v3015
        %v3020 = vpack.c.b16 %v3018, %v3017
        %v3024 = vsel %vm2577, %v3009, 0
        %v3027 = vsel %vm2577, %v3010, 0
        %3029 = vmatpush.bf16.msra.mxu0 0
        %3030 = vmatpush.bf16.msra.mxu0 0
        %3031 = vmatpush.bf16.msra.mxu0 0
        %3032 = vmatpush.bf16.msra.mxu0 0
        %3033 = vmatpush.bf16.msra.mxu0 0
        %3034 = vmatpush.bf16.msra.mxu0 0
        %3035 = vmatpush.bf16.msra.mxu0 %v3020
        %3036 = vmatpush.bf16.msra.mxu0 %v3019
        %3037 = vmatmul.bf16.gmra.mxu0 %v3024
        %v3038 = vpop.f32.mrf.mxu0
        %v3039 = vadd.f32 0.0, %v3038
        %v3040 = vpop.f32.mrf.mxu0
        %v3041 = vadd.f32 0.0, %v3040
        %3042 = vmatmul.bf16.gmra.mxu0 %v3027
        %v3043 = vpop.f32.mrf.mxu0
        %v3044 = vadd.f32 0.0, %v3043
        %v3045 = vpop.f32.mrf.mxu0
        %v3046 = vadd.f32 0.0, %v3045
        %3047 = vdwg.mxu0
        %v3052 = vunpack.c.l.b16 %v2946
        %v3053 = vunpack.c.l.b16 %v2947
        %v3054 = vunpack.c.l.b16 %v2948
        %v3055 = vunpack.c.l.b16 %v2949
        %v3056 = vpack.c.b16 %v3053, %v3052
        %v3057 = vpack.c.b16 %v3055, %v3054
        %v3062 = vunpack.c.l.b16 %v2549
        %v3063 = vunpack.c.l.b16 %v2550
        %v3064 = vunpack.c.l.b16 %v2551
        %v3065 = vunpack.c.l.b16 %v2552
        %v3066 = vpack.c.b16 %v3063, %v3062
        %v3067 = vpack.c.b16 %v3065, %v3064
        %v3071 = vsel %vm2577, %v3056, 0
        %v3074 = vsel %vm2577, %v3057, 0
        %3076 = vmatpush.bf16.msra.mxu0 0
        %3077 = vmatpush.bf16.msra.mxu0 0
        %3078 = vmatpush.bf16.msra.mxu0 0
        %3079 = vmatpush.bf16.msra.mxu0 0
        %3080 = vmatpush.bf16.msra.mxu0 0
        %3081 = vmatpush.bf16.msra.mxu0 0
        %3082 = vmatpush.bf16.msra.mxu0 %v3067
        %3083 = vmatpush.bf16.msra.mxu0 %v3066
        %3084 = vmatmul.bf16.gmra.mxu0 %v3071
        %v3085 = vpop.f32.mrf.mxu0
        %v3086 = vadd.f32 0.0, %v3085
        %v3087 = vpop.f32.mrf.mxu0
        %v3088 = vadd.f32 0.0, %v3087
        %3089 = vmatmul.bf16.gmra.mxu0 %v3074
        %v3090 = vpop.f32.mrf.mxu0
        %v3091 = vadd.f32 0.0, %v3090
        %v3092 = vpop.f32.mrf.mxu0
        %v3093 = vadd.f32 0.0, %v3092
        %3094 = vdwg.mxu0
        %v3099 = vunpack.c.l.b16 %v2950
        %v3100 = vunpack.c.l.b16 %v2951
        %v3101 = vunpack.c.l.b16 %v2952
        %v3102 = vunpack.c.l.b16 %v2953
        %v3103 = vpack.c.b16 %v3100, %v3099
        %v3104 = vpack.c.b16 %v3102, %v3101
        %v3109 = vunpack.c.l.b16 %v2553
        %v3110 = vunpack.c.l.b16 %v2554
        %v3111 = vunpack.c.l.b16 %v2555
        %v3112 = vunpack.c.l.b16 %v2556
        %v3113 = vpack.c.b16 %v3110, %v3109
        %v3114 = vpack.c.b16 %v3112, %v3111
        %v3118 = vsel %vm2577, %v3103, 0
        %v3121 = vsel %vm2577, %v3104, 0
        %3123 = vmatpush.bf16.msra.mxu0 0
        %3124 = vmatpush.bf16.msra.mxu0 0
        %3125 = vmatpush.bf16.msra.mxu0 0
        %3126 = vmatpush.bf16.msra.mxu0 0
        %3127 = vmatpush.bf16.msra.mxu0 0
        %3128 = vmatpush.bf16.msra.mxu0 0
        %3129 = vmatpush.bf16.msra.mxu0 %v3114
        %3130 = vmatpush.bf16.msra.mxu0 %v3113
        %3131 = vmatmul.bf16.gmra.mxu0 %v3118
        %v3132 = vpop.f32.mrf.mxu0
        %v3133 = vadd.f32 0.0, %v3132
        %v3134 = vpop.f32.mrf.mxu0
        %v3135 = vadd.f32 0.0, %v3134
        %3136 = vmatmul.bf16.gmra.mxu0 %v3121
        %v3137 = vpop.f32.mrf.mxu0
        %v3138 = vadd.f32 0.0, %v3137
        %v3139 = vpop.f32.mrf.mxu0
        %v3140 = vadd.f32 0.0, %v3139
        %3141 = vdwg.mxu0
        %v3142 = vrot.slane %v3086, 4
        %v3143 = vsel %vm1109, %v3142, %v2992
        %v3144 = vrot.slane %v2992, 4
        %v3145 = vsel %vm1109, %v3086, %v3144
        %v3147 = vunpack.c.l.s4 1983009808
        %v3148 = vunpack.c.0.s8 %v3147
        %v3149 = vperm.slane %v3143, %v3148
        %v3151 = vunpack.c.l.s4 1983009808
        %v3152 = vunpack.c.0.s8 %v3151
        %v3153 = vperm.slane %v3145, %v3152
        %v3154 = vrot.slane %v3133, 4
        %v3155 = vsel %vm1109, %v3154, %v3039
        %v3156 = vrot.slane %v3039, 4
        %v3157 = vsel %vm1109, %v3133, %v3156
        %v3159 = vunpack.c.l.s4 1983009808
        %v3160 = vunpack.c.0.s8 %v3159
        %v3161 = vperm.slane %v3155, %v3160
        %v3163 = vunpack.c.l.s4 1983009808
        %v3164 = vunpack.c.0.s8 %v3163
        %v3165 = vperm.slane %v3157, %v3164
        %v3166 = vrot.slane %v3161, 4
        %v3167 = vsel %vm1109, %v3166, %v3149
        %v3168 = vrot.slane %v3149, 4
        %v3169 = vsel %vm1109, %v3161, %v3168
        %v3171 = vunpack.c.l.s4 1934713408
        %v3172 = vunpack.c.0.s8 %v3171
        %v3173 = vperm.slane %v3167, %v3172
        %v3175 = vunpack.c.l.s4 1934713408
        %v3176 = vunpack.c.0.s8 %v3175
        %v3177 = vperm.slane %v3169, %v3176
        %v3178 = vrot.slane %v3165, 4
        %v3179 = vsel %vm1109, %v3178, %v3153
        %v3180 = vrot.slane %v3153, 4
        %v3181 = vsel %vm1109, %v3165, %v3180
        %v3183 = vunpack.c.l.s4 1934713408
        %v3184 = vunpack.c.0.s8 %v3183
        %v3185 = vperm.slane %v3179, %v3184
        %v3187 = vunpack.c.l.s4 1934713408
        %v3188 = vunpack.c.0.s8 %v3187
        %v3189 = vperm.slane %v3181, %v3188
        %v3190 = vrot.slane %v3173, 4
        %v3191 = vsel %vm1109, 0.0, %v3190
        %v3192 = vrot.slane %v3177, 4
        %v3193 = vsel %vm1109, 0.0, %v3192
        %v3194 = vrot.slane %v3185, 4
        %v3195 = vsel %vm1109, 0.0, %v3194
        %v3196 = vrot.slane %v3189, 4
        %v3197 = vsel %vm1109, 0.0, %v3196
        %v3198 = vrot.slane %v3088, 4
        %v3199 = vsel %vm1109, %v3198, %v2994
        %v3200 = vrot.slane %v2994, 4
        %v3201 = vsel %vm1109, %v3088, %v3200
        %v3203 = vunpack.c.l.s4 1983009808
        %v3204 = vunpack.c.0.s8 %v3203
        %v3205 = vperm.slane %v3199, %v3204
        %v3207 = vunpack.c.l.s4 1983009808
        %v3208 = vunpack.c.0.s8 %v3207
        %v3209 = vperm.slane %v3201, %v3208
        %v3210 = vrot.slane %v3135, 4
        %v3211 = vsel %vm1109, %v3210, %v3041
        %v3212 = vrot.slane %v3041, 4
        %v3213 = vsel %vm1109, %v3135, %v3212
        %v3215 = vunpack.c.l.s4 1983009808
        %v3216 = vunpack.c.0.s8 %v3215
        %v3217 = vperm.slane %v3211, %v3216
        %v3219 = vunpack.c.l.s4 1983009808
        %v3220 = vunpack.c.0.s8 %v3219
        %v3221 = vperm.slane %v3213, %v3220
        %v3222 = vrot.slane %v3217, 4
        %v3223 = vsel %vm1109, %v3222, %v3205
        %v3224 = vrot.slane %v3205, 4
        %v3225 = vsel %vm1109, %v3217, %v3224
        %v3227 = vunpack.c.l.s4 1934713408
        %v3228 = vunpack.c.0.s8 %v3227
        %v3229 = vperm.slane %v3223, %v3228
        %v3231 = vunpack.c.l.s4 1934713408
        %v3232 = vunpack.c.0.s8 %v3231
        %v3233 = vperm.slane %v3225, %v3232
        %v3234 = vrot.slane %v3221, 4
        %v3235 = vsel %vm1109, %v3234, %v3209
        %v3236 = vrot.slane %v3209, 4
        %v3237 = vsel %vm1109, %v3221, %v3236
        %v3239 = vunpack.c.l.s4 1934713408
        %v3240 = vunpack.c.0.s8 %v3239
        %v3241 = vperm.slane %v3235, %v3240
        %v3243 = vunpack.c.l.s4 1934713408
        %v3244 = vunpack.c.0.s8 %v3243
        %v3245 = vperm.slane %v3237, %v3244
        %v3246 = vrot.slane %v3229, 4
        %v3247 = vsel %vm1109, 0.0, %v3246
        %v3248 = vrot.slane %v3233, 4
        %v3249 = vsel %vm1109, 0.0, %v3248
        %v3250 = vrot.slane %v3241, 4
        %v3251 = vsel %vm1109, 0.0, %v3250
        %v3252 = vrot.slane %v3245, 4
        %v3253 = vsel %vm1109, 0.0, %v3252
        %v3254 = vrot.slane %v3091, 4
        %v3255 = vsel %vm1109, %v3254, %v2997
        %v3256 = vrot.slane %v2997, 4
        %v3257 = vsel %vm1109, %v3091, %v3256
        %v3259 = vunpack.c.l.s4 1983009808
        %v3260 = vunpack.c.0.s8 %v3259
        %v3261 = vperm.slane %v3255, %v3260
        %v3263 = vunpack.c.l.s4 1983009808
        %v3264 = vunpack.c.0.s8 %v3263
        %v3265 = vperm.slane %v3257, %v3264
        %v3266 = vrot.slane %v3138, 4
        %v3267 = vsel %vm1109, %v3266, %v3044
        %v3268 = vrot.slane %v3044, 4
        %v3269 = vsel %vm1109, %v3138, %v3268
        %v3271 = vunpack.c.l.s4 1983009808
        %v3272 = vunpack.c.0.s8 %v3271
        %v3273 = vperm.slane %v3267, %v3272
        %v3275 = vunpack.c.l.s4 1983009808
        %v3276 = vunpack.c.0.s8 %v3275
        %v3277 = vperm.slane %v3269, %v3276
        %v3278 = vrot.slane %v3273, 4
        %v3279 = vsel %vm1109, %v3278, %v3261
        %v3280 = vrot.slane %v3261, 4
        %v3281 = vsel %vm1109, %v3273, %v3280
        %v3283 = vunpack.c.l.s4 1934713408
        %v3284 = vunpack.c.0.s8 %v3283
        %v3285 = vperm.slane %v3279, %v3284
        %v3287 = vunpack.c.l.s4 1934713408
        %v3288 = vunpack.c.0.s8 %v3287
        %v3289 = vperm.slane %v3281, %v3288
        %v3290 = vrot.slane %v3277, 4
        %v3291 = vsel %vm1109, %v3290, %v3265
        %v3292 = vrot.slane %v3265, 4
        %v3293 = vsel %vm1109, %v3277, %v3292
        %v3295 = vunpack.c.l.s4 1934713408
        %v3296 = vunpack.c.0.s8 %v3295
        %v3297 = vperm.slane %v3291, %v3296
        %v3299 = vunpack.c.l.s4 1934713408
        %v3300 = vunpack.c.0.s8 %v3299
        %v3301 = vperm.slane %v3293, %v3300
        %v3302 = vrot.slane %v3285, 4
        %v3303 = vsel %vm1109, 0.0, %v3302
        %v3304 = vrot.slane %v3289, 4
        %v3305 = vsel %vm1109, 0.0, %v3304
        %v3306 = vrot.slane %v3297, 4
        %v3307 = vsel %vm1109, 0.0, %v3306
        %v3308 = vrot.slane %v3301, 4
        %v3309 = vsel %vm1109, 0.0, %v3308
        %v3310 = vrot.slane %v3093, 4
        %v3311 = vsel %vm1109, %v3310, %v2999
        %v3312 = vrot.slane %v2999, 4
        %v3313 = vsel %vm1109, %v3093, %v3312
        %v3315 = vunpack.c.l.s4 1983009808
        %v3316 = vunpack.c.0.s8 %v3315
        %v3317 = vperm.slane %v3311, %v3316
        %v3319 = vunpack.c.l.s4 1983009808
        %v3320 = vunpack.c.0.s8 %v3319
        %v3321 = vperm.slane %v3313, %v3320
        %v3322 = vrot.slane %v3140, 4
        %v3323 = vsel %vm1109, %v3322, %v3046
        %v3324 = vrot.slane %v3046, 4
        %v3325 = vsel %vm1109, %v3140, %v3324
        %v3327 = vunpack.c.l.s4 1983009808
        %v3328 = vunpack.c.0.s8 %v3327
        %v3329 = vperm.slane %v3323, %v3328
        %v3331 = vunpack.c.l.s4 1983009808
        %v3332 = vunpack.c.0.s8 %v3331
        %v3333 = vperm.slane %v3325, %v3332
        %v3334 = vrot.slane %v3329, 4
        %v3335 = vsel %vm1109, %v3334, %v3317
        %v3336 = vrot.slane %v3317, 4
        %v3337 = vsel %vm1109, %v3329, %v3336
        %v3339 = vunpack.c.l.s4 1934713408
        %v3340 = vunpack.c.0.s8 %v3339
        %v3341 = vperm.slane %v3335, %v3340
        %v3343 = vunpack.c.l.s4 1934713408
        %v3344 = vunpack.c.0.s8 %v3343
        %v3345 = vperm.slane %v3337, %v3344
        %v3346 = vrot.slane %v3333, 4
        %v3347 = vsel %vm1109, %v3346, %v3321
        %v3348 = vrot.slane %v3321, 4
        %v3349 = vsel %vm1109, %v3333, %v3348
        %v3351 = vunpack.c.l.s4 1934713408
        %v3352 = vunpack.c.0.s8 %v3351
        %v3353 = vperm.slane %v3347, %v3352
        %v3355 = vunpack.c.l.s4 1934713408
        %v3356 = vunpack.c.0.s8 %v3355
        %v3357 = vperm.slane %v3349, %v3356
        %v3358 = vrot.slane %v3341, 4
        %v3359 = vsel %vm1109, 0.0, %v3358
        %v3360 = vrot.slane %v3345, 4
        %v3361 = vsel %vm1109, 0.0, %v3360
        %v3362 = vrot.slane %v3353, 4
        %v3363 = vsel %vm1109, 0.0, %v3362
        %v3364 = vrot.slane %v3357, 4
        %v3365 = vsel %vm1109, 0.0, %v3364
        %v3366 = vsel %vm1109, %v3192, %v3173
        %v3368 = vunpack.c.l.s4 1983009808
        %v3369 = vunpack.c.0.s8 %v3368
        %v3370 = vperm.slane %v3366, %v3369
        %v3371 = vrot.slane %v3193, 4
        %v3372 = vsel %vm1109, %v3371, %v3191
        %v3374 = vunpack.c.l.s4 1983009808
        %v3375 = vunpack.c.0.s8 %v3374
        %v3376 = vperm.slane %v3372, %v3375
        %v3377 = vsel %vm1109, %v3196, %v3185
        %v3379 = vunpack.c.l.s4 1983009808
        %v3380 = vunpack.c.0.s8 %v3379
        %v3381 = vperm.slane %v3377, %v3380
        %v3382 = vrot.slane %v3197, 4
        %v3383 = vsel %vm1109, %v3382, %v3195
        %v3385 = vunpack.c.l.s4 1983009808
        %v3386 = vunpack.c.0.s8 %v3385
        %v3387 = vperm.slane %v3383, %v3386
        %v3388 = vrot.slane %v3376, 4
        %v3389 = vsel %vm1109, %v3388, %v3370
        %v3390 = vrot.slane %v3370, 4
        %v3391 = vsel %vm1109, %v3376, %v3390
        %v3393 = vunpack.c.l.s4 1934713408
        %v3394 = vunpack.c.0.s8 %v3393
        %v3395 = vperm.slane %v3389, %v3394
        %v3397 = vunpack.c.l.s4 1934713408
        %v3398 = vunpack.c.0.s8 %v3397
        %v3399 = vperm.slane %v3391, %v3398
        %v3400 = vrot.slane %v3387, 4
        %v3401 = vsel %vm1109, %v3400, %v3381
        %v3402 = vrot.slane %v3381, 4
        %v3403 = vsel %vm1109, %v3387, %v3402
        %v3405 = vunpack.c.l.s4 1934713408
        %v3406 = vunpack.c.0.s8 %v3405
        %v3407 = vperm.slane %v3401, %v3406
        %v3409 = vunpack.c.l.s4 1934713408
        %v3410 = vunpack.c.0.s8 %v3409
        %v3411 = vperm.slane %v3403, %v3410
        %v3412 = vrot.slane %v3407, 4
        %v3413 = vsel %vm1109, %v3412, %v3395
        %v3414 = vrot.slane %v3395, 4
        %v3415 = vsel %vm1109, %v3407, %v3414
        %v3416 = vrot.slane %v3411, 4
        %v3417 = vsel %vm1109, %v3416, %v3399
        %v3418 = vrot.slane %v3399, 4
        %v3419 = vsel %vm1109, %v3411, %v3418
        %v3420 = vsel %vm1109, %v3248, %v3229
        %v3422 = vunpack.c.l.s4 1983009808
        %v3423 = vunpack.c.0.s8 %v3422
        %v3424 = vperm.slane %v3420, %v3423
        %v3425 = vrot.slane %v3249, 4
        %v3426 = vsel %vm1109, %v3425, %v3247
        %v3428 = vunpack.c.l.s4 1983009808
        %v3429 = vunpack.c.0.s8 %v3428
        %v3430 = vperm.slane %v3426, %v3429
        %v3431 = vsel %vm1109, %v3252, %v3241
        %v3433 = vunpack.c.l.s4 1983009808
        %v3434 = vunpack.c.0.s8 %v3433
        %v3435 = vperm.slane %v3431, %v3434
        %v3436 = vrot.slane %v3253, 4
        %v3437 = vsel %vm1109, %v3436, %v3251
        %v3439 = vunpack.c.l.s4 1983009808
        %v3440 = vunpack.c.0.s8 %v3439
        %v3441 = vperm.slane %v3437, %v3440
        %v3442 = vrot.slane %v3430, 4
        %v3443 = vsel %vm1109, %v3442, %v3424
        %v3444 = vrot.slane %v3424, 4
        %v3445 = vsel %vm1109, %v3430, %v3444
        %v3447 = vunpack.c.l.s4 1934713408
        %v3448 = vunpack.c.0.s8 %v3447
        %v3449 = vperm.slane %v3443, %v3448
        %v3451 = vunpack.c.l.s4 1934713408
        %v3452 = vunpack.c.0.s8 %v3451
        %v3453 = vperm.slane %v3445, %v3452
        %v3454 = vrot.slane %v3441, 4
        %v3455 = vsel %vm1109, %v3454, %v3435
        %v3456 = vrot.slane %v3435, 4
        %v3457 = vsel %vm1109, %v3441, %v3456
        %v3459 = vunpack.c.l.s4 1934713408
        %v3460 = vunpack.c.0.s8 %v3459
        %v3461 = vperm.slane %v3455, %v3460
        %v3463 = vunpack.c.l.s4 1934713408
        %v3464 = vunpack.c.0.s8 %v3463
        %v3465 = vperm.slane %v3457, %v3464
        %v3466 = vrot.slane %v3461, 4
        %v3467 = vsel %vm1109, %v3466, %v3449
        %v3468 = vrot.slane %v3449, 4
        %v3469 = vsel %vm1109, %v3461, %v3468
        %v3470 = vrot.slane %v3465, 4
        %v3471 = vsel %vm1109, %v3470, %v3453
        %v3472 = vrot.slane %v3453, 4
        %v3473 = vsel %vm1109, %v3465, %v3472
        %v3474 = vsel %vm1109, %v3304, %v3285
        %v3476 = vunpack.c.l.s4 1983009808
        %v3477 = vunpack.c.0.s8 %v3476
        %v3478 = vperm.slane %v3474, %v3477
        %v3479 = vrot.slane %v3305, 4
        %v3480 = vsel %vm1109, %v3479, %v3303
        %v3482 = vunpack.c.l.s4 1983009808
        %v3483 = vunpack.c.0.s8 %v3482
        %v3484 = vperm.slane %v3480, %v3483
        %v3485 = vsel %vm1109, %v3308, %v3297
        %v3487 = vunpack.c.l.s4 1983009808
        %v3488 = vunpack.c.0.s8 %v3487
        %v3489 = vperm.slane %v3485, %v3488
        %v3490 = vrot.slane %v3309, 4
        %v3491 = vsel %vm1109, %v3490, %v3307
        %v3493 = vunpack.c.l.s4 1983009808
        %v3494 = vunpack.c.0.s8 %v3493
        %v3495 = vperm.slane %v3491, %v3494
        %v3496 = vrot.slane %v3484, 4
        %v3497 = vsel %vm1109, %v3496, %v3478
        %v3498 = vrot.slane %v3478, 4
        %v3499 = vsel %vm1109, %v3484, %v3498
        %v3501 = vunpack.c.l.s4 1934713408
        %v3502 = vunpack.c.0.s8 %v3501
        %v3503 = vperm.slane %v3497, %v3502
        %v3505 = vunpack.c.l.s4 1934713408
        %v3506 = vunpack.c.0.s8 %v3505
        %v3507 = vperm.slane %v3499, %v3506
        %v3508 = vrot.slane %v3495, 4
        %v3509 = vsel %vm1109, %v3508, %v3489
        %v3510 = vrot.slane %v3489, 4
        %v3511 = vsel %vm1109, %v3495, %v3510
        %v3513 = vunpack.c.l.s4 1934713408
        %v3514 = vunpack.c.0.s8 %v3513
        %v3515 = vperm.slane %v3509, %v3514
        %v3517 = vunpack.c.l.s4 1934713408
        %v3518 = vunpack.c.0.s8 %v3517
        %v3519 = vperm.slane %v3511, %v3518
        %v3520 = vrot.slane %v3515, 4
        %v3521 = vsel %vm1109, %v3520, %v3503
        %v3522 = vrot.slane %v3503, 4
        %v3523 = vsel %vm1109, %v3515, %v3522
        %v3524 = vrot.slane %v3519, 4
        %v3525 = vsel %vm1109, %v3524, %v3507
        %v3526 = vrot.slane %v3507, 4
        %v3527 = vsel %vm1109, %v3519, %v3526
        %v3528 = vsel %vm1109, %v3360, %v3341
        %v3530 = vunpack.c.l.s4 1983009808
        %v3531 = vunpack.c.0.s8 %v3530
        %v3532 = vperm.slane %v3528, %v3531
        %v3533 = vrot.slane %v3361, 4
        %v3534 = vsel %vm1109, %v3533, %v3359
        %v3536 = vunpack.c.l.s4 1983009808
        %v3537 = vunpack.c.0.s8 %v3536
        %v3538 = vperm.slane %v3534, %v3537
        %v3539 = vsel %vm1109, %v3364, %v3353
        %v3541 = vunpack.c.l.s4 1983009808
        %v3542 = vunpack.c.0.s8 %v3541
        %v3543 = vperm.slane %v3539, %v3542
        %v3544 = vrot.slane %v3365, 4
        %v3545 = vsel %vm1109, %v3544, %v3363
        %v3547 = vunpack.c.l.s4 1983009808
        %v3548 = vunpack.c.0.s8 %v3547
        %v3549 = vperm.slane %v3545, %v3548
        %v3550 = vrot.slane %v3538, 4
        %v3551 = vsel %vm1109, %v3550, %v3532
        %v3552 = vrot.slane %v3532, 4
        %v3553 = vsel %vm1109, %v3538, %v3552
        %v3555 = vunpack.c.l.s4 1934713408
        %v3556 = vunpack.c.0.s8 %v3555
        %v3557 = vperm.slane %v3551, %v3556
        %v3559 = vunpack.c.l.s4 1934713408
        %v3560 = vunpack.c.0.s8 %v3559
        %v3561 = vperm.slane %v3553, %v3560
        %v3562 = vrot.slane %v3549, 4
        %v3563 = vsel %vm1109, %v3562, %v3543
        %v3564 = vrot.slane %v3543, 4
        %v3565 = vsel %vm1109, %v3549, %v3564
        %v3567 = vunpack.c.l.s4 1934713408
        %v3568 = vunpack.c.0.s8 %v3567
        %v3569 = vperm.slane %v3563, %v3568
        %v3571 = vunpack.c.l.s4 1934713408
        %v3572 = vunpack.c.0.s8 %v3571
        %v3573 = vperm.slane %v3565, %v3572
        %v3574 = vrot.slane %v3569, 4
        %v3575 = vsel %vm1109, %v3574, %v3557
        %v3576 = vrot.slane %v3557, 4
        %v3577 = vsel %vm1109, %v3569, %v3576
        %v3578 = vrot.slane %v3573, 4
        %v3579 = vsel %vm1109, %v3578, %v3561
        %v3580 = vrot.slane %v3561, 4
        %v3581 = vsel %vm1109, %v3573, %v3580
        %3586 = vrot.lane.b32.xlu0 %v3415, 32
        %v3587 = vpop.permute.xlu0 %3586
        %3588 = vrot.lane.b32.xlu0 %v3469, 32
        %v3589 = vpop.permute.xlu0 %3588
        %3590 = vrot.lane.b32.xlu0 %v3523, 32
        %v3591 = vpop.permute.xlu0 %3590
        %3592 = vrot.lane.b32.xlu0 %v3577, 32
        %v3593 = vpop.permute.xlu0 %3592
        %3602 = vrot.lane.b32.xlu0 %v3417, 64
        %v3603 = vpop.permute.xlu0 %3602
        %3604 = vrot.lane.b32.xlu0 %v3471, 64
        %v3605 = vpop.permute.xlu0 %3604
        %3606 = vrot.lane.b32.xlu0 %v3525, 64
        %v3607 = vpop.permute.xlu0 %3606
        %3608 = vrot.lane.b32.xlu0 %v3579, 64
        %v3609 = vpop.permute.xlu0 %3608
        %3618 = vrot.lane.b32.xlu0 %v3419, 96
        %v3619 = vpop.permute.xlu0 %3618
        %3620 = vrot.lane.b32.xlu0 %v3473, 96
        %v3621 = vpop.permute.xlu0 %3620
        %3622 = vrot.lane.b32.xlu0 %v3527, 96
        %v3623 = vpop.permute.xlu0 %3622
        %3624 = vrot.lane.b32.xlu0 %v3581, 96
        %v3625 = vpop.permute.xlu0 %3624
        %v3630 = vsel %vm2577, %v3413, %v3587
        %v3631 = vsel %vm2577, %v3467, %v3589
        %v3632 = vsel %vm2577, %v3521, %v3591
        %v3633 = vsel %vm2577, %v3575, %v3593
        %vm3634 = vcmask 523264
        %v3635 = vsel %vm3634, %v3630, %v3603
        %v3636 = vsel %vm3634, %v3631, %v3605
        %v3637 = vsel %vm3634, %v3632, %v3607
        %v3638 = vsel %vm3634, %v3633, %v3609
        %vm3639 = vcmask 785408
        %v3640 = vsel %vm3639, %v3635, %v3619
        %v3641 = vsel %vm3639, %v3636, %v3621
        %v3642 = vsel %vm3639, %v3637, %v3623
        %v3643 = vsel %vm3639, %v3638, %v3625
        %v3644 = vld [vmem:[#allocation13] sm:$0xf]
        %v3645 = vld [vmem:[#allocation13 + $0x4] sm:$0xf]
        %v3646 = vld [vmem:[#allocation13 + $0x8] sm:$0xf]
        %v3647 = vld [vmem:[#allocation13 + $0xc] sm:$0xf]
        %v3648 = vld [vmem:[#allocation13 + $0x10] sm:$0xf]
        %v3649 = vld [vmem:[#allocation13 + $0x14] sm:$0xf]
        %v3650 = vld [vmem:[#allocation13 + $0x18] sm:$0xf]
        %v3651 = vld [vmem:[#allocation13 + $0x1c] sm:$0xf]
        %v3652 = vld [vmem:[#allocation13 + $0x20] sm:$0xf]
        %v3653 = vld [vmem:[#allocation13 + $0x24] sm:$0xf]
        %v3654 = vld [vmem:[#allocation13 + $0x28] sm:$0xf]
        %v3655 = vld [vmem:[#allocation13 + $0x2c] sm:$0xf]
        %v3656 = vld [vmem:[#allocation13 + $0x30] sm:$0xf]
        %v3657 = vld [vmem:[#allocation13 + $0x34] sm:$0xf]
        %v3658 = vld [vmem:[#allocation13 + $0x38] sm:$0xf]
        %v3659 = vld [vmem:[#allocation13 + $0x3c] sm:$0xf]
        %v3660 = vpack.c.bf16 %v3641, %v3640
        %v3661 = vpack.c.bf16 %v3643, %v3642
        %v3662 = vld [vmem:[%s10] sm:$0x1]
        %v3664 = vperm.slane %v3662, 0
        %v3682 = vunpack.c.l.b16 %v3644
        %v3683 = vunpack.c.l.b16 %v3645
        %v3684 = vunpack.c.l.b16 %v3646
        %v3685 = vunpack.c.l.b16 %v3647
        %v3686 = vunpack.c.l.b16 %v3648
        %v3687 = vunpack.c.l.b16 %v3649
        %v3688 = vunpack.c.l.b16 %v3650
        %v3689 = vunpack.c.l.b16 %v3651
        %v3690 = vunpack.c.l.b16 %v3652
        %v3691 = vunpack.c.l.b16 %v3653
        %v3692 = vunpack.c.l.b16 %v3654
        %v3693 = vunpack.c.l.b16 %v3655
        %v3694 = vunpack.c.l.b16 %v3656
        %v3695 = vunpack.c.l.b16 %v3657
        %v3696 = vunpack.c.l.b16 %v3658
        %v3697 = vunpack.c.l.b16 %v3659
        %v3698 = vpack.c.b16 %v3683, %v3682
        %v3699 = vpack.c.b16 %v3685, %v3684
        %v3700 = vpack.c.b16 %v3687, %v3686
        %v3701 = vpack.c.b16 %v3689, %v3688
        %v3702 = vpack.c.b16 %v3691, %v3690
        %v3703 = vpack.c.b16 %v3693, %v3692
        %v3704 = vpack.c.b16 %v3695, %v3694
        %v3705 = vpack.c.b16 %v3697, %v3696
        %3714 = vmatpush.bf16.msra.mxu0 %v3705
        %3715 = vmatpush.bf16.msra.mxu0 %v3704
        %3716 = vmatpush.bf16.msra.mxu0 %v3703
        %3717 = vmatpush.bf16.msra.mxu0 %v3702
        %3718 = vmatpush.bf16.msra.mxu0 %v3701
        %3719 = vmatpush.bf16.msra.mxu0 %v3700
        %3720 = vmatpush.bf16.msra.mxu0 %v3699
        %3721 = vmatpush.bf16.msra.mxu0 %v3698
        %3722 = vmatmul.bf16.gmra.mxu0 %v3660
        %v3723 = vpop.f32.mrf.mxu0
        %v3724 = vadd.f32 %v3664, %v3723
        %v3725 = vpop.f32.mrf.mxu0
        %v3726 = vadd.f32 %v3664, %v3725
        %3727 = vmatmul.bf16.gmra.mxu0 %v3661
        %v3728 = vpop.f32.mrf.mxu0
        %v3729 = vadd.f32 %v3664, %v3728
        %v3730 = vpop.f32.mrf.mxu0
        %v3731 = vadd.f32 %v3664, %v3730
        %3732 = vdwg.mxu0
        %v3733 = vadd.f32 %v3724, %v698
        %v3734 = vadd.f32 %v3726, %v699
        %v3735 = vadd.f32 %v3729, %v700
        %v3736 = vadd.f32 %v3731, %v701
        %3737 = vadd.xlane.f32.xlu0 %v3733
        %v3738 = vpop.xlane.xlu0 %3737
        %3739 = vadd.xlane.f32.xlu0 %v3734
        %v3740 = vpop.xlane.xlu0 %3739
        %3741 = vadd.xlane.f32.xlu0 %v3735
        %v3742 = vpop.xlane.xlu0 %3741
        %3743 = vadd.xlane.f32.xlu0 %v3736
        %v3744 = vpop.xlane.xlu0 %3743
        %v3745 = vmul.f32 %v3738, %v716
        %v3746 = vmul.f32 %v3740, %v716
        %v3747 = vmul.f32 %v3742, %v716
        %v3748 = vmul.f32 %v3744, %v716
        %v3749 = vsub.f32 %v3733, %v3745
        %v3750 = vsub.f32 %v3734, %v3746
        %v3751 = vsub.f32 %v3735, %v3747
        %v3752 = vsub.f32 %v3736, %v3748
        %v3753 = vmul.f32 %v3749, %v3749
        %v3754 = vmul.f32 %v3750, %v3750
        %v3755 = vmul.f32 %v3751, %v3751
        %v3756 = vmul.f32 %v3752, %v3752
        %3757 = vadd.xlane.f32.xlu0 %v3753
        %v3758 = vpop.xlane.xlu0 %3757
        %3759 = vadd.xlane.f32.xlu0 %v3754
        %v3760 = vpop.xlane.xlu0 %3759
        %3761 = vadd.xlane.f32.xlu0 %v3755
        %v3762 = vpop.xlane.xlu0 %3761
        %3763 = vadd.xlane.f32.xlu0 %v3756
        %v3764 = vpop.xlane.xlu0 %3763
        %v3765 = vmul.f32 %v3758, %v716
        %v3766 = vmul.f32 %v3760, %v716
        %v3767 = vmul.f32 %v3762, %v716
        %v3768 = vmul.f32 %v3764, %v716
        %v3769 = vadd.f32 %v3765, 1e-12
        %v3770 = vadd.f32 %v3766, 1e-12
        %v3771 = vadd.f32 %v3767, 1e-12
        %v3772 = vadd.f32 %v3768, 1e-12
        %v3773 = vrsqrt.pop %v3769
        %v3774 = vmul.f32 %v3773, %v3769
        %v3775 = vmul.f32 %v3774, %v3773
        %v3776 = vmul.f32 0.5, %v3775
        %v3777 = vsub.f32 1.5, %v3776
        %v3778 = vmul.f32 %v3773, %v3777
        %vm3779 = vweird.f32 %v3769
        %vm3780 = vweird.f32 %v3773
        %vm3781 = vmor %vm3779, %vm3780
        %v3782 = vsel %vm3781, %v3773, %v3778
        %v3783 = vrsqrt.pop %v3770
        %v3784 = vmul.f32 %v3783, %v3770
        %v3785 = vmul.f32 %v3784, %v3783
        %v3786 = vmul.f32 0.5, %v3785
        %v3787 = vsub.f32 1.5, %v3786
        %v3788 = vmul.f32 %v3783, %v3787
        %vm3789 = vweird.f32 %v3770
        %vm3790 = vweird.f32 %v3783
        %vm3791 = vmor %vm3789, %vm3790
        %v3792 = vsel %vm3791, %v3783, %v3788
        %v3793 = vrsqrt.pop %v3771
        %v3794 = vmul.f32 %v3793, %v3771
        %v3795 = vmul.f32 %v3794, %v3793
        %v3796 = vmul.f32 0.5, %v3795
        %v3797 = vsub.f32 1.5, %v3796
        %v3798 = vmul.f32 %v3793, %v3797
        %vm3799 = vweird.f32 %v3771
        %vm3800 = vweird.f32 %v3793
        %vm3801 = vmor %vm3799, %vm3800
        %v3802 = vsel %vm3801, %v3793, %v3798
        %v3803 = vrsqrt.pop %v3772
        %v3804 = vmul.f32 %v3803, %v3772
        %v3805 = vmul.f32 %v3804, %v3803
        %v3806 = vmul.f32 0.5, %v3805
        %v3807 = vsub.f32 1.5, %v3806
        %v3808 = vmul.f32 %v3803, %v3807
        %vm3809 = vweird.f32 %v3772
        %vm3810 = vweird.f32 %v3803
        %vm3811 = vmor %vm3809, %vm3810
        %v3812 = vsel %vm3811, %v3803, %v3808
        %v3813 = vmul.f32 %v3749, %v3782
        %v3814 = vmul.f32 %v3750, %v3792
        %v3815 = vmul.f32 %v3751, %v3802
        %v3816 = vmul.f32 %v3752, %v3812
        %v3817 = vld [vmem:[%s11] sm:$0x1]
        %v3819 = vperm.slane %v3817, 0
        %v3821 = vmul.f32 %v3813, %v3819
        %v3822 = vmul.f32 %v3814, %v3819
        %v3823 = vmul.f32 %v3815, %v3819
        %v3824 = vmul.f32 %v3816, %v3819
        %v3825 = vld [vmem:[%s12] sm:$0x1]
        %v3827 = vperm.slane %v3825, 0
        %v3829 = vadd.f32 %v3821, %v3827
        %v3830 = vadd.f32 %v3822, %v3827
        %v3831 = vadd.f32 %v3823, %v3827
        %v3832 = vadd.f32 %v3824, %v3827
        %v3833 = vld [vmem:[#allocation14] sm:$0xff]
        %v3834 = vld [vmem:[#allocation14 + $0x8] sm:$0xff]
        %v3835 = vld [vmem:[#allocation14 + $0x10] sm:$0xff]
        %v3836 = vld [vmem:[#allocation14 + $0x18] sm:$0xff]
        %v3837 = vld [vmem:[#allocation14 + $0x20] sm:$0xff]
        %v3838 = vld [vmem:[#allocation14 + $0x28] sm:$0xff]
        %v3839 = vld [vmem:[#allocation14 + $0x30] sm:$0xff]
        %v3840 = vld [vmem:[#allocation14 + $0x38] sm:$0xff]
        %v3841 = vld [vmem:[#allocation14 + $0x40] sm:$0xff]
        %v3842 = vld [vmem:[#allocation14 + $0x48] sm:$0xff]
        %v3843 = vld [vmem:[#allocation14 + $0x50] sm:$0xff]
        %v3844 = vld [vmem:[#allocation14 + $0x58] sm:$0xff]
        %v3845 = vld [vmem:[#allocation14 + $0x60] sm:$0xff]
        %v3846 = vld [vmem:[#allocation14 + $0x68] sm:$0xff]
        %v3847 = vld [vmem:[#allocation14 + $0x70] sm:$0xff]
        %v3848 = vld [vmem:[#allocation14 + $0x78] sm:$0xff]
        %v3849 = vpack.c.bf16 %v3734, %v3733
        %v3850 = vpack.c.bf16 %v3736, %v3735
        %v3851 = vld [vmem:[%s14] sm:$0x3]
        %v3853 = vperm.slane %v3851, 0
        %v3854 = vperm.slane %v3851, 1
        %v3873 = vunpack.c.l.b16 %v3833
        %v3874 = vunpack.c.h.b16 %v3833
        %v3875 = vunpack.c.l.b16 %v3834
        %v3876 = vunpack.c.h.b16 %v3834
        %v3877 = vunpack.c.l.b16 %v3835
        %v3878 = vunpack.c.h.b16 %v3835
        %v3879 = vunpack.c.l.b16 %v3836
        %v3880 = vunpack.c.h.b16 %v3836
        %v3881 = vunpack.c.l.b16 %v3837
        %v3882 = vunpack.c.h.b16 %v3837
        %v3883 = vunpack.c.l.b16 %v3838
        %v3884 = vunpack.c.h.b16 %v3838
        %v3885 = vunpack.c.l.b16 %v3839
        %v3886 = vunpack.c.h.b16 %v3839
        %v3887 = vunpack.c.l.b16 %v3840
        %v3888 = vunpack.c.h.b16 %v3840
        %v3889 = vunpack.c.l.b16 %v3841
        %v3890 = vunpack.c.h.b16 %v3841
        %v3891 = vunpack.c.l.b16 %v3842
        %v3892 = vunpack.c.h.b16 %v3842
        %v3893 = vunpack.c.l.b16 %v3843
        %v3894 = vunpack.c.h.b16 %v3843
        %v3895 = vunpack.c.l.b16 %v3844
        %v3896 = vunpack.c.h.b16 %v3844
        %v3897 = vunpack.c.l.b16 %v3845
        %v3898 = vunpack.c.h.b16 %v3845
        %v3899 = vunpack.c.l.b16 %v3846
        %v3900 = vunpack.c.h.b16 %v3846
        %v3901 = vunpack.c.l.b16 %v3847
        %v3902 = vunpack.c.h.b16 %v3847
        %v3903 = vunpack.c.l.b16 %v3848
        %v3904 = vunpack.c.h.b16 %v3848
        %v3905 = vpack.c.b16 %v3875, %v3873
        %v3906 = vpack.c.b16 %v3876, %v3874
        %v3907 = vpack.c.b16 %v3879, %v3877
        %v3908 = vpack.c.b16 %v3880, %v3878
        %v3909 = vpack.c.b16 %v3883, %v3881
        %v3910 = vpack.c.b16 %v3884, %v3882
        %v3911 = vpack.c.b16 %v3887, %v3885
        %v3912 = vpack.c.b16 %v3888, %v3886
        %v3913 = vpack.c.b16 %v3891, %v3889
        %v3914 = vpack.c.b16 %v3892, %v3890
        %v3915 = vpack.c.b16 %v3895, %v3893
        %v3916 = vpack.c.b16 %v3896, %v3894
        %v3917 = vpack.c.b16 %v3899, %v3897
        %v3918 = vpack.c.b16 %v3900, %v3898
        %v3919 = vpack.c.b16 %v3903, %v3901
        %v3920 = vpack.c.b16 %v3904, %v3902
        %3937 = vmatpush.bf16.msra.mxu0 %v3919
        %3938 = vmatpush.bf16.msra.mxu0 %v3917
        %3939 = vmatpush.bf16.msra.mxu0 %v3915
        %3940 = vmatpush.bf16.msra.mxu0 %v3913
        %3941 = vmatpush.bf16.msra.mxu0 %v3911
        %3942 = vmatpush.bf16.msra.mxu0 %v3909
        %3943 = vmatpush.bf16.msra.mxu0 %v3907
        %3944 = vmatpush.bf16.msra.mxu0 %v3905
        %3945 = vmatmul.bf16.gmra.mxu0 %v3849
        %v3946 = vpop.f32.mrf.mxu0
        %v3947 = vadd.f32 %v3853, %v3946
        %v3948 = vpop.f32.mrf.mxu0
        %v3949 = vadd.f32 %v3853, %v3948
        %3950 = vmatmul.bf16.gmra.mxu0 %v3850
        %v3951 = vpop.f32.mrf.mxu0
        %v3952 = vadd.f32 %v3853, %v3951
        %v3953 = vpop.f32.mrf.mxu0
        %v3954 = vadd.f32 %v3853, %v3953
        %3955 = vdwg.mxu0
        %3956 = vmatpush.bf16.msra.mxu0 %v3920
        %3957 = vmatpush.bf16.msra.mxu0 %v3918
        %3958 = vmatpush.bf16.msra.mxu0 %v3916
        %3959 = vmatpush.bf16.msra.mxu0 %v3914
        %3960 = vmatpush.bf16.msra.mxu0 %v3912
        %3961 = vmatpush.bf16.msra.mxu0 %v3910
        %3962 = vmatpush.bf16.msra.mxu0 %v3908
        %3963 = vmatpush.bf16.msra.mxu0 %v3906
        %3964 = vmatmul.bf16.gmra.mxu0 %v3849
        %v3965 = vpop.f32.mrf.mxu0
        %v3966 = vadd.f32 %v3854, %v3965
        %v3967 = vpop.f32.mrf.mxu0
        %v3968 = vadd.f32 %v3854, %v3967
        %3969 = vmatmul.bf16.gmra.mxu0 %v3850
        %v3970 = vpop.f32.mrf.mxu0
        %v3971 = vadd.f32 %v3854, %v3970
        %v3972 = vpop.f32.mrf.mxu0
        %v3973 = vadd.f32 %v3854, %v3972
        %3974 = vdwg.mxu0
        %v3975 = vmul.f32 %v3947, 0.5
        %v3976 = vmul.f32 %v3966, 0.5
        %v3977 = vmul.f32 %v3949, 0.5
        %v3978 = vmul.f32 %v3968, 0.5
        %v3979 = vmul.f32 %v3952, 0.5
        %v3980 = vmul.f32 %v3971, 0.5
        %v3981 = vmul.f32 %v3954, 0.5
        %v3982 = vmul.f32 %v3973, 0.5
        %v3983 = vmul.f32 %v3947, 0.044715
        %v3984 = vmul.f32 %v3966, 0.044715
        %v3985 = vmul.f32 %v3949, 0.044715
        %v3986 = vmul.f32 %v3968, 0.044715
        %v3987 = vmul.f32 %v3952, 0.044715
        %v3988 = vmul.f32 %v3971, 0.044715
        %v3989 = vmul.f32 %v3954, 0.044715
        %v3990 = vmul.f32 %v3973, 0.044715
        %v3991 = vmul.f32 %v3983, %v3947
        %v3992 = vmul.f32 %v3984, %v3966
        %v3993 = vmul.f32 %v3985, %v3949
        %v3994 = vmul.f32 %v3986, %v3968
        %v3995 = vmul.f32 %v3987, %v3952
        %v3996 = vmul.f32 %v3988, %v3971
        %v3997 = vmul.f32 %v3989, %v3954
        %v3998 = vmul.f32 %v3990, %v3973
        %v3999 = vmul.f32 %v3991, %v3947
        %v4000 = vmul.f32 %v3992, %v3966
        %v4001 = vmul.f32 %v3993, %v3949
        %v4002 = vmul.f32 %v3994, %v3968
        %v4003 = vmul.f32 %v3995, %v3952
        %v4004 = vmul.f32 %v3996, %v3971
        %v4005 = vmul.f32 %v3997, %v3954
        %v4006 = vmul.f32 %v3998, %v3973
        %v4007 = vadd.f32 %v3947, %v3999
        %v4008 = vadd.f32 %v3966, %v4000
        %v4009 = vadd.f32 %v3949, %v4001
        %v4010 = vadd.f32 %v3968, %v4002
        %v4011 = vadd.f32 %v3952, %v4003
        %v4012 = vadd.f32 %v3971, %v4004
        %v4013 = vadd.f32 %v3954, %v4005
        %v4014 = vadd.f32 %v3973, %v4006
        %v4015 = vmul.f32 %v4007, 0.7978846
        %v4016 = vmul.f32 %v4008, 0.7978846
        %v4017 = vmul.f32 %v4009, 0.7978846
        %v4018 = vmul.f32 %v4010, 0.7978846
        %v4019 = vmul.f32 %v4011, 0.7978846
        %v4020 = vmul.f32 %v4012, 0.7978846
        %v4021 = vmul.f32 %v4013, 0.7978846
        %v4022 = vmul.f32 %v4014, 0.7978846
        %v4023 = vtanh.pop %v4015
        %v4024 = vtanh.pop %v4016
        %v4025 = vtanh.pop %v4017
        %v4026 = vtanh.pop %v4018
        %v4027 = vtanh.pop %v4019
        %v4028 = vtanh.pop %v4020
        %v4029 = vtanh.pop %v4021
        %v4030 = vtanh.pop %v4022
        %v4031 = vadd.f32 %v4023, 1.0
        %v4032 = vadd.f32 %v4024, 1.0
        %v4033 = vadd.f32 %v4025, 1.0
        %v4034 = vadd.f32 %v4026, 1.0
        %v4035 = vadd.f32 %v4027, 1.0
        %v4036 = vadd.f32 %v4028, 1.0
        %v4037 = vadd.f32 %v4029, 1.0
        %v4038 = vadd.f32 %v4030, 1.0
        %v4039 = vmul.f32 %v3975, %v4031
        %v4040 = vmul.f32 %v3976, %v4032
        %v4041 = vmul.f32 %v3977, %v4033
        %v4042 = vmul.f32 %v3978, %v4034
        %v4043 = vmul.f32 %v3979, %v4035
        %v4044 = vmul.f32 %v3980, %v4036
        %v4045 = vmul.f32 %v3981, %v4037
        %v4046 = vmul.f32 %v3982, %v4038
        %v4047 = vld [vmem:[#allocation16] sm:$0xf]
        %v4048 = vld [vmem:[#allocation16 + $0x4] sm:$0xf]
        %v4049 = vld [vmem:[#allocation16 + $0x8] sm:$0xf]
        %v4050 = vld [vmem:[#allocation16 + $0xc] sm:$0xf]
        %v4051 = vld [vmem:[#allocation16 + $0x10] sm:$0xf]
        %v4052 = vld [vmem:[#allocation16 + $0x14] sm:$0xf]
        %v4053 = vld [vmem:[#allocation16 + $0x18] sm:$0xf]
        %v4054 = vld [vmem:[#allocation16 + $0x1c] sm:$0xf]
        %v4055 = vld [vmem:[#allocation16 + $0x20] sm:$0xf]
        %v4056 = vld [vmem:[#allocation16 + $0x24] sm:$0xf]
        %v4057 = vld [vmem:[#allocation16 + $0x28] sm:$0xf]
        %v4058 = vld [vmem:[#allocation16 + $0x2c] sm:$0xf]
        %v4059 = vld [vmem:[#allocation16 + $0x30] sm:$0xf]
        %v4060 = vld [vmem:[#allocation16 + $0x34] sm:$0xf]
        %v4061 = vld [vmem:[#allocation16 + $0x38] sm:$0xf]
        %v4062 = vld [vmem:[#allocation16 + $0x3c] sm:$0xf]
        %v4063 = vld [vmem:[#allocation16 + $0x40] sm:$0xf]
        %v4064 = vld [vmem:[#allocation16 + $0x44] sm:$0xf]
        %v4065 = vld [vmem:[#allocation16 + $0x48] sm:$0xf]
        %v4066 = vld [vmem:[#allocation16 + $0x4c] sm:$0xf]
        %v4067 = vld [vmem:[#allocation16 + $0x50] sm:$0xf]
        %v4068 = vld [vmem:[#allocation16 + $0x54] sm:$0xf]
        %v4069 = vld [vmem:[#allocation16 + $0x58] sm:$0xf]
        %v4070 = vld [vmem:[#allocation16 + $0x5c] sm:$0xf]
        %v4071 = vld [vmem:[#allocation16 + $0x60] sm:$0xf]
        %v4072 = vld [vmem:[#allocation16 + $0x64] sm:$0xf]
        %v4073 = vld [vmem:[#allocation16 + $0x68] sm:$0xf]
        %v4074 = vld [vmem:[#allocation16 + $0x6c] sm:$0xf]
        %v4075 = vld [vmem:[#allocation16 + $0x70] sm:$0xf]
        %v4076 = vld [vmem:[#allocation16 + $0x74] sm:$0xf]
        %v4077 = vld [vmem:[#allocation16 + $0x78] sm:$0xf]
        %v4078 = vld [vmem:[#allocation16 + $0x7c] sm:$0xf]
        %v4079 = vpack.c.bf16 %v4041, %v4039
        %v4080 = vpack.c.bf16 %v4042, %v4040
        %v4081 = vpack.c.bf16 %v4045, %v4043
        %v4082 = vpack.c.bf16 %v4046, %v4044
        %v4083 = vld [vmem:[%s16] sm:$0x1]
        %v4085 = vperm.slane %v4083, 0
        %v4119 = vunpack.c.l.b16 %v4047
        %v4120 = vunpack.c.l.b16 %v4048
        %v4121 = vunpack.c.l.b16 %v4049
        %v4122 = vunpack.c.l.b16 %v4050
        %v4123 = vunpack.c.l.b16 %v4051
        %v4124 = vunpack.c.l.b16 %v4052
        %v4125 = vunpack.c.l.b16 %v4053
        %v4126 = vunpack.c.l.b16 %v4054
        %v4127 = vunpack.c.l.b16 %v4055
        %v4128 = vunpack.c.l.b16 %v4056
        %v4129 = vunpack.c.l.b16 %v4057
        %v4130 = vunpack.c.l.b16 %v4058
        %v4131 = vunpack.c.l.b16 %v4059
        %v4132 = vunpack.c.l.b16 %v4060
        %v4133 = vunpack.c.l.b16 %v4061
        %v4134 = vunpack.c.l.b16 %v4062
        %v4135 = vunpack.c.l.b16 %v4063
        %v4136 = vunpack.c.l.b16 %v4064
        %v4137 = vunpack.c.l.b16 %v4065
        %v4138 = vunpack.c.l.b16 %v4066
        %v4139 = vunpack.c.l.b16 %v4067
        %v4140 = vunpack.c.l.b16 %v4068
        %v4141 = vunpack.c.l.b16 %v4069
        %v4142 = vunpack.c.l.b16 %v4070
        %v4143 = vunpack.c.l.b16 %v4071
        %v4144 = vunpack.c.l.b16 %v4072
        %v4145 = vunpack.c.l.b16 %v4073
        %v4146 = vunpack.c.l.b16 %v4074
        %v4147 = vunpack.c.l.b16 %v4075
        %v4148 = vunpack.c.l.b16 %v4076
        %v4149 = vunpack.c.l.b16 %v4077
        %v4150 = vunpack.c.l.b16 %v4078
        %v4151 = vpack.c.b16 %v4120, %v4119
        %v4152 = vpack.c.b16 %v4122, %v4121
        %v4153 = vpack.c.b16 %v4124, %v4123
        %v4154 = vpack.c.b16 %v4126, %v4125
        %v4155 = vpack.c.b16 %v4128, %v4127
        %v4156 = vpack.c.b16 %v4130, %v4129
        %v4157 = vpack.c.b16 %v4132, %v4131
        %v4158 = vpack.c.b16 %v4134, %v4133
        %v4159 = vpack.c.b16 %v4136, %v4135
        %v4160 = vpack.c.b16 %v4138, %v4137
        %v4161 = vpack.c.b16 %v4140, %v4139
        %v4162 = vpack.c.b16 %v4142, %v4141
        %v4163 = vpack.c.b16 %v4144, %v4143
        %v4164 = vpack.c.b16 %v4146, %v4145
        %v4165 = vpack.c.b16 %v4148, %v4147
        %v4166 = vpack.c.b16 %v4150, %v4149
        %4183 = vmatpush.bf16.msra.mxu0 %v4158
        %4184 = vmatpush.bf16.msra.mxu0 %v4157
        %4185 = vmatpush.bf16.msra.mxu0 %v4156
        %4186 = vmatpush.bf16.msra.mxu0 %v4155
        %4187 = vmatpush.bf16.msra.mxu0 %v4154
        %4188 = vmatpush.bf16.msra.mxu0 %v4153
        %4189 = vmatpush.bf16.msra.mxu0 %v4152
        %4190 = vmatpush.bf16.msra.mxu0 %v4151
        %4191 = vmatmul.bf16.gmra.mxu0 %v4079
        %v4192 = vpop.f32.mrf.mxu0
        %v4193 = vadd.f32 %v4085, %v4192
        %v4194 = vpop.f32.mrf.mxu0
        %v4195 = vadd.f32 %v4085, %v4194
        %4196 = vmatmul.bf16.gmra.mxu0 %v4081
        %v4197 = vpop.f32.mrf.mxu0
        %v4198 = vadd.f32 %v4085, %v4197
        %v4199 = vpop.f32.mrf.mxu0
        %v4200 = vadd.f32 %v4085, %v4199
        %4201 = vdwg.mxu0
        %4202 = vmatpush.bf16.msra.mxu0 %v4166
        %4203 = vmatpush.bf16.msra.mxu0 %v4165
        %4204 = vmatpush.bf16.msra.mxu0 %v4164
        %4205 = vmatpush.bf16.msra.mxu0 %v4163
        %4206 = vmatpush.bf16.msra.mxu0 %v4162
        %4207 = vmatpush.bf16.msra.mxu0 %v4161
        %4208 = vmatpush.bf16.msra.mxu0 %v4160
        %4209 = vmatpush.bf16.msra.mxu0 %v4159
        %4210 = vmatmul.bf16.gmra.mxu0 %v4080
        %v4211 = vpop.f32.mrf.mxu0
        %v4212 = vadd.f32 %v4193, %v4211
        %v4213 = vpop.f32.mrf.mxu0
        %v4214 = vadd.f32 %v4195, %v4213
        %4215 = vmatmul.bf16.gmra.mxu0 %v4082
        %v4216 = vpop.f32.mrf.mxu0
        %v4217 = vadd.f32 %v4198, %v4216
        %v4218 = vpop.f32.mrf.mxu0
        %v4219 = vadd.f32 %v4200, %v4218
        %4220 = vdwg.mxu0
        %v4221 = vadd.f32 %v4212, %v3829
        %v4222 = vadd.f32 %v4214, %v3830
        %v4223 = vadd.f32 %v4217, %v3831
        %v4224 = vadd.f32 %v4219, %v3832
        %4225 = vst [vmem:[%s696] sm:$0xff] %v4221
        %4226 = vst [vmem:[%s696 + $0x8] sm:$0xff] %v4222
        %4227 = vst [vmem:[%s696 + $0x10] sm:$0xff] %v4223
        %4228 = vst [vmem:[%s696 + $0x18] sm:$0xff] %v4224
        %s4229 = sand.u32 %s408, 1
        %s4230 = scalar_lea.sflag [#allocation4], %s4229
        %s4231 = sand.u32 %s408, 1
        %s4232 = smul.addr %s4231, 32
        %s4233 = scalar_lea.vmem [#allocation17], %s4232
        // Predicated region
        $region125: #{tpu_custom_call.1} parent=87 // pred_check
          %p4234 = pneg %p418
        $region126: #{tpu_custom_call.1} parent=87 // pred_check_branch
          %4236 = sbr.rel (%p4234) target = $region128
        $region127: #{tpu_custom_call.1} parent=87 // pred_region
          %4238 = vsyncadd %s4230, 0
          %s4239 = smul.addr %s38, 4
          %s4240 = smul.addr %s4239, 8
          %s4241 = scalar_lea.hbm %s17, %s4240
          %s4242 = sshll.u32 %s4233, 4
          %s4243 = int_to_ptr.vmem [resolvable:$true] %s4242
          %s4244 = sshll.u32 %s4241, 4
          %s4245 = int_to_ptr.hbm [resolvable:$true] %s4244
          %4250 = dma.vmem_to_hbm [thread:$0]  %s4243, 512, %s4245, %s4230, 128, 128, 8
        $region128: #{tpu_custom_call.1} parent=87 // pred_fallthru
          _
      $region88: #{tpu_custom_call.1} parent=5 // pred_fallthru
        _
      %p4251 = scmp.le.s32.totalorder 2, %s33
      // Predicated region
      $region129: #{tpu_custom_call.1} parent=5 // pred_check
        %p4252 = pneg %p4251
      $region130: #{tpu_custom_call.1} parent=5 // pred_check_branch
        %4254 = sbr.rel (%p4252) target = $region132
      $region131: #{tpu_custom_call.1} parent=5 // pred_region
        %s4255 = ssub.s32 %s33, 2
        // Predicated region
        $region133: #{tpu_custom_call.1} parent=131 // pred_check
          %p4256 = pneg %p424
        $region134: #{tpu_custom_call.1} parent=131 // pred_check_branch
          %4258 = sbr.rel (%p4256) target = $region136
        $region135: #{tpu_custom_call.1} parent=131 // pred_region
          %s4259 = sand.u32 %s409, 1
          %s4260 = scalar_lea.sflag [#allocation4], %s4259
          %s4261 = sand.u32 %s409, 1
          %s4262 = smul.addr %s4261, 32
          %s4263 = scalar_lea.vmem [#allocation17], %s4262
          %4265 = dma.done %s4260, 512
        $region136: #{tpu_custom_call.1} parent=131 // pred_fallthru
          _
      $region132: #{tpu_custom_call.1} parent=5 // pred_fallthru
        _
    $region6: #{tpu_custom_call.1} parent=1 // loop_footer
      %s37 = sadd.s32 1, %s33
    $region7: #{tpu_custom_call.1} parent=1 // loop_footer_branch
      %32 = sbr.rel target = $region3
    $region8: #{tpu_custom_call.1} parent=1 // loop_exit
      _
    %4266 = vsyncpa [#allocation3], 1
    %s4267 = scalar_lea.sflag [#allocation3], 1
    %4268 = vsyncpa %s4267, 1
    %4269 = vsyncpa [#allocation6], 1
    %4270 = vsyncpa [#allocation9], 1
    %4271 = vsyncpa [#allocation12], 1
    %4272 = vsyncpa [#allocation15], 1
    %4273 = vsyncpa [#allocation4], 1
    %s4274 = scalar_lea.sflag [#allocation4], 1
    %4275 = vsyncpa %s4274, 1

</llo_original>
